<compile_context>
chip_gen: v7x
topology: tpu7x:2x2x1
jax: 0.10.0
libtpu: 0.0.40
codegen_flags: <defaults>
</compile_context>

<pallas_src>
import math

import jax
import jax.numpy as jnp
from jax.experimental import pallas as pl
from jax.experimental.pallas import tpu as pltpu

# ----------------------------- config ---------------------------------------
BATCH = 2
CHANNELS = 3
IMAGE = 16
PATCH = 8
HIDDEN = 32
NUM_HEADS = 2
HEAD_DIM = HIDDEN // NUM_HEADS
MLP = 4 * HIDDEN
LAYERS = 2
NUM_PATCHES = (IMAGE // PATCH) ** 2
SEQ = NUM_PATCHES + 1            # +1 for CLS
SEQ_PAD = 8                      # pad each image's token block to one sublane tile
LN_EPS = 1e-12                   # HF ViT default layer_norm_eps

_VMEM_SPEC = pl.BlockSpec(memory_space=pltpu.MemorySpace.VMEM)
_INV_SQRT2 = 0.7071067811865476
_NEG = -1e30


# ----------------------------- elementwise helpers ---------------------------
def _erf(x):
    # Abramowitz & Stegun 7.1.26 rational approximation (|err| < 1.5e-7 ~ f32 eps).
    # Uses only exp / mul / add / where so it always lowers in Mosaic.
    a1, a2, a3, a4, a5 = (0.254829592, -0.284496736, 1.421413741,
                          -1.453152027, 1.061405429)
    p = 0.3275911
    ax = jnp.abs(x)
    t = 1.0 / (1.0 + p * ax)
    poly = ((((a5 * t + a4) * t + a3) * t + a2) * t + a1) * t
    y = 1.0 - poly * jnp.exp(-(ax * ax))
    return jnp.where(x >= 0.0, y, -y)


def _gelu(x):
    # exact (erf-based) GELU, matching torch.nn.GELU() default
    return 0.5 * x * (1.0 + _erf(x * _INV_SQRT2))


def _layernorm(x, g, b, eps):
    mean = jnp.mean(x, axis=-1, keepdims=True)
    xc = x - mean
    var = jnp.mean(xc * xc, axis=-1, keepdims=True)
    return xc * jax.lax.rsqrt(var + eps) * g + b


# ----------------------------- fused encoder kernel -------------------------
def _vit_encoder_kernel(
    x_ref,        # (B*SP, C*P*P) bf16  padded patchified pixels (CLS/pad rows = 0)
    addemb_ref,   # (B*SP, D)     f32   cls/pos/patch-bias additive embedding
    patch_w_ref,  # (C*P*P, D)    bf16
    wqkv_ref,     # (L*H*3, D, Dh) bf16 per-(layer, head) [Wq, Wk, Wv]
    bqkv_ref,     # (L*H*3, Dh)   f32
    wo_ref,       # (L*H, Dh, D)  bf16  per-head slices of the output projection
    w1_ref,       # (L, D, MLP)   bf16
    b1_ref,       # (L, MLP)      f32
    w2_ref,       # (L, MLP, D)   bf16
    ln_ref,       # (L*4, D)      f32   [ln1_g, ln1_b, ln2_g, ln2_b] per layer
    bias_d_ref,   # (L*2, D)      f32   [attn_out_bias, mlp_out_bias] per layer
    final_ref,    # (3, D)        f32   [lnf_g, lnf_b, pool_b]
    pool_w_ref,   # (D, D)        bf16
    hid_ref,      # (B*SP, D)     f32 out  GELU(final LN), all rows
    pool_ref,     # (B*SP, D)     f32 out  tanh pooler on all rows (row 0/8 real)
):
    f32, bf16 = jnp.float32, jnp.bfloat16
    scale = 1.0 / math.sqrt(HEAD_DIM)
    N = BATCH * SEQ_PAD

    # Block-diagonal (per-image) attention mask; padded key columns disabled.
    row_ids = jax.lax.broadcasted_iota(jnp.int32, (N, N), 0)
    col_ids = jax.lax.broadcasted_iota(jnp.int32, (N, N), 1)
    valid = None
    for b in range(BATCH):
        r_in = jnp.logical_and(row_ids >= b * SEQ_PAD, row_ids < (b + 1) * SEQ_PAD)
        c_in = jnp.logical_and(col_ids >= b * SEQ_PAD, col_ids < b * SEQ_PAD + SEQ)
        blk = jnp.logical_and(r_in, c_in)
        valid = blk if valid is None else jnp.logical_or(valid, blk)
    attn_mask = jnp.where(valid, 0.0, _NEG).astype(f32)

    # Patch embedding (one MXU matmul) + additive CLS / positional embedding.
    h = jnp.dot(x_ref[...], patch_w_ref[...],
                preferred_element_type=f32) + addemb_ref[...]          # (N, D) f32

    for l in range(LAYERS):
        # ---- multi-head self-attention (pre-norm) ------------------------
        ln1 = _layernorm(h, ln_ref[4 * l + 0], ln_ref[4 * l + 1], LN_EPS).astype(bf16)
        attn = None
        for hh in range(NUM_HEADS):
            base = (l * NUM_HEADS + hh) * 3
            q = jnp.dot(ln1, wqkv_ref[base + 0], preferred_element_type=f32) + bqkv_ref[base + 0]
            k = jnp.dot(ln1, wqkv_ref[base + 1], preferred_element_type=f32) + bqkv_ref[base + 1]
            v = jnp.dot(ln1, wqkv_ref[base + 2], preferred_element_type=f32) + bqkv_ref[base + 2]
            s = jax.lax.dot_general(q.astype(bf16), k.astype(bf16),
                                    (((1,), (1,)), ((), ())),
                                    preferred_element_type=f32) * scale + attn_mask
            m = jnp.max(s, axis=-1, keepdims=True)
            p = jnp.exp(s - m)
            p = p * pl.reciprocal(jnp.sum(p, axis=-1, keepdims=True), approx=True)
            ctx = jnp.dot(p.astype(bf16), v.astype(bf16), preferred_element_type=f32)
            part = jnp.dot(ctx.astype(bf16), wo_ref[l * NUM_HEADS + hh],
                           preferred_element_type=f32)
            attn = part if attn is None else attn + part
        h = h + attn + bias_d_ref[2 * l + 0]

        # ---- MLP (pre-norm) with GELU, residual folded --------------------
        ln2 = _layernorm(h, ln_ref[4 * l + 2], ln_ref[4 * l + 3], LN_EPS).astype(bf16)
        m1 = _gelu(jnp.dot(ln2, w1_ref[l], preferred_element_type=f32) + b1_ref[l])
        h = h + jnp.dot(m1.astype(bf16), w2_ref[l],
                        preferred_element_type=f32) + bias_d_ref[2 * l + 1]

    # ---- final LayerNorm, module-level GELU, tanh pooler -------------------
    lnf = _layernorm(h, final_ref[0], final_ref[1], LN_EPS)             # (N, D)
    hid_ref[...] = _gelu(lnf).astype(hid_ref.dtype)
    pooled = jnp.tanh(jnp.dot(lnf.astype(bf16), pool_w_ref[...],
                              preferred_element_type=f32) + final_ref[2])
    pool_ref[...] = pooled.astype(pool_ref.dtype)


# ----------------------------- parameters -----------------------------------
def init_params(key):
    ks = iter(jax.random.split(key, 8))
    D, Dh, L, H = HIDDEN, HEAD_DIM, LAYERS, NUM_HEADS

    def nrm(shape):
        return (0.02 * jax.random.normal(next(ks), shape, jnp.float32)).astype(jnp.bfloat16)

    ln_rows = jnp.stack([jnp.ones((D,), jnp.float32), jnp.zeros((D,), jnp.float32),
                         jnp.ones((D,), jnp.float32), jnp.zeros((D,), jnp.float32)])
    return {
        # embedding
        "cls": 0.02 * jax.random.normal(next(ks), (D,), jnp.float32),
        "pos": 0.02 * jax.random.normal(next(ks), (SEQ, D), jnp.float32),
        "patch_w": nrm((CHANNELS * PATCH * PATCH, D)),
        "patch_b": jnp.zeros((D,), jnp.float32),
        # attention: pre-split per-(layer, head) weights, flattened leading axis
        "wqkv": nrm((L * H * 3, D, Dh)),
        "bqkv": jnp.zeros((L * H * 3, Dh), jnp.float32),
        "wo": nrm((L * H, Dh, D)),
        # MLP
        "w1": nrm((L, D, MLP)),
        "b1": jnp.zeros((L, MLP), jnp.float32),
        "w2": nrm((L, MLP, D)),
        # packed LN params / residual-path biases
        "ln": jnp.tile(ln_rows, (L, 1)),                    # (L*4, D)
        "bias_d": jnp.zeros((L * 2, D), jnp.float32),       # [bo, b2] per layer
        # final LN + pooler
        "final_vecs": jnp.stack([jnp.ones((D,), jnp.float32),
                                 jnp.zeros((D,), jnp.float32),
                                 jnp.zeros((D,), jnp.float32)]),  # [lnf_g, lnf_b, pool_b]
        "pool_w": nrm((D, D)),
    }


# ----------------------------- forward pass ----------------------------------
def vit_encoder_forward(params, item_content):
    """Equivalent of Vit_Encoder.forward: (GELU(last_hidden_state), pooler_output)."""
    B, C, Hi, Wi = item_content.shape
    assert (B, C, Hi, Wi) == (BATCH, CHANNELS, IMAGE, IMAGE)
    p = PATCH
    nh, nw = Hi // p, Wi // p

    # Patchify (Conv2d with kernel=stride=patch == patch extraction + matmul).
    patches = item_content.reshape(B, C, nh, p, nw, p)
    patches = patches.transpose(0, 2, 4, 1, 3, 5).reshape(B, nh * nw, C * p * p)

    # Pad each image's token block to SEQ_PAD rows (row 0 = CLS slot, tail = pad).
    x_pad = jnp.zeros((B, SEQ_PAD, C * p * p), jnp.float32)
    x_pad = x_pad.at[:, 1:1 + NUM_PATCHES].set(patches)
    x_pad = x_pad.reshape(B * SEQ_PAD, C * p * p).astype(jnp.bfloat16)

    # Additive embedding rows: cls+pos[0] | patch_bias+pos[1:] | zeros (pad rows).
    add = jnp.zeros((SEQ_PAD, HIDDEN), jnp.float32)
    add = add.at[0].set(params["cls"] + params["pos"][0])
    add = add.at[1:1 + NUM_PATCHES].set(params["patch_b"][None, :] + params["pos"][1:])
    addemb = jnp.tile(add, (B, 1))                           # (B*SEQ_PAD, D)

    hid_all, pool_all = pl.pallas_call(
        _vit_encoder_kernel,
        out_shape=(jax.ShapeDtypeStruct((B * SEQ_PAD, HIDDEN), jnp.float32),
                   jax.ShapeDtypeStruct((B * SEQ_PAD, HIDDEN), jnp.float32)),
        in_specs=[_VMEM_SPEC] * 13,
        out_specs=(_VMEM_SPEC, _VMEM_SPEC),
    )(x_pad, addemb, params["patch_w"],
      params["wqkv"], params["bqkv"], params["wo"],
      params["w1"], params["b1"], params["w2"],
      params["ln"], params["bias_d"], params["final_vecs"], params["pool_w"])

    hidden = hid_all.reshape(B, SEQ_PAD, HIDDEN)[:, :SEQ, :]
    pooled = pool_all.reshape(B, SEQ_PAD, HIDDEN)[:, 0, :]
    return hidden, pooled


# ----------------------------- main ------------------------------------------
if __name__ == "__main__":
    key = jax.random.PRNGKey(0)
    pkey, xkey = jax.random.split(key)
    params = init_params(pkey)

    item_content = jax.random.normal(xkey, (BATCH, CHANNELS, IMAGE, IMAGE),
                                     jnp.float32)

    fwd = jax.jit(vit_encoder_forward)
    out_hidden, out_pooled = fwd(params, item_content)
    jax.block_until_ready((out_hidden, out_pooled))

    assert out_hidden.shape == (BATCH, SEQ, HIDDEN)
    assert out_pooled.shape == (BATCH, HIDDEN)
    assert out_hidden.dtype == jnp.float32 and out_pooled.dtype == jnp.float32
    assert bool(jnp.all(jnp.isfinite(out_hidden)))
    assert bool(jnp.all(jnp.isfinite(out_pooled)))
    print("KERNEL_OK")
</pallas_src>

<mosaic_0001>
module attributes {stable_mosaic.version = 11 : i64} {
  func.func @_vit_encoder_kernel(%arg0: memref<16x192xbf16, #tpu.memory_space<vmem>>, %arg1: memref<16x32xf32, #tpu.memory_space<vmem>>, %arg2: memref<192x32xbf16, #tpu.memory_space<vmem>>, %arg3: memref<12x32x16xbf16, #tpu.memory_space<vmem>>, %arg4: memref<12x16xf32, #tpu.memory_space<vmem>>, %arg5: memref<4x16x32xbf16, #tpu.memory_space<vmem>>, %arg6: memref<2x32x128xbf16, #tpu.memory_space<vmem>>, %arg7: memref<2x128xf32, #tpu.memory_space<vmem>>, %arg8: memref<2x128x32xbf16, #tpu.memory_space<vmem>>, %arg9: memref<8x32xf32, #tpu.memory_space<vmem>>, %arg10: memref<4x32xf32, #tpu.memory_space<vmem>>, %arg11: memref<3x32xf32, #tpu.memory_space<vmem>>, %arg12: memref<32x32xbf16, #tpu.memory_space<vmem>>, %arg13: memref<16x32xf32, #tpu.memory_space<vmem>>, %arg14: memref<16x32xf32, #tpu.memory_space<vmem>>) attributes {dimension_semantics = [], scalar_prefetch = 0 : i64, scratch_operands = 0 : i64, tpu.core_type = #tpu.core_type<tc>} {
    %0 = tpu.iota {dimensions = array<i32: 0>} : vector<16x16xi32>
    %1 = tpu.iota {dimensions = array<i32: 1>} : vector<16x16xi32>
    %c0_i32 = arith.constant 0 : i32
    %2 = vector.broadcast %c0_i32 : i32 to vector<16x16xi32>
    %3 = arith.cmpi sge, %0, %2 : vector<16x16xi32>
    %c8_i32 = arith.constant 8 : i32
    %4 = vector.broadcast %c8_i32 : i32 to vector<16x16xi32>
    %5 = arith.cmpi slt, %0, %4 : vector<16x16xi32>
    %6 = arith.andi %3, %5 : vector<16x16xi1>
    %c0_i32_0 = arith.constant 0 : i32
    %7 = vector.broadcast %c0_i32_0 : i32 to vector<16x16xi32>
    %8 = arith.cmpi sge, %1, %7 : vector<16x16xi32>
    %c5_i32 = arith.constant 5 : i32
    %9 = vector.broadcast %c5_i32 : i32 to vector<16x16xi32>
    %10 = arith.cmpi slt, %1, %9 : vector<16x16xi32>
    %11 = arith.andi %8, %10 : vector<16x16xi1>
    %12 = arith.andi %6, %11 : vector<16x16xi1>
    %c8_i32_1 = arith.constant 8 : i32
    %13 = vector.broadcast %c8_i32_1 : i32 to vector<16x16xi32>
    %14 = arith.cmpi sge, %0, %13 : vector<16x16xi32>
    %c16_i32 = arith.constant 16 : i32
    %15 = vector.broadcast %c16_i32 : i32 to vector<16x16xi32>
    %16 = arith.cmpi slt, %0, %15 : vector<16x16xi32>
    %17 = arith.andi %14, %16 : vector<16x16xi1>
    %c8_i32_2 = arith.constant 8 : i32
    %18 = vector.broadcast %c8_i32_2 : i32 to vector<16x16xi32>
    %19 = arith.cmpi sge, %1, %18 : vector<16x16xi32>
    %c13_i32 = arith.constant 13 : i32
    %20 = vector.broadcast %c13_i32 : i32 to vector<16x16xi32>
    %21 = arith.cmpi slt, %1, %20 : vector<16x16xi32>
    %22 = arith.andi %19, %21 : vector<16x16xi1>
    %23 = arith.andi %17, %22 : vector<16x16xi1>
    %24 = arith.ori %12, %23 : vector<16x16xi1>
    %cst = arith.constant 0.000000e+00 : f32
    %cst_3 = arith.constant -1.000000e+30 : f32
    %25 = vector.broadcast %cst : f32 to vector<16x16xf32>
    %26 = vector.broadcast %cst_3 : f32 to vector<16x16xf32>
    %27 = arith.select %24, %25, %26 : vector<16x16xi1>, vector<16x16xf32>
    %c0 = arith.constant 0 : index
    %c0_4 = arith.constant 0 : index
    %28 = vector.load %arg0[%c0, %c0_4] : memref<16x192xbf16, #tpu.memory_space<vmem>>, vector<16x192xbf16>
    %c0_5 = arith.constant 0 : index
    %c0_6 = arith.constant 0 : index
    %29 = vector.load %arg2[%c0_5, %c0_6] : memref<192x32xbf16, #tpu.memory_space<vmem>>, vector<192x32xbf16>
    %cst_7 = arith.constant dense<0.000000e+00> : vector<16x32xf32>
    %30 = tpu.matmul %28, %29, %cst_7 {dimension_numbers = #tpu.dot_dimension_numbers<[1], [0], [0], [1], [0, 0, 1, 1], [], []>} : vector<16x192xbf16>, vector<192x32xbf16>, vector<16x32xf32> -> vector<16x32xf32>
    %c0_8 = arith.constant 0 : index
    %c0_9 = arith.constant 0 : index
    %31 = vector.load %arg1[%c0_8, %c0_9] : memref<16x32xf32, #tpu.memory_space<vmem>>, vector<16x32xf32>
    %32 = arith.addf %30, %31 : vector<16x32xf32>
    %c0_10 = arith.constant 0 : index
    %c0_11 = arith.constant 0 : index
    %33 = vector.load %arg9[%c0_10, %c0_11] : memref<8x32xf32, #tpu.memory_space<vmem>>, vector<1x32xf32>
    %34 = vector.shape_cast %33 : vector<1x32xf32> to vector<32xf32>
    %c1 = arith.constant 1 : index
    %c0_12 = arith.constant 0 : index
    %35 = vector.load %arg9[%c1, %c0_12] : memref<8x32xf32, #tpu.memory_space<vmem>>, vector<1x32xf32>
    %36 = vector.shape_cast %35 : vector<1x32xf32> to vector<32xf32>
    %cst_13 = arith.constant dense<0.000000e+00> : vector<16xf32>
    %37 = vector.multi_reduction <add>, %32, %cst_13 [1] : vector<16x32xf32> to vector<16xf32>
    %38 = vector.shape_cast %37 : vector<16xf32> to vector<16x1xf32>
    %cst_14 = arith.constant 3.200000e+01 : f32
    %39 = vector.broadcast %cst_14 : f32 to vector<16x1xf32>
    %40 = arith.divf %38, %39 : vector<16x1xf32>
    %41 = vector.broadcast %40 : vector<16x1xf32> to vector<16x32xf32>
    %42 = arith.subf %32, %41 : vector<16x32xf32>
    %43 = arith.mulf %42, %42 : vector<16x32xf32>
    %cst_15 = arith.constant dense<0.000000e+00> : vector<16xf32>
    %44 = vector.multi_reduction <add>, %43, %cst_15 [1] : vector<16x32xf32> to vector<16xf32>
    %45 = vector.shape_cast %44 : vector<16xf32> to vector<16x1xf32>
    %cst_16 = arith.constant 3.200000e+01 : f32
    %46 = vector.broadcast %cst_16 : f32 to vector<16x1xf32>
    %47 = arith.divf %45, %46 : vector<16x1xf32>
    %cst_17 = arith.constant 9.99999996E-13 : f32
    %48 = vector.broadcast %cst_17 : f32 to vector<16x1xf32>
    %49 = arith.addf %47, %48 : vector<16x1xf32>
    %50 = math.rsqrt %49 : vector<16x1xf32>
    %51 = vector.broadcast %50 : vector<16x1xf32> to vector<16x32xf32>
    %52 = arith.mulf %42, %51 : vector<16x32xf32>
    %53 = vector.shape_cast %34 : vector<32xf32> to vector<1x32xf32>
    %54 = vector.broadcast %53 : vector<1x32xf32> to vector<16x32xf32>
    %55 = arith.mulf %52, %54 : vector<16x32xf32>
    %56 = vector.shape_cast %36 : vector<32xf32> to vector<1x32xf32>
    %57 = vector.broadcast %56 : vector<1x32xf32> to vector<16x32xf32>
    %58 = arith.addf %55, %57 : vector<16x32xf32>
    %59 = arith.truncf %58 : vector<16x32xf32> to vector<16x32xbf16>
    %c0_18 = arith.constant 0 : index
    %c0_19 = arith.constant 0 : index
    %c0_20 = arith.constant 0 : index
    %60 = vector.load %arg3[%c0_18, %c0_19, %c0_20] : memref<12x32x16xbf16, #tpu.memory_space<vmem>>, vector<1x32x16xbf16>
    %61 = vector.shape_cast %60 : vector<1x32x16xbf16> to vector<32x16xbf16>
    %cst_21 = arith.constant dense<0.000000e+00> : vector<16x16xf32>
    %62 = tpu.matmul %59, %61, %cst_21 {dimension_numbers = #tpu.dot_dimension_numbers<[1], [0], [0], [1], [0, 0, 1, 1], [], []>} : vector<16x32xbf16>, vector<32x16xbf16>, vector<16x16xf32> -> vector<16x16xf32>
    %c0_22 = arith.constant 0 : index
    %c0_23 = arith.constant 0 : index
    %63 = vector.load %arg4[%c0_22, %c0_23] : memref<12x16xf32, #tpu.memory_space<vmem>>, vector<1x16xf32>
    %64 = vector.shape_cast %63 : vector<1x16xf32> to vector<16xf32>
    %65 = vector.shape_cast %64 : vector<16xf32> to vector<1x16xf32>
    %66 = vector.broadcast %65 : vector<1x16xf32> to vector<16x16xf32>
    %67 = arith.addf %62, %66 : vector<16x16xf32>
    %c1_24 = arith.constant 1 : index
    %c0_25 = arith.constant 0 : index
    %c0_26 = arith.constant 0 : index
    %68 = vector.load %arg3[%c1_24, %c0_25, %c0_26] : memref<12x32x16xbf16, #tpu.memory_space<vmem>>, vector<1x32x16xbf16>
    %69 = vector.shape_cast %68 : vector<1x32x16xbf16> to vector<32x16xbf16>
    %cst_27 = arith.constant dense<0.000000e+00> : vector<16x16xf32>
    %70 = tpu.matmul %59, %69, %cst_27 {dimension_numbers = #tpu.dot_dimension_numbers<[1], [0], [0], [1], [0, 0, 1, 1], [], []>} : vector<16x32xbf16>, vector<32x16xbf16>, vector<16x16xf32> -> vector<16x16xf32>
    %c1_28 = arith.constant 1 : index
    %c0_29 = arith.constant 0 : index
    %71 = vector.load %arg4[%c1_28, %c0_29] : memref<12x16xf32, #tpu.memory_space<vmem>>, vector<1x16xf32>
    %72 = vector.shape_cast %71 : vector<1x16xf32> to vector<16xf32>
    %73 = vector.shape_cast %72 : vector<16xf32> to vector<1x16xf32>
    %74 = vector.broadcast %73 : vector<1x16xf32> to vector<16x16xf32>
    %75 = arith.addf %70, %74 : vector<16x16xf32>
    %c2 = arith.constant 2 : index
    %c0_30 = arith.constant 0 : index
    %c0_31 = arith.constant 0 : index
    %76 = vector.load %arg3[%c2, %c0_30, %c0_31] : memref<12x32x16xbf16, #tpu.memory_space<vmem>>, vector<1x32x16xbf16>
    %77 = vector.shape_cast %76 : vector<1x32x16xbf16> to vector<32x16xbf16>
    %cst_32 = arith.constant dense<0.000000e+00> : vector<16x16xf32>
    %78 = tpu.matmul %59, %77, %cst_32 {dimension_numbers = #tpu.dot_dimension_numbers<[1], [0], [0], [1], [0, 0, 1, 1], [], []>} : vector<16x32xbf16>, vector<32x16xbf16>, vector<16x16xf32> -> vector<16x16xf32>
    %c2_33 = arith.constant 2 : index
    %c0_34 = arith.constant 0 : index
    %79 = vector.load %arg4[%c2_33, %c0_34] : memref<12x16xf32, #tpu.memory_space<vmem>>, vector<1x16xf32>
    %80 = vector.shape_cast %79 : vector<1x16xf32> to vector<16xf32>
    %81 = vector.shape_cast %80 : vector<16xf32> to vector<1x16xf32>
    %82 = vector.broadcast %81 : vector<1x16xf32> to vector<16x16xf32>
    %83 = arith.addf %78, %82 : vector<16x16xf32>
    %84 = arith.truncf %67 : vector<16x16xf32> to vector<16x16xbf16>
    %85 = arith.truncf %75 : vector<16x16xf32> to vector<16x16xbf16>
    %cst_35 = arith.constant dense<0.000000e+00> : vector<16x16xf32>
    %86 = tpu.matmul %84, %85, %cst_35 {dimension_numbers = #tpu.dot_dimension_numbers<[1], [1], [0], [0], [0, 0, 1, 0], [], []>} : vector<16x16xbf16>, vector<16x16xbf16>, vector<16x16xf32> -> vector<16x16xf32>
    %cst_36 = arith.constant 2.500000e-01 : f32
    %87 = vector.broadcast %cst_36 : f32 to vector<16x16xf32>
    %88 = arith.mulf %86, %87 : vector<16x16xf32>
    %89 = arith.addf %88, %27 : vector<16x16xf32>
    %cst_37 = arith.constant dense<0xFF800000> : vector<16xf32>
    %90 = vector.multi_reduction <maximumf>, %89, %cst_37 [1] : vector<16x16xf32> to vector<16xf32>
    %91 = vector.shape_cast %90 : vector<16xf32> to vector<16x1xf32>
    %92 = vector.broadcast %91 : vector<16x1xf32> to vector<16x16xf32>
    %93 = arith.subf %89, %92 : vector<16x16xf32>
    %94 = math.exp %93 : vector<16x16xf32>
    %cst_38 = arith.constant dense<0.000000e+00> : vector<16xf32>
    %95 = vector.multi_reduction <add>, %94, %cst_38 [1] : vector<16x16xf32> to vector<16xf32>
    %96 = vector.shape_cast %95 : vector<16xf32> to vector<16x1xf32>
    %97 = tpu.reciprocal %96 {approx = true} : vector<16x1xf32> -> vector<16x1xf32>
    %98 = vector.broadcast %97 : vector<16x1xf32> to vector<16x16xf32>
    %99 = arith.mulf %94, %98 : vector<16x16xf32>
    %100 = arith.truncf %99 : vector<16x16xf32> to vector<16x16xbf16>
    %101 = arith.truncf %83 : vector<16x16xf32> to vector<16x16xbf16>
    %cst_39 = arith.constant dense<0.000000e+00> : vector<16x16xf32>
    %102 = tpu.matmul %100, %101, %cst_39 {dimension_numbers = #tpu.dot_dimension_numbers<[1], [0], [0], [1], [0, 0, 1, 1], [], []>} : vector<16x16xbf16>, vector<16x16xbf16>, vector<16x16xf32> -> vector<16x16xf32>
    %103 = arith.truncf %102 : vector<16x16xf32> to vector<16x16xbf16>
    %c0_40 = arith.constant 0 : index
    %c0_41 = arith.constant 0 : index
    %c0_42 = arith.constant 0 : index
    %104 = vector.load %arg5[%c0_40, %c0_41, %c0_42] : memref<4x16x32xbf16, #tpu.memory_space<vmem>>, vector<1x16x32xbf16>
    %105 = vector.shape_cast %104 : vector<1x16x32xbf16> to vector<16x32xbf16>
    %cst_43 = arith.constant dense<0.000000e+00> : vector<16x32xf32>
    %106 = tpu.matmul %103, %105, %cst_43 {dimension_numbers = #tpu.dot_dimension_numbers<[1], [0], [0], [1], [0, 0, 1, 1], [], []>} : vector<16x16xbf16>, vector<16x32xbf16>, vector<16x32xf32> -> vector<16x32xf32>
    %c3 = arith.constant 3 : index
    %c0_44 = arith.constant 0 : index
    %c0_45 = arith.constant 0 : index
    %107 = vector.load %arg3[%c3, %c0_44, %c0_45] : memref<12x32x16xbf16, #tpu.memory_space<vmem>>, vector<1x32x16xbf16>
    %108 = vector.shape_cast %107 : vector<1x32x16xbf16> to vector<32x16xbf16>
    %cst_46 = arith.constant dense<0.000000e+00> : vector<16x16xf32>
    %109 = tpu.matmul %59, %108, %cst_46 {dimension_numbers = #tpu.dot_dimension_numbers<[1], [0], [0], [1], [0, 0, 1, 1], [], []>} : vector<16x32xbf16>, vector<32x16xbf16>, vector<16x16xf32> -> vector<16x16xf32>
    %c3_47 = arith.constant 3 : index
    %c0_48 = arith.constant 0 : index
    %110 = vector.load %arg4[%c3_47, %c0_48] : memref<12x16xf32, #tpu.memory_space<vmem>>, vector<1x16xf32>
    %111 = vector.shape_cast %110 : vector<1x16xf32> to vector<16xf32>
    %112 = vector.shape_cast %111 : vector<16xf32> to vector<1x16xf32>
    %113 = vector.broadcast %112 : vector<1x16xf32> to vector<16x16xf32>
    %114 = arith.addf %109, %113 : vector<16x16xf32>
    %c4 = arith.constant 4 : index
    %c0_49 = arith.constant 0 : index
    %c0_50 = arith.constant 0 : index
    %115 = vector.load %arg3[%c4, %c0_49, %c0_50] : memref<12x32x16xbf16, #tpu.memory_space<vmem>>, vector<1x32x16xbf16>
    %116 = vector.shape_cast %115 : vector<1x32x16xbf16> to vector<32x16xbf16>
    %cst_51 = arith.constant dense<0.000000e+00> : vector<16x16xf32>
    %117 = tpu.matmul %59, %116, %cst_51 {dimension_numbers = #tpu.dot_dimension_numbers<[1], [0], [0], [1], [0, 0, 1, 1], [], []>} : vector<16x32xbf16>, vector<32x16xbf16>, vector<16x16xf32> -> vector<16x16xf32>
    %c4_52 = arith.constant 4 : index
    %c0_53 = arith.constant 0 : index
    %118 = vector.load %arg4[%c4_52, %c0_53] : memref<12x16xf32, #tpu.memory_space<vmem>>, vector<1x16xf32>
    %119 = vector.shape_cast %118 : vector<1x16xf32> to vector<16xf32>
    %120 = vector.shape_cast %119 : vector<16xf32> to vector<1x16xf32>
    %121 = vector.broadcast %120 : vector<1x16xf32> to vector<16x16xf32>
    %122 = arith.addf %117, %121 : vector<16x16xf32>
    %c5 = arith.constant 5 : index
    %c0_54 = arith.constant 0 : index
    %c0_55 = arith.constant 0 : index
    %123 = vector.load %arg3[%c5, %c0_54, %c0_55] : memref<12x32x16xbf16, #tpu.memory_space<vmem>>, vector<1x32x16xbf16>
    %124 = vector.shape_cast %123 : vector<1x32x16xbf16> to vector<32x16xbf16>
    %cst_56 = arith.constant dense<0.000000e+00> : vector<16x16xf32>
    %125 = tpu.matmul %59, %124, %cst_56 {dimension_numbers = #tpu.dot_dimension_numbers<[1], [0], [0], [1], [0, 0, 1, 1], [], []>} : vector<16x32xbf16>, vector<32x16xbf16>, vector<16x16xf32> -> vector<16x16xf32>
    %c5_57 = arith.constant 5 : index
    %c0_58 = arith.constant 0 : index
    %126 = vector.load %arg4[%c5_57, %c0_58] : memref<12x16xf32, #tpu.memory_space<vmem>>, vector<1x16xf32>
    %127 = vector.shape_cast %126 : vector<1x16xf32> to vector<16xf32>
    %128 = vector.shape_cast %127 : vector<16xf32> to vector<1x16xf32>
    %129 = vector.broadcast %128 : vector<1x16xf32> to vector<16x16xf32>
    %130 = arith.addf %125, %129 : vector<16x16xf32>
    %131 = arith.truncf %114 : vector<16x16xf32> to vector<16x16xbf16>
    %132 = arith.truncf %122 : vector<16x16xf32> to vector<16x16xbf16>
    %cst_59 = arith.constant dense<0.000000e+00> : vector<16x16xf32>
    %133 = tpu.matmul %131, %132, %cst_59 {dimension_numbers = #tpu.dot_dimension_numbers<[1], [1], [0], [0], [0, 0, 1, 0], [], []>} : vector<16x16xbf16>, vector<16x16xbf16>, vector<16x16xf32> -> vector<16x16xf32>
    %cst_60 = arith.constant 2.500000e-01 : f32
    %134 = vector.broadcast %cst_60 : f32 to vector<16x16xf32>
    %135 = arith.mulf %133, %134 : vector<16x16xf32>
    %136 = arith.addf %135, %27 : vector<16x16xf32>
    %cst_61 = arith.constant dense<0xFF800000> : vector<16xf32>
    %137 = vector.multi_reduction <maximumf>, %136, %cst_61 [1] : vector<16x16xf32> to vector<16xf32>
    %138 = vector.shape_cast %137 : vector<16xf32> to vector<16x1xf32>
    %139 = vector.broadcast %138 : vector<16x1xf32> to vector<16x16xf32>
    %140 = arith.subf %136, %139 : vector<16x16xf32>
    %141 = math.exp %140 : vector<16x16xf32>
    %cst_62 = arith.constant dense<0.000000e+00> : vector<16xf32>
    %142 = vector.multi_reduction <add>, %141, %cst_62 [1] : vector<16x16xf32> to vector<16xf32>
    %143 = vector.shape_cast %142 : vector<16xf32> to vector<16x1xf32>
    %144 = tpu.reciprocal %143 {approx = true} : vector<16x1xf32> -> vector<16x1xf32>
    %145 = vector.broadcast %144 : vector<16x1xf32> to vector<16x16xf32>
    %146 = arith.mulf %141, %145 : vector<16x16xf32>
    %147 = arith.truncf %146 : vector<16x16xf32> to vector<16x16xbf16>
    %148 = arith.truncf %130 : vector<16x16xf32> to vector<16x16xbf16>
    %cst_63 = arith.constant dense<0.000000e+00> : vector<16x16xf32>
    %149 = tpu.matmul %147, %148, %cst_63 {dimension_numbers = #tpu.dot_dimension_numbers<[1], [0], [0], [1], [0, 0, 1, 1], [], []>} : vector<16x16xbf16>, vector<16x16xbf16>, vector<16x16xf32> -> vector<16x16xf32>
    %150 = arith.truncf %149 : vector<16x16xf32> to vector<16x16xbf16>
    %c1_64 = arith.constant 1 : index
    %c0_65 = arith.constant 0 : index
    %c0_66 = arith.constant 0 : index
    %151 = vector.load %arg5[%c1_64, %c0_65, %c0_66] : memref<4x16x32xbf16, #tpu.memory_space<vmem>>, vector<1x16x32xbf16>
    %152 = vector.shape_cast %151 : vector<1x16x32xbf16> to vector<16x32xbf16>
    %cst_67 = arith.constant dense<0.000000e+00> : vector<16x32xf32>
    %153 = tpu.matmul %150, %152, %cst_67 {dimension_numbers = #tpu.dot_dimension_numbers<[1], [0], [0], [1], [0, 0, 1, 1], [], []>} : vector<16x16xbf16>, vector<16x32xbf16>, vector<16x32xf32> -> vector<16x32xf32>
    %154 = arith.addf %106, %153 : vector<16x32xf32>
    %155 = arith.addf %32, %154 : vector<16x32xf32>
    %c0_68 = arith.constant 0 : index
    %c0_69 = arith.constant 0 : index
    %156 = vector.load %arg10[%c0_68, %c0_69] : memref<4x32xf32, #tpu.memory_space<vmem>>, vector<1x32xf32>
    %157 = vector.shape_cast %156 : vector<1x32xf32> to vector<32xf32>
    %158 = vector.shape_cast %157 : vector<32xf32> to vector<1x32xf32>
    %159 = vector.broadcast %158 : vector<1x32xf32> to vector<16x32xf32>
    %160 = arith.addf %155, %159 : vector<16x32xf32>
    %c2_70 = arith.constant 2 : index
    %c0_71 = arith.constant 0 : index
    %161 = vector.load %arg9[%c2_70, %c0_71] : memref<8x32xf32, #tpu.memory_space<vmem>>, vector<1x32xf32>
    %162 = vector.shape_cast %161 : vector<1x32xf32> to vector<32xf32>
    %c3_72 = arith.constant 3 : index
    %c0_73 = arith.constant 0 : index
    %163 = vector.load %arg9[%c3_72, %c0_73] : memref<8x32xf32, #tpu.memory_space<vmem>>, vector<1x32xf32>
    %164 = vector.shape_cast %163 : vector<1x32xf32> to vector<32xf32>
    %cst_74 = arith.constant dense<0.000000e+00> : vector<16xf32>
    %165 = vector.multi_reduction <add>, %160, %cst_74 [1] : vector<16x32xf32> to vector<16xf32>
    %166 = vector.shape_cast %165 : vector<16xf32> to vector<16x1xf32>
    %cst_75 = arith.constant 3.200000e+01 : f32
    %167 = vector.broadcast %cst_75 : f32 to vector<16x1xf32>
    %168 = arith.divf %166, %167 : vector<16x1xf32>
    %169 = vector.broadcast %168 : vector<16x1xf32> to vector<16x32xf32>
    %170 = arith.subf %160, %169 : vector<16x32xf32>
    %171 = arith.mulf %170, %170 : vector<16x32xf32>
    %cst_76 = arith.constant dense<0.000000e+00> : vector<16xf32>
    %172 = vector.multi_reduction <add>, %171, %cst_76 [1] : vector<16x32xf32> to vector<16xf32>
    %173 = vector.shape_cast %172 : vector<16xf32> to vector<16x1xf32>
    %cst_77 = arith.constant 3.200000e+01 : f32
    %174 = vector.broadcast %cst_77 : f32 to vector<16x1xf32>
    %175 = arith.divf %173, %174 : vector<16x1xf32>
    %cst_78 = arith.constant 9.99999996E-13 : f32
    %176 = vector.broadcast %cst_78 : f32 to vector<16x1xf32>
    %177 = arith.addf %175, %176 : vector<16x1xf32>
    %178 = math.rsqrt %177 : vector<16x1xf32>
    %179 = vector.broadcast %178 : vector<16x1xf32> to vector<16x32xf32>
    %180 = arith.mulf %170, %179 : vector<16x32xf32>
    %181 = vector.shape_cast %162 : vector<32xf32> to vector<1x32xf32>
    %182 = vector.broadcast %181 : vector<1x32xf32> to vector<16x32xf32>
    %183 = arith.mulf %180, %182 : vector<16x32xf32>
    %184 = vector.shape_cast %164 : vector<32xf32> to vector<1x32xf32>
    %185 = vector.broadcast %184 : vector<1x32xf32> to vector<16x32xf32>
    %186 = arith.addf %183, %185 : vector<16x32xf32>
    %187 = arith.truncf %186 : vector<16x32xf32> to vector<16x32xbf16>
    %c0_79 = arith.constant 0 : index
    %c0_80 = arith.constant 0 : index
    %c0_81 = arith.constant 0 : index
    %188 = vector.load %arg6[%c0_79, %c0_80, %c0_81] : memref<2x32x128xbf16, #tpu.memory_space<vmem>>, vector<1x32x128xbf16>
    %189 = vector.shape_cast %188 : vector<1x32x128xbf16> to vector<32x128xbf16>
    %cst_82 = arith.constant dense<0.000000e+00> : vector<16x128xf32>
    %190 = tpu.matmul %187, %189, %cst_82 {dimension_numbers = #tpu.dot_dimension_numbers<[1], [0], [0], [1], [0, 0, 1, 1], [], []>} : vector<16x32xbf16>, vector<32x128xbf16>, vector<16x128xf32> -> vector<16x128xf32>
    %c0_83 = arith.constant 0 : index
    %c0_84 = arith.constant 0 : index
    %191 = vector.load %arg7[%c0_83, %c0_84] : memref<2x128xf32, #tpu.memory_space<vmem>>, vector<1x128xf32>
    %192 = vector.shape_cast %191 : vector<1x128xf32> to vector<128xf32>
    %193 = vector.shape_cast %192 : vector<128xf32> to vector<1x128xf32>
    %194 = vector.broadcast %193 : vector<1x128xf32> to vector<16x128xf32>
    %195 = arith.addf %190, %194 : vector<16x128xf32>
    %cst_85 = arith.constant 5.000000e-01 : f32
    %196 = vector.broadcast %cst_85 : f32 to vector<16x128xf32>
    %197 = arith.mulf %196, %195 : vector<16x128xf32>
    %cst_86 = arith.constant 0.707106769 : f32
    %198 = vector.broadcast %cst_86 : f32 to vector<16x128xf32>
    %199 = arith.mulf %195, %198 : vector<16x128xf32>
    %200 = math.absf %199 : vector<16x128xf32>
    %cst_87 = arith.constant 0.327591091 : f32
    %201 = vector.broadcast %cst_87 : f32 to vector<16x128xf32>
    %202 = arith.mulf %201, %200 : vector<16x128xf32>
    %cst_88 = arith.constant 1.000000e+00 : f32
    %203 = vector.broadcast %cst_88 : f32 to vector<16x128xf32>
    %204 = arith.addf %203, %202 : vector<16x128xf32>
    %cst_89 = arith.constant 1.000000e+00 : f32
    %205 = vector.broadcast %cst_89 : f32 to vector<16x128xf32>
    %206 = arith.divf %205, %204 : vector<16x128xf32>
    %cst_90 = arith.constant 1.06140542 : f32
    %207 = vector.broadcast %cst_90 : f32 to vector<16x128xf32>
    %208 = arith.mulf %207, %206 : vector<16x128xf32>
    %cst_91 = arith.constant -1.45315206 : f32
    %209 = vector.broadcast %cst_91 : f32 to vector<16x128xf32>
    %210 = arith.addf %208, %209 : vector<16x128xf32>
    %211 = arith.mulf %210, %206 : vector<16x128xf32>
    %cst_92 = arith.constant 1.42141378 : f32
    %212 = vector.broadcast %cst_92 : f32 to vector<16x128xf32>
    %213 = arith.addf %211, %212 : vector<16x128xf32>
    %214 = arith.mulf %213, %206 : vector<16x128xf32>
    %cst_93 = arith.constant -0.284496725 : f32
    %215 = vector.broadcast %cst_93 : f32 to vector<16x128xf32>
    %216 = arith.addf %214, %215 : vector<16x128xf32>
    %217 = arith.mulf %216, %206 : vector<16x128xf32>
    %cst_94 = arith.constant 0.254829586 : f32
    %218 = vector.broadcast %cst_94 : f32 to vector<16x128xf32>
    %219 = arith.addf %217, %218 : vector<16x128xf32>
    %220 = arith.mulf %219, %206 : vector<16x128xf32>
    %221 = arith.mulf %200, %200 : vector<16x128xf32>
    %cst_95 = arith.constant 0.000000e+00 : f32
    %222 = vector.broadcast %cst_95 : f32 to vector<16x128xf32>
    %223 = arith.subf %222, %221 : vector<16x128xf32>
    %224 = math.exp %223 : vector<16x128xf32>
    %225 = arith.mulf %220, %224 : vector<16x128xf32>
    %cst_96 = arith.constant 1.000000e+00 : f32
    %226 = vector.broadcast %cst_96 : f32 to vector<16x128xf32>
    %227 = arith.subf %226, %225 : vector<16x128xf32>
    %cst_97 = arith.constant 0.000000e+00 : f32
    %228 = vector.broadcast %cst_97 : f32 to vector<16x128xf32>
    %229 = arith.cmpf oge, %199, %228 : vector<16x128xf32>
    %cst_98 = arith.constant 0.000000e+00 : f32
    %230 = vector.broadcast %cst_98 : f32 to vector<16x128xf32>
    %231 = arith.subf %230, %227 : vector<16x128xf32>
    %232 = arith.select %229, %227, %231 : vector<16x128xi1>, vector<16x128xf32>
    %cst_99 = arith.constant 1.000000e+00 : f32
    %233 = vector.broadcast %cst_99 : f32 to vector<16x128xf32>
    %234 = arith.addf %233, %232 : vector<16x128xf32>
    %235 = arith.mulf %197, %234 : vector<16x128xf32>
    %236 = arith.truncf %235 : vector<16x128xf32> to vector<16x128xbf16>
    %c0_100 = arith.constant 0 : index
    %c0_101 = arith.constant 0 : index
    %c0_102 = arith.constant 0 : index
    %237 = vector.load %arg8[%c0_100, %c0_101, %c0_102] : memref<2x128x32xbf16, #tpu.memory_space<vmem>>, vector<1x128x32xbf16>
    %238 = vector.shape_cast %237 : vector<1x128x32xbf16> to vector<128x32xbf16>
    %cst_103 = arith.constant dense<0.000000e+00> : vector<16x32xf32>
    %239 = tpu.matmul %236, %238, %cst_103 {dimension_numbers = #tpu.dot_dimension_numbers<[1], [0], [0], [1], [0, 0, 1, 1], [], []>} : vector<16x128xbf16>, vector<128x32xbf16>, vector<16x32xf32> -> vector<16x32xf32>
    %240 = arith.addf %160, %239 : vector<16x32xf32>
    %c1_104 = arith.constant 1 : index
    %c0_105 = arith.constant 0 : index
    %241 = vector.load %arg10[%c1_104, %c0_105] : memref<4x32xf32, #tpu.memory_space<vmem>>, vector<1x32xf32>
    %242 = vector.shape_cast %241 : vector<1x32xf32> to vector<32xf32>
    %243 = vector.shape_cast %242 : vector<32xf32> to vector<1x32xf32>
    %244 = vector.broadcast %243 : vector<1x32xf32> to vector<16x32xf32>
    %245 = arith.addf %240, %244 : vector<16x32xf32>
    %c4_106 = arith.constant 4 : index
    %c0_107 = arith.constant 0 : index
    %246 = vector.load %arg9[%c4_106, %c0_107] : memref<8x32xf32, #tpu.memory_space<vmem>>, vector<1x32xf32>
    %247 = vector.shape_cast %246 : vector<1x32xf32> to vector<32xf32>
    %c5_108 = arith.constant 5 : index
    %c0_109 = arith.constant 0 : index
    %248 = vector.load %arg9[%c5_108, %c0_109] : memref<8x32xf32, #tpu.memory_space<vmem>>, vector<1x32xf32>
    %249 = vector.shape_cast %248 : vector<1x32xf32> to vector<32xf32>
    %cst_110 = arith.constant dense<0.000000e+00> : vector<16xf32>
    %250 = vector.multi_reduction <add>, %245, %cst_110 [1] : vector<16x32xf32> to vector<16xf32>
    %251 = vector.shape_cast %250 : vector<16xf32> to vector<16x1xf32>
    %cst_111 = arith.constant 3.200000e+01 : f32
    %252 = vector.broadcast %cst_111 : f32 to vector<16x1xf32>
    %253 = arith.divf %251, %252 : vector<16x1xf32>
    %254 = vector.broadcast %253 : vector<16x1xf32> to vector<16x32xf32>
    %255 = arith.subf %245, %254 : vector<16x32xf32>
    %256 = arith.mulf %255, %255 : vector<16x32xf32>
    %cst_112 = arith.constant dense<0.000000e+00> : vector<16xf32>
    %257 = vector.multi_reduction <add>, %256, %cst_112 [1] : vector<16x32xf32> to vector<16xf32>
    %258 = vector.shape_cast %257 : vector<16xf32> to vector<16x1xf32>
    %cst_113 = arith.constant 3.200000e+01 : f32
    %259 = vector.broadcast %cst_113 : f32 to vector<16x1xf32>
    %260 = arith.divf %258, %259 : vector<16x1xf32>
    %cst_114 = arith.constant 9.99999996E-13 : f32
    %261 = vector.broadcast %cst_114 : f32 to vector<16x1xf32>
    %262 = arith.addf %260, %261 : vector<16x1xf32>
    %263 = math.rsqrt %262 : vector<16x1xf32>
    %264 = vector.broadcast %263 : vector<16x1xf32> to vector<16x32xf32>
    %265 = arith.mulf %255, %264 : vector<16x32xf32>
    %266 = vector.shape_cast %247 : vector<32xf32> to vector<1x32xf32>
    %267 = vector.broadcast %266 : vector<1x32xf32> to vector<16x32xf32>
    %268 = arith.mulf %265, %267 : vector<16x32xf32>
    %269 = vector.shape_cast %249 : vector<32xf32> to vector<1x32xf32>
    %270 = vector.broadcast %269 : vector<1x32xf32> to vector<16x32xf32>
    %271 = arith.addf %268, %270 : vector<16x32xf32>
    %272 = arith.truncf %271 : vector<16x32xf32> to vector<16x32xbf16>
    %c6 = arith.constant 6 : index
    %c0_115 = arith.constant 0 : index
    %c0_116 = arith.constant 0 : index
    %273 = vector.load %arg3[%c6, %c0_115, %c0_116] : memref<12x32x16xbf16, #tpu.memory_space<vmem>>, vector<1x32x16xbf16>
    %274 = vector.shape_cast %273 : vector<1x32x16xbf16> to vector<32x16xbf16>
    %cst_117 = arith.constant dense<0.000000e+00> : vector<16x16xf32>
    %275 = tpu.matmul %272, %274, %cst_117 {dimension_numbers = #tpu.dot_dimension_numbers<[1], [0], [0], [1], [0, 0, 1, 1], [], []>} : vector<16x32xbf16>, vector<32x16xbf16>, vector<16x16xf32> -> vector<16x16xf32>
    %c6_118 = arith.constant 6 : index
    %c0_119 = arith.constant 0 : index
    %276 = vector.load %arg4[%c6_118, %c0_119] : memref<12x16xf32, #tpu.memory_space<vmem>>, vector<1x16xf32>
    %277 = vector.shape_cast %276 : vector<1x16xf32> to vector<16xf32>
    %278 = vector.shape_cast %277 : vector<16xf32> to vector<1x16xf32>
    %279 = vector.broadcast %278 : vector<1x16xf32> to vector<16x16xf32>
    %280 = arith.addf %275, %279 : vector<16x16xf32>
    %c7 = arith.constant 7 : index
    %c0_120 = arith.constant 0 : index
    %c0_121 = arith.constant 0 : index
    %281 = vector.load %arg3[%c7, %c0_120, %c0_121] : memref<12x32x16xbf16, #tpu.memory_space<vmem>>, vector<1x32x16xbf16>
    %282 = vector.shape_cast %281 : vector<1x32x16xbf16> to vector<32x16xbf16>
    %cst_122 = arith.constant dense<0.000000e+00> : vector<16x16xf32>
    %283 = tpu.matmul %272, %282, %cst_122 {dimension_numbers = #tpu.dot_dimension_numbers<[1], [0], [0], [1], [0, 0, 1, 1], [], []>} : vector<16x32xbf16>, vector<32x16xbf16>, vector<16x16xf32> -> vector<16x16xf32>
    %c7_123 = arith.constant 7 : index
    %c0_124 = arith.constant 0 : index
    %284 = vector.load %arg4[%c7_123, %c0_124] : memref<12x16xf32, #tpu.memory_space<vmem>>, vector<1x16xf32>
    %285 = vector.shape_cast %284 : vector<1x16xf32> to vector<16xf32>
    %286 = vector.shape_cast %285 : vector<16xf32> to vector<1x16xf32>
    %287 = vector.broadcast %286 : vector<1x16xf32> to vector<16x16xf32>
    %288 = arith.addf %283, %287 : vector<16x16xf32>
    %c8 = arith.constant 8 : index
    %c0_125 = arith.constant 0 : index
    %c0_126 = arith.constant 0 : index
    %289 = vector.load %arg3[%c8, %c0_125, %c0_126] : memref<12x32x16xbf16, #tpu.memory_space<vmem>>, vector<1x32x16xbf16>
    %290 = vector.shape_cast %289 : vector<1x32x16xbf16> to vector<32x16xbf16>
    %cst_127 = arith.constant dense<0.000000e+00> : vector<16x16xf32>
    %291 = tpu.matmul %272, %290, %cst_127 {dimension_numbers = #tpu.dot_dimension_numbers<[1], [0], [0], [1], [0, 0, 1, 1], [], []>} : vector<16x32xbf16>, vector<32x16xbf16>, vector<16x16xf32> -> vector<16x16xf32>
    %c8_128 = arith.constant 8 : index
    %c0_129 = arith.constant 0 : index
    %292 = vector.load %arg4[%c8_128, %c0_129] : memref<12x16xf32, #tpu.memory_space<vmem>>, vector<1x16xf32>
    %293 = vector.shape_cast %292 : vector<1x16xf32> to vector<16xf32>
    %294 = vector.shape_cast %293 : vector<16xf32> to vector<1x16xf32>
    %295 = vector.broadcast %294 : vector<1x16xf32> to vector<16x16xf32>
    %296 = arith.addf %291, %295 : vector<16x16xf32>
    %297 = arith.truncf %280 : vector<16x16xf32> to vector<16x16xbf16>
    %298 = arith.truncf %288 : vector<16x16xf32> to vector<16x16xbf16>
    %cst_130 = arith.constant dense<0.000000e+00> : vector<16x16xf32>
    %299 = tpu.matmul %297, %298, %cst_130 {dimension_numbers = #tpu.dot_dimension_numbers<[1], [1], [0], [0], [0, 0, 1, 0], [], []>} : vector<16x16xbf16>, vector<16x16xbf16>, vector<16x16xf32> -> vector<16x16xf32>
    %cst_131 = arith.constant 2.500000e-01 : f32
    %300 = vector.broadcast %cst_131 : f32 to vector<16x16xf32>
    %301 = arith.mulf %299, %300 : vector<16x16xf32>
    %302 = arith.addf %301, %27 : vector<16x16xf32>
    %cst_132 = arith.constant dense<0xFF800000> : vector<16xf32>
    %303 = vector.multi_reduction <maximumf>, %302, %cst_132 [1] : vector<16x16xf32> to vector<16xf32>
    %304 = vector.shape_cast %303 : vector<16xf32> to vector<16x1xf32>
    %305 = vector.broadcast %304 : vector<16x1xf32> to vector<16x16xf32>
    %306 = arith.subf %302, %305 : vector<16x16xf32>
    %307 = math.exp %306 : vector<16x16xf32>
    %cst_133 = arith.constant dense<0.000000e+00> : vector<16xf32>
    %308 = vector.multi_reduction <add>, %307, %cst_133 [1] : vector<16x16xf32> to vector<16xf32>
    %309 = vector.shape_cast %308 : vector<16xf32> to vector<16x1xf32>
    %310 = tpu.reciprocal %309 {approx = true} : vector<16x1xf32> -> vector<16x1xf32>
    %311 = vector.broadcast %310 : vector<16x1xf32> to vector<16x16xf32>
    %312 = arith.mulf %307, %311 : vector<16x16xf32>
    %313 = arith.truncf %312 : vector<16x16xf32> to vector<16x16xbf16>
    %314 = arith.truncf %296 : vector<16x16xf32> to vector<16x16xbf16>
    %cst_134 = arith.constant dense<0.000000e+00> : vector<16x16xf32>
    %315 = tpu.matmul %313, %314, %cst_134 {dimension_numbers = #tpu.dot_dimension_numbers<[1], [0], [0], [1], [0, 0, 1, 1], [], []>} : vector<16x16xbf16>, vector<16x16xbf16>, vector<16x16xf32> -> vector<16x16xf32>
    %316 = arith.truncf %315 : vector<16x16xf32> to vector<16x16xbf16>
    %c2_135 = arith.constant 2 : index
    %c0_136 = arith.constant 0 : index
    %c0_137 = arith.constant 0 : index
    %317 = vector.load %arg5[%c2_135, %c0_136, %c0_137] : memref<4x16x32xbf16, #tpu.memory_space<vmem>>, vector<1x16x32xbf16>
    %318 = vector.shape_cast %317 : vector<1x16x32xbf16> to vector<16x32xbf16>
    %cst_138 = arith.constant dense<0.000000e+00> : vector<16x32xf32>
    %319 = tpu.matmul %316, %318, %cst_138 {dimension_numbers = #tpu.dot_dimension_numbers<[1], [0], [0], [1], [0, 0, 1, 1], [], []>} : vector<16x16xbf16>, vector<16x32xbf16>, vector<16x32xf32> -> vector<16x32xf32>
    %c9 = arith.constant 9 : index
    %c0_139 = arith.constant 0 : index
    %c0_140 = arith.constant 0 : index
    %320 = vector.load %arg3[%c9, %c0_139, %c0_140] : memref<12x32x16xbf16, #tpu.memory_space<vmem>>, vector<1x32x16xbf16>
    %321 = vector.shape_cast %320 : vector<1x32x16xbf16> to vector<32x16xbf16>
    %cst_141 = arith.constant dense<0.000000e+00> : vector<16x16xf32>
    %322 = tpu.matmul %272, %321, %cst_141 {dimension_numbers = #tpu.dot_dimension_numbers<[1], [0], [0], [1], [0, 0, 1, 1], [], []>} : vector<16x32xbf16>, vector<32x16xbf16>, vector<16x16xf32> -> vector<16x16xf32>
    %c9_142 = arith.constant 9 : index
    %c0_143 = arith.constant 0 : index
    %323 = vector.load %arg4[%c9_142, %c0_143] : memref<12x16xf32, #tpu.memory_space<vmem>>, vector<1x16xf32>
    %324 = vector.shape_cast %323 : vector<1x16xf32> to vector<16xf32>
    %325 = vector.shape_cast %324 : vector<16xf32> to vector<1x16xf32>
    %326 = vector.broadcast %325 : vector<1x16xf32> to vector<16x16xf32>
    %327 = arith.addf %322, %326 : vector<16x16xf32>
    %c10 = arith.constant 10 : index
    %c0_144 = arith.constant 0 : index
    %c0_145 = arith.constant 0 : index
    %328 = vector.load %arg3[%c10, %c0_144, %c0_145] : memref<12x32x16xbf16, #tpu.memory_space<vmem>>, vector<1x32x16xbf16>
    %329 = vector.shape_cast %328 : vector<1x32x16xbf16> to vector<32x16xbf16>
    %cst_146 = arith.constant dense<0.000000e+00> : vector<16x16xf32>
    %330 = tpu.matmul %272, %329, %cst_146 {dimension_numbers = #tpu.dot_dimension_numbers<[1], [0], [0], [1], [0, 0, 1, 1], [], []>} : vector<16x32xbf16>, vector<32x16xbf16>, vector<16x16xf32> -> vector<16x16xf32>
    %c10_147 = arith.constant 10 : index
    %c0_148 = arith.constant 0 : index
    %331 = vector.load %arg4[%c10_147, %c0_148] : memref<12x16xf32, #tpu.memory_space<vmem>>, vector<1x16xf32>
    %332 = vector.shape_cast %331 : vector<1x16xf32> to vector<16xf32>
    %333 = vector.shape_cast %332 : vector<16xf32> to vector<1x16xf32>
    %334 = vector.broadcast %333 : vector<1x16xf32> to vector<16x16xf32>
    %335 = arith.addf %330, %334 : vector<16x16xf32>
    %c11 = arith.constant 11 : index
    %c0_149 = arith.constant 0 : index
    %c0_150 = arith.constant 0 : index
    %336 = vector.load %arg3[%c11, %c0_149, %c0_150] : memref<12x32x16xbf16, #tpu.memory_space<vmem>>, vector<1x32x16xbf16>
    %337 = vector.shape_cast %336 : vector<1x32x16xbf16> to vector<32x16xbf16>
    %cst_151 = arith.constant dense<0.000000e+00> : vector<16x16xf32>
    %338 = tpu.matmul %272, %337, %cst_151 {dimension_numbers = #tpu.dot_dimension_numbers<[1], [0], [0], [1], [0, 0, 1, 1], [], []>} : vector<16x32xbf16>, vector<32x16xbf16>, vector<16x16xf32> -> vector<16x16xf32>
    %c11_152 = arith.constant 11 : index
    %c0_153 = arith.constant 0 : index
    %339 = vector.load %arg4[%c11_152, %c0_153] : memref<12x16xf32, #tpu.memory_space<vmem>>, vector<1x16xf32>
    %340 = vector.shape_cast %339 : vector<1x16xf32> to vector<16xf32>
    %341 = vector.shape_cast %340 : vector<16xf32> to vector<1x16xf32>
    %342 = vector.broadcast %341 : vector<1x16xf32> to vector<16x16xf32>
    %343 = arith.addf %338, %342 : vector<16x16xf32>
    %344 = arith.truncf %327 : vector<16x16xf32> to vector<16x16xbf16>
    %345 = arith.truncf %335 : vector<16x16xf32> to vector<16x16xbf16>
    %cst_154 = arith.constant dense<0.000000e+00> : vector<16x16xf32>
    %346 = tpu.matmul %344, %345, %cst_154 {dimension_numbers = #tpu.dot_dimension_numbers<[1], [1], [0], [0], [0, 0, 1, 0], [], []>} : vector<16x16xbf16>, vector<16x16xbf16>, vector<16x16xf32> -> vector<16x16xf32>
    %cst_155 = arith.constant 2.500000e-01 : f32
    %347 = vector.broadcast %cst_155 : f32 to vector<16x16xf32>
    %348 = arith.mulf %346, %347 : vector<16x16xf32>
    %349 = arith.addf %348, %27 : vector<16x16xf32>
    %cst_156 = arith.constant dense<0xFF800000> : vector<16xf32>
    %350 = vector.multi_reduction <maximumf>, %349, %cst_156 [1] : vector<16x16xf32> to vector<16xf32>
    %351 = vector.shape_cast %350 : vector<16xf32> to vector<16x1xf32>
    %352 = vector.broadcast %351 : vector<16x1xf32> to vector<16x16xf32>
    %353 = arith.subf %349, %352 : vector<16x16xf32>
    %354 = math.exp %353 : vector<16x16xf32>
    %cst_157 = arith.constant dense<0.000000e+00> : vector<16xf32>
    %355 = vector.multi_reduction <add>, %354, %cst_157 [1] : vector<16x16xf32> to vector<16xf32>
    %356 = vector.shape_cast %355 : vector<16xf32> to vector<16x1xf32>
    %357 = tpu.reciprocal %356 {approx = true} : vector<16x1xf32> -> vector<16x1xf32>
    %358 = vector.broadcast %357 : vector<16x1xf32> to vector<16x16xf32>
    %359 = arith.mulf %354, %358 : vector<16x16xf32>
    %360 = arith.truncf %359 : vector<16x16xf32> to vector<16x16xbf16>
    %361 = arith.truncf %343 : vector<16x16xf32> to vector<16x16xbf16>
    %cst_158 = arith.constant dense<0.000000e+00> : vector<16x16xf32>
    %362 = tpu.matmul %360, %361, %cst_158 {dimension_numbers = #tpu.dot_dimension_numbers<[1], [0], [0], [1], [0, 0, 1, 1], [], []>} : vector<16x16xbf16>, vector<16x16xbf16>, vector<16x16xf32> -> vector<16x16xf32>
    %363 = arith.truncf %362 : vector<16x16xf32> to vector<16x16xbf16>
    %c3_159 = arith.constant 3 : index
    %c0_160 = arith.constant 0 : index
    %c0_161 = arith.constant 0 : index
    %364 = vector.load %arg5[%c3_159, %c0_160, %c0_161] : memref<4x16x32xbf16, #tpu.memory_space<vmem>>, vector<1x16x32xbf16>
    %365 = vector.shape_cast %364 : vector<1x16x32xbf16> to vector<16x32xbf16>
    %cst_162 = arith.constant dense<0.000000e+00> : vector<16x32xf32>
    %366 = tpu.matmul %363, %365, %cst_162 {dimension_numbers = #tpu.dot_dimension_numbers<[1], [0], [0], [1], [0, 0, 1, 1], [], []>} : vector<16x16xbf16>, vector<16x32xbf16>, vector<16x32xf32> -> vector<16x32xf32>
    %367 = arith.addf %319, %366 : vector<16x32xf32>
    %368 = arith.addf %245, %367 : vector<16x32xf32>
    %c2_163 = arith.constant 2 : index
    %c0_164 = arith.constant 0 : index
    %369 = vector.load %arg10[%c2_163, %c0_164] : memref<4x32xf32, #tpu.memory_space<vmem>>, vector<1x32xf32>
    %370 = vector.shape_cast %369 : vector<1x32xf32> to vector<32xf32>
    %371 = vector.shape_cast %370 : vector<32xf32> to vector<1x32xf32>
    %372 = vector.broadcast %371 : vector<1x32xf32> to vector<16x32xf32>
    %373 = arith.addf %368, %372 : vector<16x32xf32>
    %c6_165 = arith.constant 6 : index
    %c0_166 = arith.constant 0 : index
    %374 = vector.load %arg9[%c6_165, %c0_166] : memref<8x32xf32, #tpu.memory_space<vmem>>, vector<1x32xf32>
    %375 = vector.shape_cast %374 : vector<1x32xf32> to vector<32xf32>
    %c7_167 = arith.constant 7 : index
    %c0_168 = arith.constant 0 : index
    %376 = vector.load %arg9[%c7_167, %c0_168] : memref<8x32xf32, #tpu.memory_space<vmem>>, vector<1x32xf32>
    %377 = vector.shape_cast %376 : vector<1x32xf32> to vector<32xf32>
    %cst_169 = arith.constant dense<0.000000e+00> : vector<16xf32>
    %378 = vector.multi_reduction <add>, %373, %cst_169 [1] : vector<16x32xf32> to vector<16xf32>
    %379 = vector.shape_cast %378 : vector<16xf32> to vector<16x1xf32>
    %cst_170 = arith.constant 3.200000e+01 : f32
    %380 = vector.broadcast %cst_170 : f32 to vector<16x1xf32>
    %381 = arith.divf %379, %380 : vector<16x1xf32>
    %382 = vector.broadcast %381 : vector<16x1xf32> to vector<16x32xf32>
    %383 = arith.subf %373, %382 : vector<16x32xf32>
    %384 = arith.mulf %383, %383 : vector<16x32xf32>
    %cst_171 = arith.constant dense<0.000000e+00> : vector<16xf32>
    %385 = vector.multi_reduction <add>, %384, %cst_171 [1] : vector<16x32xf32> to vector<16xf32>
    %386 = vector.shape_cast %385 : vector<16xf32> to vector<16x1xf32>
    %cst_172 = arith.constant 3.200000e+01 : f32
    %387 = vector.broadcast %cst_172 : f32 to vector<16x1xf32>
    %388 = arith.divf %386, %387 : vector<16x1xf32>
    %cst_173 = arith.constant 9.99999996E-13 : f32
    %389 = vector.broadcast %cst_173 : f32 to vector<16x1xf32>
    %390 = arith.addf %388, %389 : vector<16x1xf32>
    %391 = math.rsqrt %390 : vector<16x1xf32>
    %392 = vector.broadcast %391 : vector<16x1xf32> to vector<16x32xf32>
    %393 = arith.mulf %383, %392 : vector<16x32xf32>
    %394 = vector.shape_cast %375 : vector<32xf32> to vector<1x32xf32>
    %395 = vector.broadcast %394 : vector<1x32xf32> to vector<16x32xf32>
    %396 = arith.mulf %393, %395 : vector<16x32xf32>
    %397 = vector.shape_cast %377 : vector<32xf32> to vector<1x32xf32>
    %398 = vector.broadcast %397 : vector<1x32xf32> to vector<16x32xf32>
    %399 = arith.addf %396, %398 : vector<16x32xf32>
    %400 = arith.truncf %399 : vector<16x32xf32> to vector<16x32xbf16>
    %c1_174 = arith.constant 1 : index
    %c0_175 = arith.constant 0 : index
    %c0_176 = arith.constant 0 : index
    %401 = vector.load %arg6[%c1_174, %c0_175, %c0_176] : memref<2x32x128xbf16, #tpu.memory_space<vmem>>, vector<1x32x128xbf16>
    %402 = vector.shape_cast %401 : vector<1x32x128xbf16> to vector<32x128xbf16>
    %cst_177 = arith.constant dense<0.000000e+00> : vector<16x128xf32>
    %403 = tpu.matmul %400, %402, %cst_177 {dimension_numbers = #tpu.dot_dimension_numbers<[1], [0], [0], [1], [0, 0, 1, 1], [], []>} : vector<16x32xbf16>, vector<32x128xbf16>, vector<16x128xf32> -> vector<16x128xf32>
    %c1_178 = arith.constant 1 : index
    %c0_179 = arith.constant 0 : index
    %404 = vector.load %arg7[%c1_178, %c0_179] : memref<2x128xf32, #tpu.memory_space<vmem>>, vector<1x128xf32>
    %405 = vector.shape_cast %404 : vector<1x128xf32> to vector<128xf32>
    %406 = vector.shape_cast %405 : vector<128xf32> to vector<1x128xf32>
    %407 = vector.broadcast %406 : vector<1x128xf32> to vector<16x128xf32>
    %408 = arith.addf %403, %407 : vector<16x128xf32>
    %cst_180 = arith.constant 5.000000e-01 : f32
    %409 = vector.broadcast %cst_180 : f32 to vector<16x128xf32>
    %410 = arith.mulf %409, %408 : vector<16x128xf32>
    %cst_181 = arith.constant 0.707106769 : f32
    %411 = vector.broadcast %cst_181 : f32 to vector<16x128xf32>
    %412 = arith.mulf %408, %411 : vector<16x128xf32>
    %413 = math.absf %412 : vector<16x128xf32>
    %cst_182 = arith.constant 0.327591091 : f32
    %414 = vector.broadcast %cst_182 : f32 to vector<16x128xf32>
    %415 = arith.mulf %414, %413 : vector<16x128xf32>
    %cst_183 = arith.constant 1.000000e+00 : f32
    %416 = vector.broadcast %cst_183 : f32 to vector<16x128xf32>
    %417 = arith.addf %416, %415 : vector<16x128xf32>
    %cst_184 = arith.constant 1.000000e+00 : f32
    %418 = vector.broadcast %cst_184 : f32 to vector<16x128xf32>
    %419 = arith.divf %418, %417 : vector<16x128xf32>
    %cst_185 = arith.constant 1.06140542 : f32
    %420 = vector.broadcast %cst_185 : f32 to vector<16x128xf32>
    %421 = arith.mulf %420, %419 : vector<16x128xf32>
    %cst_186 = arith.constant -1.45315206 : f32
    %422 = vector.broadcast %cst_186 : f32 to vector<16x128xf32>
    %423 = arith.addf %421, %422 : vector<16x128xf32>
    %424 = arith.mulf %423, %419 : vector<16x128xf32>
    %cst_187 = arith.constant 1.42141378 : f32
    %425 = vector.broadcast %cst_187 : f32 to vector<16x128xf32>
    %426 = arith.addf %424, %425 : vector<16x128xf32>
    %427 = arith.mulf %426, %419 : vector<16x128xf32>
    %cst_188 = arith.constant -0.284496725 : f32
    %428 = vector.broadcast %cst_188 : f32 to vector<16x128xf32>
    %429 = arith.addf %427, %428 : vector<16x128xf32>
    %430 = arith.mulf %429, %419 : vector<16x128xf32>
    %cst_189 = arith.constant 0.254829586 : f32
    %431 = vector.broadcast %cst_189 : f32 to vector<16x128xf32>
    %432 = arith.addf %430, %431 : vector<16x128xf32>
    %433 = arith.mulf %432, %419 : vector<16x128xf32>
    %434 = arith.mulf %413, %413 : vector<16x128xf32>
    %cst_190 = arith.constant 0.000000e+00 : f32
    %435 = vector.broadcast %cst_190 : f32 to vector<16x128xf32>
    %436 = arith.subf %435, %434 : vector<16x128xf32>
    %437 = math.exp %436 : vector<16x128xf32>
    %438 = arith.mulf %433, %437 : vector<16x128xf32>
    %cst_191 = arith.constant 1.000000e+00 : f32
    %439 = vector.broadcast %cst_191 : f32 to vector<16x128xf32>
    %440 = arith.subf %439, %438 : vector<16x128xf32>
    %cst_192 = arith.constant 0.000000e+00 : f32
    %441 = vector.broadcast %cst_192 : f32 to vector<16x128xf32>
    %442 = arith.cmpf oge, %412, %441 : vector<16x128xf32>
    %cst_193 = arith.constant 0.000000e+00 : f32
    %443 = vector.broadcast %cst_193 : f32 to vector<16x128xf32>
    %444 = arith.subf %443, %440 : vector<16x128xf32>
    %445 = arith.select %442, %440, %444 : vector<16x128xi1>, vector<16x128xf32>
    %cst_194 = arith.constant 1.000000e+00 : f32
    %446 = vector.broadcast %cst_194 : f32 to vector<16x128xf32>
    %447 = arith.addf %446, %445 : vector<16x128xf32>
    %448 = arith.mulf %410, %447 : vector<16x128xf32>
    %449 = arith.truncf %448 : vector<16x128xf32> to vector<16x128xbf16>
    %c1_195 = arith.constant 1 : index
    %c0_196 = arith.constant 0 : index
    %c0_197 = arith.constant 0 : index
    %450 = vector.load %arg8[%c1_195, %c0_196, %c0_197] : memref<2x128x32xbf16, #tpu.memory_space<vmem>>, vector<1x128x32xbf16>
    %451 = vector.shape_cast %450 : vector<1x128x32xbf16> to vector<128x32xbf16>
    %cst_198 = arith.constant dense<0.000000e+00> : vector<16x32xf32>
    %452 = tpu.matmul %449, %451, %cst_198 {dimension_numbers = #tpu.dot_dimension_numbers<[1], [0], [0], [1], [0, 0, 1, 1], [], []>} : vector<16x128xbf16>, vector<128x32xbf16>, vector<16x32xf32> -> vector<16x32xf32>
    %453 = arith.addf %373, %452 : vector<16x32xf32>
    %c3_199 = arith.constant 3 : index
    %c0_200 = arith.constant 0 : index
    %454 = vector.load %arg10[%c3_199, %c0_200] : memref<4x32xf32, #tpu.memory_space<vmem>>, vector<1x32xf32>
    %455 = vector.shape_cast %454 : vector<1x32xf32> to vector<32xf32>
    %456 = vector.shape_cast %455 : vector<32xf32> to vector<1x32xf32>
    %457 = vector.broadcast %456 : vector<1x32xf32> to vector<16x32xf32>
    %458 = arith.addf %453, %457 : vector<16x32xf32>
    %c0_201 = arith.constant 0 : index
    %c0_202 = arith.constant 0 : index
    %459 = vector.load %arg11[%c0_201, %c0_202] : memref<3x32xf32, #tpu.memory_space<vmem>>, vector<1x32xf32>
    %460 = vector.shape_cast %459 : vector<1x32xf32> to vector<32xf32>
    %c1_203 = arith.constant 1 : index
    %c0_204 = arith.constant 0 : index
    %461 = vector.load %arg11[%c1_203, %c0_204] : memref<3x32xf32, #tpu.memory_space<vmem>>, vector<1x32xf32>
    %462 = vector.shape_cast %461 : vector<1x32xf32> to vector<32xf32>
    %cst_205 = arith.constant dense<0.000000e+00> : vector<16xf32>
    %463 = vector.multi_reduction <add>, %458, %cst_205 [1] : vector<16x32xf32> to vector<16xf32>
    %464 = vector.shape_cast %463 : vector<16xf32> to vector<16x1xf32>
    %cst_206 = arith.constant 3.200000e+01 : f32
    %465 = vector.broadcast %cst_206 : f32 to vector<16x1xf32>
    %466 = arith.divf %464, %465 : vector<16x1xf32>
    %467 = vector.broadcast %466 : vector<16x1xf32> to vector<16x32xf32>
    %468 = arith.subf %458, %467 : vector<16x32xf32>
    %469 = arith.mulf %468, %468 : vector<16x32xf32>
    %cst_207 = arith.constant dense<0.000000e+00> : vector<16xf32>
    %470 = vector.multi_reduction <add>, %469, %cst_207 [1] : vector<16x32xf32> to vector<16xf32>
    %471 = vector.shape_cast %470 : vector<16xf32> to vector<16x1xf32>
    %cst_208 = arith.constant 3.200000e+01 : f32
    %472 = vector.broadcast %cst_208 : f32 to vector<16x1xf32>
    %473 = arith.divf %471, %472 : vector<16x1xf32>
    %cst_209 = arith.constant 9.99999996E-13 : f32
    %474 = vector.broadcast %cst_209 : f32 to vector<16x1xf32>
    %475 = arith.addf %473, %474 : vector<16x1xf32>
    %476 = math.rsqrt %475 : vector<16x1xf32>
    %477 = vector.broadcast %476 : vector<16x1xf32> to vector<16x32xf32>
    %478 = arith.mulf %468, %477 : vector<16x32xf32>
    %479 = vector.shape_cast %460 : vector<32xf32> to vector<1x32xf32>
    %480 = vector.broadcast %479 : vector<1x32xf32> to vector<16x32xf32>
    %481 = arith.mulf %478, %480 : vector<16x32xf32>
    %482 = vector.shape_cast %462 : vector<32xf32> to vector<1x32xf32>
    %483 = vector.broadcast %482 : vector<1x32xf32> to vector<16x32xf32>
    %484 = arith.addf %481, %483 : vector<16x32xf32>
    %cst_210 = arith.constant 5.000000e-01 : f32
    %485 = vector.broadcast %cst_210 : f32 to vector<16x32xf32>
    %486 = arith.mulf %485, %484 : vector<16x32xf32>
    %cst_211 = arith.constant 0.707106769 : f32
    %487 = vector.broadcast %cst_211 : f32 to vector<16x32xf32>
    %488 = arith.mulf %484, %487 : vector<16x32xf32>
    %489 = math.absf %488 : vector<16x32xf32>
    %cst_212 = arith.constant 0.327591091 : f32
    %490 = vector.broadcast %cst_212 : f32 to vector<16x32xf32>
    %491 = arith.mulf %490, %489 : vector<16x32xf32>
    %cst_213 = arith.constant 1.000000e+00 : f32
    %492 = vector.broadcast %cst_213 : f32 to vector<16x32xf32>
    %493 = arith.addf %492, %491 : vector<16x32xf32>
    %cst_214 = arith.constant 1.000000e+00 : f32
    %494 = vector.broadcast %cst_214 : f32 to vector<16x32xf32>
    %495 = arith.divf %494, %493 : vector<16x32xf32>
    %cst_215 = arith.constant 1.06140542 : f32
    %496 = vector.broadcast %cst_215 : f32 to vector<16x32xf32>
    %497 = arith.mulf %496, %495 : vector<16x32xf32>
    %cst_216 = arith.constant -1.45315206 : f32
    %498 = vector.broadcast %cst_216 : f32 to vector<16x32xf32>
    %499 = arith.addf %497, %498 : vector<16x32xf32>
    %500 = arith.mulf %499, %495 : vector<16x32xf32>
    %cst_217 = arith.constant 1.42141378 : f32
    %501 = vector.broadcast %cst_217 : f32 to vector<16x32xf32>
    %502 = arith.addf %500, %501 : vector<16x32xf32>
    %503 = arith.mulf %502, %495 : vector<16x32xf32>
    %cst_218 = arith.constant -0.284496725 : f32
    %504 = vector.broadcast %cst_218 : f32 to vector<16x32xf32>
    %505 = arith.addf %503, %504 : vector<16x32xf32>
    %506 = arith.mulf %505, %495 : vector<16x32xf32>
    %cst_219 = arith.constant 0.254829586 : f32
    %507 = vector.broadcast %cst_219 : f32 to vector<16x32xf32>
    %508 = arith.addf %506, %507 : vector<16x32xf32>
    %509 = arith.mulf %508, %495 : vector<16x32xf32>
    %510 = arith.mulf %489, %489 : vector<16x32xf32>
    %cst_220 = arith.constant 0.000000e+00 : f32
    %511 = vector.broadcast %cst_220 : f32 to vector<16x32xf32>
    %512 = arith.subf %511, %510 : vector<16x32xf32>
    %513 = math.exp %512 : vector<16x32xf32>
    %514 = arith.mulf %509, %513 : vector<16x32xf32>
    %cst_221 = arith.constant 1.000000e+00 : f32
    %515 = vector.broadcast %cst_221 : f32 to vector<16x32xf32>
    %516 = arith.subf %515, %514 : vector<16x32xf32>
    %cst_222 = arith.constant 0.000000e+00 : f32
    %517 = vector.broadcast %cst_222 : f32 to vector<16x32xf32>
    %518 = arith.cmpf oge, %488, %517 : vector<16x32xf32>
    %cst_223 = arith.constant 0.000000e+00 : f32
    %519 = vector.broadcast %cst_223 : f32 to vector<16x32xf32>
    %520 = arith.subf %519, %516 : vector<16x32xf32>
    %521 = arith.select %518, %516, %520 : vector<16x32xi1>, vector<16x32xf32>
    %cst_224 = arith.constant 1.000000e+00 : f32
    %522 = vector.broadcast %cst_224 : f32 to vector<16x32xf32>
    %523 = arith.addf %522, %521 : vector<16x32xf32>
    %524 = arith.mulf %486, %523 : vector<16x32xf32>
    %c0_225 = arith.constant 0 : index
    %c0_226 = arith.constant 0 : index
    %525 = vector.load %arg13[%c0_225, %c0_226] : memref<16x32xf32, #tpu.memory_space<vmem>>, vector<16x32xf32>
    tpu.vector_store %arg13[%c0_225, %c0_226], %524 {strides = array<i32>} : memref<16x32xf32, #tpu.memory_space<vmem>>, vector<16x32xf32>,
    %526 = arith.truncf %484 : vector<16x32xf32> to vector<16x32xbf16>
    %c0_227 = arith.constant 0 : index
    %c0_228 = arith.constant 0 : index
    %527 = vector.load %arg12[%c0_227, %c0_228] : memref<32x32xbf16, #tpu.memory_space<vmem>>, vector<32x32xbf16>
    %cst_229 = arith.constant dense<0.000000e+00> : vector<16x32xf32>
    %528 = tpu.matmul %526, %527, %cst_229 {dimension_numbers = #tpu.dot_dimension_numbers<[1], [0], [0], [1], [0, 0, 1, 1], [], []>} : vector<16x32xbf16>, vector<32x32xbf16>, vector<16x32xf32> -> vector<16x32xf32>
    %c2_230 = arith.constant 2 : index
    %c0_231 = arith.constant 0 : index
    %529 = vector.load %arg11[%c2_230, %c0_231] : memref<3x32xf32, #tpu.memory_space<vmem>>, vector<1x32xf32>
    %530 = vector.shape_cast %529 : vector<1x32xf32> to vector<32xf32>
    %531 = vector.shape_cast %530 : vector<32xf32> to vector<1x32xf32>
    %532 = vector.broadcast %531 : vector<1x32xf32> to vector<16x32xf32>
    %533 = arith.addf %528, %532 : vector<16x32xf32>
    %534 = math.tanh %533 : vector<16x32xf32>
    %c0_232 = arith.constant 0 : index
    %c0_233 = arith.constant 0 : index
    %535 = vector.load %arg14[%c0_232, %c0_233] : memref<16x32xf32, #tpu.memory_space<vmem>>, vector<16x32xf32>
    tpu.vector_store %arg14[%c0_232, %c0_233], %534 {strides = array<i32>} : memref<16x32xf32, #tpu.memory_space<vmem>>, vector<16x32xf32>,
    return
  }
}

</mosaic_0001>

<llo_original>
// kernel: vit_encoder_forward.1
$region0: #{vit_encoder_forward.1}
  #allocation0 [shape = 'u32[]', space=smem, size = 0x4, offset = 0x4, fixed_abs, tag = 'smem constant byte address 0x4 - core index']
  #allocation1 [shape = 'u32[144,128]{1,0:T(1,128)}', space=vmem, size = 0x12000, scoped, tag = 'internal scratch']
  %s0 = inlined_call_operand.vmem [shape: bf16[16,192], index: 0, kind: input, shape index: {}]
  %s1 = inlined_call_operand.vmem [shape: f32[16,32], index: 1, kind: input, shape index: {}]
  %s2 = inlined_call_operand.vmem [shape: bf16[192,32], index: 2, kind: input, shape index: {}]
  %s3 = inlined_call_operand.vmem [shape: bf16[12,32,16], index: 3, kind: input, shape index: {}]
  %s4 = inlined_call_operand.vmem [shape: f32[12,16], index: 4, kind: input, shape index: {}]
  %s5 = inlined_call_operand.vmem [shape: bf16[4,16,32], index: 5, kind: input, shape index: {}]
  %s6 = inlined_call_operand.vmem [shape: bf16[2,32,128], index: 6, kind: input, shape index: {}]
  %s7 = inlined_call_operand.vmem [shape: f32[2,128], index: 7, kind: input, shape index: {}]
  %s8 = inlined_call_operand.vmem [shape: bf16[2,128,32], index: 8, kind: input, shape index: {}]
  %s9 = inlined_call_operand.vmem [shape: f32[8,32], index: 9, kind: input, shape index: {}]
  %s10 = inlined_call_operand.vmem [shape: f32[4,32], index: 10, kind: input, shape index: {}]
  %s11 = inlined_call_operand.vmem [shape: f32[3,32], index: 11, kind: input, shape index: {}]
  %s12 = inlined_call_operand.vmem [shape: bf16[32,32], index: 12, kind: input, shape index: {}]
  %s13 = inlined_call_operand.vmem [shape: f32[16,32], index: 13, kind: output, shape index: {0}]
  %s14 = inlined_call_operand.vmem [shape: f32[16,32], index: 14, kind: output, shape index: {1}]
  %15 = xla_tuple %s13, %s14
  %s16 = sld [smem:[#allocation0]]
  $region70: #{vit_encoder_forward.1} parent=0
    _
  %s18 = ssub.s32 1, %s16
  %s19 = scalar_select 0, %s18, %s16
  // Predicated region
  $region2: #{vit_encoder_forward.1} parent=0 // pred_check
    _
  $region3: #{vit_encoder_forward.1} parent=0 // pred_check_branch
    %21 = sbr.rel (0) target = $region5
  $region4: #{vit_encoder_forward.1} parent=0 // pred_region
    _
  $region5: #{vit_encoder_forward.1} parent=0 // pred_fallthru
    _
  // Predicated region
  $region6: #{vit_encoder_forward.1} parent=0 // pred_check
    _
  $region7: #{vit_encoder_forward.1} parent=0 // pred_check_branch
    %23 = sbr.rel (0) target = $region9
  $region8: #{vit_encoder_forward.1} parent=0 // pred_region
    _
  $region9: #{vit_encoder_forward.1} parent=0 // pred_fallthru
    _
  // Predicated region
  $region10: #{vit_encoder_forward.1} parent=0 // pred_check
    _
  $region11: #{vit_encoder_forward.1} parent=0 // pred_check_branch
    %25 = sbr.rel (0) target = $region13
  $region12: #{vit_encoder_forward.1} parent=0 // pred_region
    _
  $region13: #{vit_encoder_forward.1} parent=0 // pred_fallthru
    _
  // Predicated region
  $region14: #{vit_encoder_forward.1} parent=0 // pred_check
    _
  $region15: #{vit_encoder_forward.1} parent=0 // pred_check_branch
    %27 = sbr.rel (0) target = $region17
  $region16: #{vit_encoder_forward.1} parent=0 // pred_region
    _
  $region17: #{vit_encoder_forward.1} parent=0 // pred_fallthru
    _
  // Predicated region
  $region18: #{vit_encoder_forward.1} parent=0 // pred_check
    _
  $region19: #{vit_encoder_forward.1} parent=0 // pred_check_branch
    %29 = sbr.rel (0) target = $region21
  $region20: #{vit_encoder_forward.1} parent=0 // pred_region
    _
  $region21: #{vit_encoder_forward.1} parent=0 // pred_fallthru
    _
  // Predicated region
  $region22: #{vit_encoder_forward.1} parent=0 // pred_check
    _
  $region23: #{vit_encoder_forward.1} parent=0 // pred_check_branch
    %31 = sbr.rel (0) target = $region25
  $region24: #{vit_encoder_forward.1} parent=0 // pred_region
    _
  $region25: #{vit_encoder_forward.1} parent=0 // pred_fallthru
    _
  // Predicated region
  $region26: #{vit_encoder_forward.1} parent=0 // pred_check
    _
  $region27: #{vit_encoder_forward.1} parent=0 // pred_check_branch
    %33 = sbr.rel (0) target = $region29
  $region28: #{vit_encoder_forward.1} parent=0 // pred_region
    _
  $region29: #{vit_encoder_forward.1} parent=0 // pred_fallthru
    _
  // Predicated region
  $region30: #{vit_encoder_forward.1} parent=0 // pred_check
    _
  $region31: #{vit_encoder_forward.1} parent=0 // pred_check_branch
    %35 = sbr.rel (0) target = $region33
  $region32: #{vit_encoder_forward.1} parent=0 // pred_region
    _
  $region33: #{vit_encoder_forward.1} parent=0 // pred_fallthru
    _
  // Predicated region
  $region34: #{vit_encoder_forward.1} parent=0 // pred_check
    _
  $region35: #{vit_encoder_forward.1} parent=0 // pred_check_branch
    %37 = sbr.rel (0) target = $region37
  $region36: #{vit_encoder_forward.1} parent=0 // pred_region
    _
  $region37: #{vit_encoder_forward.1} parent=0 // pred_fallthru
    _
  // Predicated region
  $region38: #{vit_encoder_forward.1} parent=0 // pred_check
    _
  $region39: #{vit_encoder_forward.1} parent=0 // pred_check_branch
    %39 = sbr.rel (0) target = $region41
  $region40: #{vit_encoder_forward.1} parent=0 // pred_region
    _
  $region41: #{vit_encoder_forward.1} parent=0 // pred_fallthru
    _
  // Predicated region
  $region42: #{vit_encoder_forward.1} parent=0 // pred_check
    _
  $region43: #{vit_encoder_forward.1} parent=0 // pred_check_branch
    %41 = sbr.rel (0) target = $region45
  $region44: #{vit_encoder_forward.1} parent=0 // pred_region
    _
  $region45: #{vit_encoder_forward.1} parent=0 // pred_fallthru
    _
  // Predicated region
  $region46: #{vit_encoder_forward.1} parent=0 // pred_check
    _
  $region47: #{vit_encoder_forward.1} parent=0 // pred_check_branch
    %43 = sbr.rel (0) target = $region49
  $region48: #{vit_encoder_forward.1} parent=0 // pred_region
    _
  $region49: #{vit_encoder_forward.1} parent=0 // pred_fallthru
    _
  // Predicated region
  $region50: #{vit_encoder_forward.1} parent=0 // pred_check
    _
  $region51: #{vit_encoder_forward.1} parent=0 // pred_check_branch
    %45 = sbr.rel (0) target = $region53
  $region52: #{vit_encoder_forward.1} parent=0 // pred_region
    _
  $region53: #{vit_encoder_forward.1} parent=0 // pred_fallthru
    _
  %v47 = vlaneseq
  %v48 = vshrl.u32 %v47, 7
  %v49 = vadd.s32 %v48, 8
  %v50 = vlaneseq
  %v51 = vand.u32 %v50, 127
  %vm52 = vcmp.ge.s32.totalorder %v48, 0
  %vm53 = vcmp.ge.s32.totalorder %v49, 0
  %vm54 = vcmp.lt.s32.totalorder %v48, 8
  %vm55 = vcmp.lt.s32.totalorder %v49, 8
  %vm56 = vmand %vm52, %vm54
  %vm57 = vmand %vm53, %vm55
  %vm58 = vcmp.ge.s32.totalorder %v51, 0
  %vm59 = vcmp.lt.s32.totalorder %v51, 5
  %vm60 = vmand %vm58, %vm59
  %vm61 = vmand %vm56, %vm60
  %vm62 = vmand %vm57, %vm60
  %vm63 = vcmp.ge.s32.totalorder %v48, 8
  %vm64 = vcmp.ge.s32.totalorder %v49, 8
  %vm65 = vcmp.lt.s32.totalorder %v48, 16
  %vm66 = vcmp.lt.s32.totalorder %v49, 16
  %vm67 = vmand %vm63, %vm65
  %vm68 = vmand %vm64, %vm66
  %vm69 = vcmp.ge.s32.totalorder %v51, 8
  %vm70 = vcmp.lt.s32.totalorder %v51, 13
  %vm71 = vmand %vm69, %vm70
  %vm72 = vmand %vm67, %vm71
  %vm73 = vmand %vm68, %vm71
  %vm74 = vmor %vm61, %vm72
  %vm75 = vmor %vm62, %vm73
  %v76 = vsel %vm74, 0.0, -1e+30
  %v77 = vsel %vm75, 0.0, -1e+30
  %v78 = vld [vmem:[%s0] sm:$0xff]
  %v79 = vld [vmem:[%s0 + $0x8] sm:$0xff]
  %v80 = vld [vmem:[%s2] sm:$0xf]
  %v81 = vld [vmem:[%s2 + $0x4] sm:$0xf]
  %v82 = vld [vmem:[%s2 + $0x8] sm:$0xf]
  %v83 = vld [vmem:[%s2 + $0xc] sm:$0xf]
  %v84 = vld [vmem:[%s2 + $0x10] sm:$0xf]
  %v85 = vld [vmem:[%s2 + $0x14] sm:$0xf]
  %v86 = vld [vmem:[%s2 + $0x18] sm:$0xf]
  %v87 = vld [vmem:[%s2 + $0x1c] sm:$0xf]
  %v88 = vld [vmem:[%s2 + $0x20] sm:$0xf]
  %v89 = vld [vmem:[%s2 + $0x24] sm:$0xf]
  %v90 = vld [vmem:[%s2 + $0x28] sm:$0xf]
  %v91 = vld [vmem:[%s2 + $0x2c] sm:$0xf]
  %v92 = vld [vmem:[%s2 + $0x30] sm:$0xf]
  %v93 = vld [vmem:[%s2 + $0x34] sm:$0xf]
  %v94 = vld [vmem:[%s2 + $0x38] sm:$0xf]
  %v95 = vld [vmem:[%s2 + $0x3c] sm:$0xf]
  %v96 = vld [vmem:[%s2 + $0x40] sm:$0xf]
  %v97 = vld [vmem:[%s2 + $0x44] sm:$0xf]
  %v98 = vld [vmem:[%s2 + $0x48] sm:$0xf]
  %v99 = vld [vmem:[%s2 + $0x4c] sm:$0xf]
  %v100 = vld [vmem:[%s2 + $0x50] sm:$0xf]
  %v101 = vld [vmem:[%s2 + $0x54] sm:$0xf]
  %v102 = vld [vmem:[%s2 + $0x58] sm:$0xf]
  %v103 = vld [vmem:[%s2 + $0x5c] sm:$0xf]
  %v104 = vld [vmem:[%s1] sm:$0xff]
  %v105 = vld [vmem:[%s1 + $0x8] sm:$0xff]
  %v108 = vunpack.c.l.b16 %v78
  %v109 = vunpack.c.h.b16 %v78
  %v110 = vunpack.c.l.b16 %v79
  %v111 = vunpack.c.h.b16 %v79
  %v112 = vpack.c.b16 %v110, %v108
  %v113 = vpack.c.b16 %v111, %v109
  %v139 = vunpack.c.l.b16 %v80
  %v140 = vunpack.c.l.b16 %v81
  %v141 = vunpack.c.l.b16 %v82
  %v142 = vunpack.c.l.b16 %v83
  %v143 = vunpack.c.l.b16 %v84
  %v144 = vunpack.c.l.b16 %v85
  %v145 = vunpack.c.l.b16 %v86
  %v146 = vunpack.c.l.b16 %v87
  %v147 = vunpack.c.l.b16 %v88
  %v148 = vunpack.c.l.b16 %v89
  %v149 = vunpack.c.l.b16 %v90
  %v150 = vunpack.c.l.b16 %v91
  %v151 = vunpack.c.l.b16 %v92
  %v152 = vunpack.c.l.b16 %v93
  %v153 = vunpack.c.l.b16 %v94
  %v154 = vunpack.c.l.b16 %v95
  %v155 = vunpack.c.l.b16 %v96
  %v156 = vunpack.c.l.b16 %v97
  %v157 = vunpack.c.l.b16 %v98
  %v158 = vunpack.c.l.b16 %v99
  %v159 = vunpack.c.l.b16 %v100
  %v160 = vunpack.c.l.b16 %v101
  %v161 = vunpack.c.l.b16 %v102
  %v162 = vunpack.c.l.b16 %v103
  %v163 = vpack.c.b16 %v140, %v139
  %v164 = vpack.c.b16 %v142, %v141
  %v165 = vpack.c.b16 %v144, %v143
  %v166 = vpack.c.b16 %v146, %v145
  %v167 = vpack.c.b16 %v148, %v147
  %v168 = vpack.c.b16 %v150, %v149
  %v169 = vpack.c.b16 %v152, %v151
  %v170 = vpack.c.b16 %v154, %v153
  %v171 = vpack.c.b16 %v156, %v155
  %v172 = vpack.c.b16 %v158, %v157
  %v173 = vpack.c.b16 %v160, %v159
  %v174 = vpack.c.b16 %v162, %v161
  %vm187 = vcmask 523264
  %v189 = vsel %vm187, %v113, 0
  %191 = vmatprep.subr.bf16.mxu0 0
  %192 = vmatpush1.bf16.msra.mxu0 %v163
  %193 = vmatprep.subr.bf16.mxu0 0
  %194 = vmatpush1.bf16.msra.mxu0 %v164
  %195 = vmatprep.subr.bf16.mxu0 0
  %196 = vmatpush1.bf16.msra.mxu0 %v165
  %197 = vmatprep.subr.bf16.mxu0 0
  %198 = vmatpush1.bf16.msra.mxu0 %v166
  %199 = vmatprep.subr.bf16.mxu0 0
  %200 = vmatpush1.bf16.msra.mxu0 %v167
  %201 = vmatprep.subr.bf16.mxu0 0
  %202 = vmatpush1.bf16.msra.mxu0 %v168
  %203 = vmatprep.subr.bf16.mxu0 0
  %204 = vmatpush1.bf16.msra.mxu0 %v169
  %205 = vmatprep.subr.bf16.mxu0 0
  %206 = vmatpush1.bf16.msra.mxu0 %v170
  %207 = vmatprep.subr.bf16.mxu0 0
  %208 = vmatpush1.bf16.msra.mxu0 %v171
  %209 = vmatprep.subr.bf16.mxu0 0
  %210 = vmatpush1.bf16.msra.mxu0 %v172
  %211 = vmatprep.subr.bf16.mxu0 0
  %212 = vmatpush1.bf16.msra.mxu0 %v173
  %213 = vmatprep.subr.bf16.mxu0 0
  %214 = vmatpush1.bf16.msra.mxu0 %v174
  %215 = vmatprep.subr.bf16.mxu0 0
  %216 = vmatpush1.bf16.msra.mxu0 0
  %217 = vmatprep.subr.bf16.mxu0 0
  %218 = vmatpush1.bf16.msra.mxu0 0
  %219 = vmatprep.subr.bf16.mxu0 0
  %220 = vmatpush1.bf16.msra.mxu0 0
  %221 = vmatprep.subr.bf16.mxu0 0
  %222 = vmatpush1.bf16.msra.mxu0 0
  %223 = vmatprep.mubr.bf16.mxu0 %v189
  %224 = vmatmul.mubr.bf16.gmra.mrb[0].mxu0 %v112
  %v225 = vpop.f32.mrb[0].mxu0
  %v226 = vadd.f32 %v104, %v225
  %v227 = vpop.f32.mrb[0].mxu0
  %v228 = vpop.f32.mrb[0].mxu0
  %v229 = vadd.f32 %v105, %v228
  %v230 = vpop.f32.mrb[0].mxu0
  %231 = vdwg.mxu0
  %v232 = vld [vmem:[%s9] sm:$0x1]
  %v233 = vld [vmem:[%s9 + $0x1] sm:$0x1]
  %vm234 = vcmask 261120
  %v235 = vsel %vm234, %v226, 0.0
  %236 = vadd.xlane.f32.xlu0 %v235
  %v237 = vpop.xlane.xlu0 %236
  %v238 = vsel %vm234, %v229, 0.0
  %239 = vadd.xlane.f32.xlu0 %v238
  %v240 = vpop.xlane.xlu0 %239
  %v241 = vrcp.pop 32.0
  %v242 = vmul.f32 %v237, %v241
  %v243 = vmul.f32 %v240, %v241
  %v244 = vsub.f32 %v226, %v242
  %v245 = vsub.f32 %v229, %v243
  %v246 = vmul.f32 %v244, %v244
  %v247 = vmul.f32 %v245, %v245
  %v248 = vsel %vm234, %v246, 0.0
  %249 = vadd.xlane.f32.xlu0 %v248
  %v250 = vpop.xlane.xlu0 %249
  %v251 = vsel %vm234, %v247, 0.0
  %252 = vadd.xlane.f32.xlu0 %v251
  %v253 = vpop.xlane.xlu0 %252
  %v254 = vmul.f32 %v250, %v241
  %v255 = vmul.f32 %v253, %v241
  %v256 = vadd.f32 %v254, 1e-12
  %v257 = vadd.f32 %v255, 1e-12
  %v258 = vrsqrt.pop %v256
  %v259 = vrsqrt.pop %v257
  %v260 = vmul.f32 %v244, %v258
  %v261 = vmul.f32 %v245, %v259
  %v262 = vlaneseq
  %v263 = vshrl.u32 %v262, 7
  %v264 = vsub.s32 0, %v263
  %v265 = vrot.slane %v232, %v264
  %v266 = vmul.f32 %v260, %v265
  %v267 = vmul.f32 %v261, %v265
  %v268 = vlaneseq
  %v269 = vshrl.u32 %v268, 7
  %v270 = vsub.s32 0, %v269
  %v271 = vrot.slane %v233, %v270
  %v272 = vadd.f32 %v266, %v271
  %v273 = vadd.f32 %v267, %v271
  %v274 = vpack.c.bf16 %v273, %v272
  %v275 = vld [vmem:[%s3] sm:$0xf]
  %v276 = vld [vmem:[%s3 + $0x4] sm:$0xf]
  %v277 = vld [vmem:[%s3 + $0x8] sm:$0xf]
  %v278 = vld [vmem:[%s3 + $0xc] sm:$0xf]
  %v279 = vld [vmem:[%s4] sm:$0x1]
  %v280 = vlaneseq
  %v281 = vshrl.u32 %v280, 7
  %v282 = vsub.s32 0, %v281
  %v283 = vrot.slane %v279, %v282
  %v288 = vunpack.c.l.b16 %v275
  %v289 = vunpack.c.l.b16 %v276
  %v290 = vunpack.c.l.b16 %v277
  %v291 = vunpack.c.l.b16 %v278
  %v292 = vpack.c.b16 %v289, %v288
  %v293 = vpack.c.b16 %v291, %v290
  %v297 = vsel %vm234, %v274, 0
  %299 = vmatprep.subr.bf16.mxu0 0
  %300 = vmatpush1.bf16.msra.mxu0 %v292
  %301 = vmatprep.subr.bf16.mxu0 0
  %302 = vmatpush1.bf16.msra.mxu0 %v293
  %303 = vmatprep.subr.bf16.mxu0 0
  %304 = vmatpush1.bf16.msra.mxu0 0
  %305 = vmatprep.subr.bf16.mxu0 0
  %306 = vmatpush1.bf16.msra.mxu0 0
  %307 = vmatprep.subr.bf16.mxu0 0
  %308 = vmatpush1.bf16.msra.mxu0 0
  %309 = vmatprep.subr.bf16.mxu0 0
  %310 = vmatpush1.bf16.msra.mxu0 0
  %311 = vmatprep.subr.bf16.mxu0 0
  %312 = vmatpush1.bf16.msra.mxu0 0
  %313 = vmatprep.subr.bf16.mxu0 0
  %314 = vmatpush1.bf16.msra.mxu0 0
  %315 = vmatprep.subr.bf16.mxu0 0
  %316 = vmatpush1.bf16.msra.mxu0 0
  %317 = vmatprep.subr.bf16.mxu0 0
  %318 = vmatpush1.bf16.msra.mxu0 0
  %319 = vmatprep.subr.bf16.mxu0 0
  %320 = vmatpush1.bf16.msra.mxu0 0
  %321 = vmatprep.subr.bf16.mxu0 0
  %322 = vmatpush1.bf16.msra.mxu0 0
  %323 = vmatprep.subr.bf16.mxu0 0
  %324 = vmatpush1.bf16.msra.mxu0 0
  %325 = vmatprep.subr.bf16.mxu0 0
  %326 = vmatpush1.bf16.msra.mxu0 0
  %327 = vmatprep.subr.bf16.mxu0 0
  %328 = vmatpush1.bf16.msra.mxu0 0
  %329 = vmatprep.subr.bf16.mxu0 0
  %330 = vmatpush1.bf16.msra.mxu0 0
  %331 = vmatprep.mubr.bf16.mxu0 0
  %332 = vmatmul.mubr.bf16.gmra.mrb[0].mxu0 %v297
  %v333 = vpop.f32.mrb[0].mxu0
  %v334 = vadd.f32 %v283, %v333
  %v335 = vpop.f32.mrb[0].mxu0
  %v336 = vpop.f32.mrb[0].mxu0
  %v337 = vadd.f32 %v283, %v336
  %v338 = vpop.f32.mrb[0].mxu0
  %339 = vdwg.mxu0
  %s340 = scalar_lea.vmem %s3, 16
  %v341 = vld [vmem:[%s340] sm:$0xf]
  %v342 = vld [vmem:[%s340 + $0x4] sm:$0xf]
  %v343 = vld [vmem:[%s340 + $0x8] sm:$0xf]
  %v344 = vld [vmem:[%s340 + $0xc] sm:$0xf]
  %v345 = vld [vmem:[%s4 + $0x1] sm:$0x1]
  %v346 = vlaneseq
  %v347 = vshrl.u32 %v346, 7
  %v348 = vsub.s32 0, %v347
  %v349 = vrot.slane %v345, %v348
  %v354 = vunpack.c.l.b16 %v341
  %v355 = vunpack.c.l.b16 %v342
  %v356 = vunpack.c.l.b16 %v343
  %v357 = vunpack.c.l.b16 %v344
  %v358 = vpack.c.b16 %v355, %v354
  %v359 = vpack.c.b16 %v357, %v356
  %362 = vmatprep.subr.bf16.mxu0 0
  %363 = vmatpush1.bf16.msra.mxu0 %v358
  %364 = vmatprep.subr.bf16.mxu0 0
  %365 = vmatpush1.bf16.msra.mxu0 %v359
  %366 = vmatprep.subr.bf16.mxu0 0
  %367 = vmatpush1.bf16.msra.mxu0 0
  %368 = vmatprep.subr.bf16.mxu0 0
  %369 = vmatpush1.bf16.msra.mxu0 0
  %370 = vmatprep.subr.bf16.mxu0 0
  %371 = vmatpush1.bf16.msra.mxu0 0
  %372 = vmatprep.subr.bf16.mxu0 0
  %373 = vmatpush1.bf16.msra.mxu0 0
  %374 = vmatprep.subr.bf16.mxu0 0
  %375 = vmatpush1.bf16.msra.mxu0 0
  %376 = vmatprep.subr.bf16.mxu0 0
  %377 = vmatpush1.bf16.msra.mxu0 0
  %378 = vmatprep.subr.bf16.mxu0 0
  %379 = vmatpush1.bf16.msra.mxu0 0
  %380 = vmatprep.subr.bf16.mxu0 0
  %381 = vmatpush1.bf16.msra.mxu0 0
  %382 = vmatprep.subr.bf16.mxu0 0
  %383 = vmatpush1.bf16.msra.mxu0 0
  %384 = vmatprep.subr.bf16.mxu0 0
  %385 = vmatpush1.bf16.msra.mxu0 0
  %386 = vmatprep.subr.bf16.mxu0 0
  %387 = vmatpush1.bf16.msra.mxu0 0
  %388 = vmatprep.subr.bf16.mxu0 0
  %389 = vmatpush1.bf16.msra.mxu0 0
  %390 = vmatprep.subr.bf16.mxu0 0
  %391 = vmatpush1.bf16.msra.mxu0 0
  %392 = vmatprep.subr.bf16.mxu0 0
  %393 = vmatpush1.bf16.msra.mxu0 0
  %394 = vmatprep.mubr.bf16.mxu0 0
  %395 = vmatmul.mubr.bf16.gmra.mrb[0].mxu0 %v297
  %v396 = vpop.f32.mrb[0].mxu0
  %v397 = vadd.f32 %v349, %v396
  %v398 = vpop.f32.mrb[0].mxu0
  %v399 = vpop.f32.mrb[0].mxu0
  %v400 = vadd.f32 %v349, %v399
  %v401 = vpop.f32.mrb[0].mxu0
  %402 = vdwg.mxu0
  %s403 = scalar_lea.vmem %s3, 32
  %v404 = vld [vmem:[%s403] sm:$0xf]
  %v405 = vld [vmem:[%s403 + $0x4] sm:$0xf]
  %v406 = vld [vmem:[%s403 + $0x8] sm:$0xf]
  %v407 = vld [vmem:[%s403 + $0xc] sm:$0xf]
  %v408 = vld [vmem:[%s4 + $0x2] sm:$0x1]
  %v409 = vlaneseq
  %v410 = vshrl.u32 %v409, 7
  %v411 = vsub.s32 0, %v410
  %v412 = vrot.slane %v408, %v411
  %v417 = vunpack.c.l.b16 %v404
  %v418 = vunpack.c.l.b16 %v405
  %v419 = vunpack.c.l.b16 %v406
  %v420 = vunpack.c.l.b16 %v407
  %v421 = vpack.c.b16 %v418, %v417
  %v422 = vpack.c.b16 %v420, %v419
  %425 = vmatprep.subr.bf16.mxu0 0
  %426 = vmatpush1.bf16.msra.mxu0 %v421
  %427 = vmatprep.subr.bf16.mxu0 0
  %428 = vmatpush1.bf16.msra.mxu0 %v422
  %429 = vmatprep.subr.bf16.mxu0 0
  %430 = vmatpush1.bf16.msra.mxu0 0
  %431 = vmatprep.subr.bf16.mxu0 0
  %432 = vmatpush1.bf16.msra.mxu0 0
  %433 = vmatprep.subr.bf16.mxu0 0
  %434 = vmatpush1.bf16.msra.mxu0 0
  %435 = vmatprep.subr.bf16.mxu0 0
  %436 = vmatpush1.bf16.msra.mxu0 0
  %437 = vmatprep.subr.bf16.mxu0 0
  %438 = vmatpush1.bf16.msra.mxu0 0
  %439 = vmatprep.subr.bf16.mxu0 0
  %440 = vmatpush1.bf16.msra.mxu0 0
  %441 = vmatprep.subr.bf16.mxu0 0
  %442 = vmatpush1.bf16.msra.mxu0 0
  %443 = vmatprep.subr.bf16.mxu0 0
  %444 = vmatpush1.bf16.msra.mxu0 0
  %445 = vmatprep.subr.bf16.mxu0 0
  %446 = vmatpush1.bf16.msra.mxu0 0
  %447 = vmatprep.subr.bf16.mxu0 0
  %448 = vmatpush1.bf16.msra.mxu0 0
  %449 = vmatprep.subr.bf16.mxu0 0
  %450 = vmatpush1.bf16.msra.mxu0 0
  %451 = vmatprep.subr.bf16.mxu0 0
  %452 = vmatpush1.bf16.msra.mxu0 0
  %453 = vmatprep.subr.bf16.mxu0 0
  %454 = vmatpush1.bf16.msra.mxu0 0
  %455 = vmatprep.subr.bf16.mxu0 0
  %456 = vmatpush1.bf16.msra.mxu0 0
  %457 = vmatprep.mubr.bf16.mxu0 0
  %458 = vmatmul.mubr.bf16.gmra.mrb[0].mxu0 %v297
  %v459 = vpop.f32.mrb[0].mxu0
  %v460 = vadd.f32 %v412, %v459
  %v461 = vpop.f32.mrb[0].mxu0
  %v462 = vpop.f32.mrb[0].mxu0
  %v463 = vadd.f32 %v412, %v462
  %v464 = vpop.f32.mrb[0].mxu0
  %465 = vdwg.mxu0
  %v466 = vpack.c.bf16 %v337, %v334
  %v467 = vpack.c.bf16 %v400, %v397
  %vm468 = vcmask 130048
  %v470 = vsel %vm468, %v466, 0
  %v473 = vsel %vm468, %v467, 0
  %475 = vmatprep.subr.bf16.mxu0 0
  %476 = vmatpush1.bf16.xpose.msra.mxu0 %v473
  %477 = vmatprep.subr.bf16.mxu0 0
  %478 = vmatpush1.bf16.xpose.msra.mxu0 0
  %479 = vmatprep.subr.bf16.mxu0 0
  %480 = vmatpush1.bf16.xpose.msra.mxu0 0
  %481 = vmatprep.subr.bf16.mxu0 0
  %482 = vmatpush1.bf16.xpose.msra.mxu0 0
  %483 = vmatprep.subr.bf16.mxu0 0
  %484 = vmatpush1.bf16.xpose.msra.mxu0 0
  %485 = vmatprep.subr.bf16.mxu0 0
  %486 = vmatpush1.bf16.xpose.msra.mxu0 0
  %487 = vmatprep.subr.bf16.mxu0 0
  %488 = vmatpush1.bf16.xpose.msra.mxu0 0
  %489 = vmatprep.subr.bf16.mxu0 0
  %490 = vmatpush1.bf16.xpose.msra.mxu0 0
  %491 = vmatprep.subr.bf16.mxu0 0
  %492 = vmatpush1.bf16.xpose.msra.mxu0 0
  %493 = vmatprep.subr.bf16.mxu0 0
  %494 = vmatpush1.bf16.xpose.msra.mxu0 0
  %495 = vmatprep.subr.bf16.mxu0 0
  %496 = vmatpush1.bf16.xpose.msra.mxu0 0
  %497 = vmatprep.subr.bf16.mxu0 0
  %498 = vmatpush1.bf16.xpose.msra.mxu0 0
  %499 = vmatprep.subr.bf16.mxu0 0
  %500 = vmatpush1.bf16.xpose.msra.mxu0 0
  %501 = vmatprep.subr.bf16.mxu0 0
  %502 = vmatpush1.bf16.xpose.msra.mxu0 0
  %503 = vmatprep.subr.bf16.mxu0 0
  %504 = vmatpush1.bf16.xpose.msra.mxu0 0
  %505 = vmatprep.subr.bf16.mxu0 0
  %506 = vmatpush1.bf16.xpose.msra.mxu0 0
  %507 = vmatprep.mubr.bf16.mxu0 0
  %508 = vmatmul.mubr.bf16.gmra.mrb[0].mxu0 %v470
  %v509 = vpop.f32.mrb[0].mxu0
  %v510 = vadd.f32 0.0, %v509
  %v511 = vpop.f32.mrb[0].mxu0
  %v512 = vpop.f32.mrb[0].mxu0
  %v513 = vadd.f32 0.0, %v512
  %v514 = vpop.f32.mrb[0].mxu0
  %515 = vdwg.mxu0
  %v516 = vmul.f32 %v510, 0.25
  %v517 = vmul.f32 %v513, 0.25
  %v518 = vadd.f32 %v516, %v76
  %v519 = vadd.f32 %v517, %v77
  %v520 = vsel %vm468, %v518, -inf
  %521 = vmax.xlane.f32.xlu0 %v520
  %v522 = vpop.xlane.xlu0 %521
  %v523 = vsel %vm468, %v519, -inf
  %524 = vmax.xlane.f32.xlu0 %v523
  %v525 = vpop.xlane.xlu0 %524
  %v526 = vsub.f32 %v518, %v522
  %v527 = vsub.f32 %v519, %v525
  %v528 = vmul.f32 %v526, 1.442695
  %v529 = vpow.pop %v528
  %v530 = vmul.f32 %v527, 1.442695
  %v531 = vpow.pop %v530
  %v532 = vsel %vm468, %v529, 0.0
  %533 = vadd.xlane.f32.xlu0 %v532
  %v534 = vpop.xlane.xlu0 %533
  %v535 = vsel %vm468, %v531, 0.0
  %536 = vadd.xlane.f32.xlu0 %v535
  %v537 = vpop.xlane.xlu0 %536
  %v538 = vrcp.pop %v534
  %v539 = vrcp.pop %v537
  %v540 = vmul.f32 %v529, %v538
  %v541 = vmul.f32 %v531, %v539
  %v542 = vpack.c.bf16 %v541, %v540
  %v543 = vpack.c.bf16 %v463, %v460
  %v545 = vsel %vm468, %v542, 0
  %547 = vmatprep.subr.bf16.mxu0 0
  %548 = vmatpush1.bf16.msra.mxu0 %v543
  %549 = vmatprep.subr.bf16.mxu0 0
  %550 = vmatpush1.bf16.msra.mxu0 0
  %551 = vmatprep.subr.bf16.mxu0 0
  %552 = vmatpush1.bf16.msra.mxu0 0
  %553 = vmatprep.subr.bf16.mxu0 0
  %554 = vmatpush1.bf16.msra.mxu0 0
  %555 = vmatprep.subr.bf16.mxu0 0
  %556 = vmatpush1.bf16.msra.mxu0 0
  %557 = vmatprep.subr.bf16.mxu0 0
  %558 = vmatpush1.bf16.msra.mxu0 0
  %559 = vmatprep.subr.bf16.mxu0 0
  %560 = vmatpush1.bf16.msra.mxu0 0
  %561 = vmatprep.subr.bf16.mxu0 0
  %562 = vmatpush1.bf16.msra.mxu0 0
  %563 = vmatprep.subr.bf16.mxu0 0
  %564 = vmatpush1.bf16.msra.mxu0 0
  %565 = vmatprep.subr.bf16.mxu0 0
  %566 = vmatpush1.bf16.msra.mxu0 0
  %567 = vmatprep.subr.bf16.mxu0 0
  %568 = vmatpush1.bf16.msra.mxu0 0
  %569 = vmatprep.subr.bf16.mxu0 0
  %570 = vmatpush1.bf16.msra.mxu0 0
  %571 = vmatprep.subr.bf16.mxu0 0
  %572 = vmatpush1.bf16.msra.mxu0 0
  %573 = vmatprep.subr.bf16.mxu0 0
  %574 = vmatpush1.bf16.msra.mxu0 0
  %575 = vmatprep.subr.bf16.mxu0 0
  %576 = vmatpush1.bf16.msra.mxu0 0
  %577 = vmatprep.subr.bf16.mxu0 0
  %578 = vmatpush1.bf16.msra.mxu0 0
  %579 = vmatprep.mubr.bf16.mxu0 0
  %580 = vmatmul.mubr.bf16.gmra.mrb[0].mxu0 %v545
  %v581 = vpop.f32.mrb[0].mxu0
  %v582 = vadd.f32 0.0, %v581
  %v583 = vpop.f32.mrb[0].mxu0
  %v584 = vpop.f32.mrb[0].mxu0
  %v585 = vadd.f32 0.0, %v584
  %v586 = vpop.f32.mrb[0].mxu0
  %587 = vdwg.mxu0
  %v588 = vpack.c.bf16 %v585, %v582
  %v589 = vld [vmem:[%s5] sm:$0xf]
  %v590 = vld [vmem:[%s5 + $0x4] sm:$0xf]
  %s591 = scalar_lea.vmem %s3, 48
  %v592 = vld [vmem:[%s591] sm:$0xf]
  %v593 = vld [vmem:[%s591 + $0x4] sm:$0xf]
  %v594 = vld [vmem:[%s591 + $0x8] sm:$0xf]
  %v595 = vld [vmem:[%s591 + $0xc] sm:$0xf]
  %v596 = vld [vmem:[%s4 + $0x3] sm:$0x1]
  %v597 = vlaneseq
  %v598 = vshrl.u32 %v597, 7
  %v599 = vsub.s32 0, %v598
  %v600 = vrot.slane %v596, %v599
  %v605 = vunpack.c.l.b16 %v592
  %v606 = vunpack.c.l.b16 %v593
  %v607 = vunpack.c.l.b16 %v594
  %v608 = vunpack.c.l.b16 %v595
  %v609 = vpack.c.b16 %v606, %v605
  %v610 = vpack.c.b16 %v608, %v607
  %613 = vmatprep.subr.bf16.mxu0 0
  %614 = vmatpush1.bf16.msra.mxu0 %v609
  %615 = vmatprep.subr.bf16.mxu0 0
  %616 = vmatpush1.bf16.msra.mxu0 %v610
  %617 = vmatprep.subr.bf16.mxu0 0
  %618 = vmatpush1.bf16.msra.mxu0 0
  %619 = vmatprep.subr.bf16.mxu0 0
  %620 = vmatpush1.bf16.msra.mxu0 0
  %621 = vmatprep.subr.bf16.mxu0 0
  %622 = vmatpush1.bf16.msra.mxu0 0
  %623 = vmatprep.subr.bf16.mxu0 0
  %624 = vmatpush1.bf16.msra.mxu0 0
  %625 = vmatprep.subr.bf16.mxu0 0
  %626 = vmatpush1.bf16.msra.mxu0 0
  %627 = vmatprep.subr.bf16.mxu0 0
  %628 = vmatpush1.bf16.msra.mxu0 0
  %629 = vmatprep.subr.bf16.mxu0 0
  %630 = vmatpush1.bf16.msra.mxu0 0
  %631 = vmatprep.subr.bf16.mxu0 0
  %632 = vmatpush1.bf16.msra.mxu0 0
  %633 = vmatprep.subr.bf16.mxu0 0
  %634 = vmatpush1.bf16.msra.mxu0 0
  %635 = vmatprep.subr.bf16.mxu0 0
  %636 = vmatpush1.bf16.msra.mxu0 0
  %637 = vmatprep.subr.bf16.mxu0 0
  %638 = vmatpush1.bf16.msra.mxu0 0
  %639 = vmatprep.subr.bf16.mxu0 0
  %640 = vmatpush1.bf16.msra.mxu0 0
  %641 = vmatprep.subr.bf16.mxu0 0
  %642 = vmatpush1.bf16.msra.mxu0 0
  %643 = vmatprep.subr.bf16.mxu0 0
  %644 = vmatpush1.bf16.msra.mxu0 0
  %645 = vmatprep.mubr.bf16.mxu0 0
  %646 = vmatmul.mubr.bf16.gmra.mrb[0].mxu0 %v297
  %v647 = vpop.f32.mrb[0].mxu0
  %v648 = vadd.f32 %v600, %v647
  %v649 = vpop.f32.mrb[0].mxu0
  %v650 = vpop.f32.mrb[0].mxu0
  %v651 = vadd.f32 %v600, %v650
  %v652 = vpop.f32.mrb[0].mxu0
  %653 = vdwg.mxu0
  %s654 = scalar_lea.vmem %s3, 64
  %v655 = vld [vmem:[%s654] sm:$0xf]
  %v656 = vld [vmem:[%s654 + $0x4] sm:$0xf]
  %v657 = vld [vmem:[%s654 + $0x8] sm:$0xf]
  %v658 = vld [vmem:[%s654 + $0xc] sm:$0xf]
  %v659 = vld [vmem:[%s4 + $0x4] sm:$0x1]
  %v660 = vlaneseq
  %v661 = vshrl.u32 %v660, 7
  %v662 = vsub.s32 0, %v661
  %v663 = vrot.slane %v659, %v662
  %v668 = vunpack.c.l.b16 %v655
  %v669 = vunpack.c.l.b16 %v656
  %v670 = vunpack.c.l.b16 %v657
  %v671 = vunpack.c.l.b16 %v658
  %v672 = vpack.c.b16 %v669, %v668
  %v673 = vpack.c.b16 %v671, %v670
  %676 = vmatprep.subr.bf16.mxu0 0
  %677 = vmatpush1.bf16.msra.mxu0 %v672
  %678 = vmatprep.subr.bf16.mxu0 0
  %679 = vmatpush1.bf16.msra.mxu0 %v673
  %680 = vmatprep.subr.bf16.mxu0 0
  %681 = vmatpush1.bf16.msra.mxu0 0
  %682 = vmatprep.subr.bf16.mxu0 0
  %683 = vmatpush1.bf16.msra.mxu0 0
  %684 = vmatprep.subr.bf16.mxu0 0
  %685 = vmatpush1.bf16.msra.mxu0 0
  %686 = vmatprep.subr.bf16.mxu0 0
  %687 = vmatpush1.bf16.msra.mxu0 0
  %688 = vmatprep.subr.bf16.mxu0 0
  %689 = vmatpush1.bf16.msra.mxu0 0
  %690 = vmatprep.subr.bf16.mxu0 0
  %691 = vmatpush1.bf16.msra.mxu0 0
  %692 = vmatprep.subr.bf16.mxu0 0
  %693 = vmatpush1.bf16.msra.mxu0 0
  %694 = vmatprep.subr.bf16.mxu0 0
  %695 = vmatpush1.bf16.msra.mxu0 0
  %696 = vmatprep.subr.bf16.mxu0 0
  %697 = vmatpush1.bf16.msra.mxu0 0
  %698 = vmatprep.subr.bf16.mxu0 0
  %699 = vmatpush1.bf16.msra.mxu0 0
  %700 = vmatprep.subr.bf16.mxu0 0
  %701 = vmatpush1.bf16.msra.mxu0 0
  %702 = vmatprep.subr.bf16.mxu0 0
  %703 = vmatpush1.bf16.msra.mxu0 0
  %704 = vmatprep.subr.bf16.mxu0 0
  %705 = vmatpush1.bf16.msra.mxu0 0
  %706 = vmatprep.subr.bf16.mxu0 0
  %707 = vmatpush1.bf16.msra.mxu0 0
  %708 = vmatprep.mubr.bf16.mxu0 0
  %709 = vmatmul.mubr.bf16.gmra.mrb[0].mxu0 %v297
  %v710 = vpop.f32.mrb[0].mxu0
  %v711 = vadd.f32 %v663, %v710
  %v712 = vpop.f32.mrb[0].mxu0
  %v713 = vpop.f32.mrb[0].mxu0
  %v714 = vadd.f32 %v663, %v713
  %v715 = vpop.f32.mrb[0].mxu0
  %716 = vdwg.mxu0
  %s717 = scalar_lea.vmem %s3, 80
  %v718 = vld [vmem:[%s717] sm:$0xf]
  %v719 = vld [vmem:[%s717 + $0x4] sm:$0xf]
  %v720 = vld [vmem:[%s717 + $0x8] sm:$0xf]
  %v721 = vld [vmem:[%s717 + $0xc] sm:$0xf]
  %v722 = vld [vmem:[%s4 + $0x5] sm:$0x1]
  %v723 = vlaneseq
  %v724 = vshrl.u32 %v723, 7
  %v725 = vsub.s32 0, %v724
  %v726 = vrot.slane %v722, %v725
  %v731 = vunpack.c.l.b16 %v718
  %v732 = vunpack.c.l.b16 %v719
  %v733 = vunpack.c.l.b16 %v720
  %v734 = vunpack.c.l.b16 %v721
  %v735 = vpack.c.b16 %v732, %v731
  %v736 = vpack.c.b16 %v734, %v733
  %739 = vmatprep.subr.bf16.mxu0 0
  %740 = vmatpush1.bf16.msra.mxu0 %v735
  %741 = vmatprep.subr.bf16.mxu0 0
  %742 = vmatpush1.bf16.msra.mxu0 %v736
  %743 = vmatprep.subr.bf16.mxu0 0
  %744 = vmatpush1.bf16.msra.mxu0 0
  %745 = vmatprep.subr.bf16.mxu0 0
  %746 = vmatpush1.bf16.msra.mxu0 0
  %747 = vmatprep.subr.bf16.mxu0 0
  %748 = vmatpush1.bf16.msra.mxu0 0
  %749 = vmatprep.subr.bf16.mxu0 0
  %750 = vmatpush1.bf16.msra.mxu0 0
  %751 = vmatprep.subr.bf16.mxu0 0
  %752 = vmatpush1.bf16.msra.mxu0 0
  %753 = vmatprep.subr.bf16.mxu0 0
  %754 = vmatpush1.bf16.msra.mxu0 0
  %755 = vmatprep.subr.bf16.mxu0 0
  %756 = vmatpush1.bf16.msra.mxu0 0
  %757 = vmatprep.subr.bf16.mxu0 0
  %758 = vmatpush1.bf16.msra.mxu0 0
  %759 = vmatprep.subr.bf16.mxu0 0
  %760 = vmatpush1.bf16.msra.mxu0 0
  %761 = vmatprep.subr.bf16.mxu0 0
  %762 = vmatpush1.bf16.msra.mxu0 0
  %763 = vmatprep.subr.bf16.mxu0 0
  %764 = vmatpush1.bf16.msra.mxu0 0
  %765 = vmatprep.subr.bf16.mxu0 0
  %766 = vmatpush1.bf16.msra.mxu0 0
  %767 = vmatprep.subr.bf16.mxu0 0
  %768 = vmatpush1.bf16.msra.mxu0 0
  %769 = vmatprep.subr.bf16.mxu0 0
  %770 = vmatpush1.bf16.msra.mxu0 0
  %771 = vmatprep.mubr.bf16.mxu0 0
  %772 = vmatmul.mubr.bf16.gmra.mrb[0].mxu0 %v297
  %v773 = vpop.f32.mrb[0].mxu0
  %v774 = vadd.f32 %v726, %v773
  %v775 = vpop.f32.mrb[0].mxu0
  %v776 = vpop.f32.mrb[0].mxu0
  %v777 = vadd.f32 %v726, %v776
  %v778 = vpop.f32.mrb[0].mxu0
  %779 = vdwg.mxu0
  %v780 = vpack.c.bf16 %v651, %v648
  %v781 = vpack.c.bf16 %v714, %v711
  %v783 = vsel %vm468, %v780, 0
  %v786 = vsel %vm468, %v781, 0
  %788 = vmatprep.subr.bf16.mxu0 0
  %789 = vmatpush1.bf16.xpose.msra.mxu0 %v786
  %790 = vmatprep.subr.bf16.mxu0 0
  %791 = vmatpush1.bf16.xpose.msra.mxu0 0
  %792 = vmatprep.subr.bf16.mxu0 0
  %793 = vmatpush1.bf16.xpose.msra.mxu0 0
  %794 = vmatprep.subr.bf16.mxu0 0
  %795 = vmatpush1.bf16.xpose.msra.mxu0 0
  %796 = vmatprep.subr.bf16.mxu0 0
  %797 = vmatpush1.bf16.xpose.msra.mxu0 0
  %798 = vmatprep.subr.bf16.mxu0 0
  %799 = vmatpush1.bf16.xpose.msra.mxu0 0
  %800 = vmatprep.subr.bf16.mxu0 0
  %801 = vmatpush1.bf16.xpose.msra.mxu0 0
  %802 = vmatprep.subr.bf16.mxu0 0
  %803 = vmatpush1.bf16.xpose.msra.mxu0 0
  %804 = vmatprep.subr.bf16.mxu0 0
  %805 = vmatpush1.bf16.xpose.msra.mxu0 0
  %806 = vmatprep.subr.bf16.mxu0 0
  %807 = vmatpush1.bf16.xpose.msra.mxu0 0
  %808 = vmatprep.subr.bf16.mxu0 0
  %809 = vmatpush1.bf16.xpose.msra.mxu0 0
  %810 = vmatprep.subr.bf16.mxu0 0
  %811 = vmatpush1.bf16.xpose.msra.mxu0 0
  %812 = vmatprep.subr.bf16.mxu0 0
  %813 = vmatpush1.bf16.xpose.msra.mxu0 0
  %814 = vmatprep.subr.bf16.mxu0 0
  %815 = vmatpush1.bf16.xpose.msra.mxu0 0
  %816 = vmatprep.subr.bf16.mxu0 0
  %817 = vmatpush1.bf16.xpose.msra.mxu0 0
  %818 = vmatprep.subr.bf16.mxu0 0
  %819 = vmatpush1.bf16.xpose.msra.mxu0 0
  %820 = vmatprep.mubr.bf16.mxu0 0
  %821 = vmatmul.mubr.bf16.gmra.mrb[0].mxu0 %v783
  %v822 = vpop.f32.mrb[0].mxu0
  %v823 = vadd.f32 0.0, %v822
  %v824 = vpop.f32.mrb[0].mxu0
  %v825 = vpop.f32.mrb[0].mxu0
  %v826 = vadd.f32 0.0, %v825
  %v827 = vpop.f32.mrb[0].mxu0
  %828 = vdwg.mxu0
  %v829 = vmul.f32 %v823, 0.25
  %v830 = vmul.f32 %v826, 0.25
  %v831 = vadd.f32 %v829, %v76
  %v832 = vadd.f32 %v830, %v77
  %v833 = vsel %vm468, %v831, -inf
  %834 = vmax.xlane.f32.xlu0 %v833
  %v835 = vpop.xlane.xlu0 %834
  %v836 = vsel %vm468, %v832, -inf
  %837 = vmax.xlane.f32.xlu0 %v836
  %v838 = vpop.xlane.xlu0 %837
  %v839 = vsub.f32 %v831, %v835
  %v840 = vsub.f32 %v832, %v838
  %v841 = vmul.f32 %v839, 1.442695
  %v842 = vpow.pop %v841
  %v843 = vmul.f32 %v840, 1.442695
  %v844 = vpow.pop %v843
  %v845 = vsel %vm468, %v842, 0.0
  %846 = vadd.xlane.f32.xlu0 %v845
  %v847 = vpop.xlane.xlu0 %846
  %v848 = vsel %vm468, %v844, 0.0
  %849 = vadd.xlane.f32.xlu0 %v848
  %v850 = vpop.xlane.xlu0 %849
  %v851 = vrcp.pop %v847
  %v852 = vrcp.pop %v850
  %v853 = vmul.f32 %v842, %v851
  %v854 = vmul.f32 %v844, %v852
  %v855 = vpack.c.bf16 %v854, %v853
  %v856 = vpack.c.bf16 %v777, %v774
  %v858 = vsel %vm468, %v855, 0
  %860 = vmatprep.subr.bf16.mxu0 0
  %861 = vmatpush1.bf16.msra.mxu0 %v856
  %862 = vmatprep.subr.bf16.mxu0 0
  %863 = vmatpush1.bf16.msra.mxu0 0
  %864 = vmatprep.subr.bf16.mxu0 0
  %865 = vmatpush1.bf16.msra.mxu0 0
  %866 = vmatprep.subr.bf16.mxu0 0
  %867 = vmatpush1.bf16.msra.mxu0 0
  %868 = vmatprep.subr.bf16.mxu0 0
  %869 = vmatpush1.bf16.msra.mxu0 0
  %870 = vmatprep.subr.bf16.mxu0 0
  %871 = vmatpush1.bf16.msra.mxu0 0
  %872 = vmatprep.subr.bf16.mxu0 0
  %873 = vmatpush1.bf16.msra.mxu0 0
  %874 = vmatprep.subr.bf16.mxu0 0
  %875 = vmatpush1.bf16.msra.mxu0 0
  %876 = vmatprep.subr.bf16.mxu0 0
  %877 = vmatpush1.bf16.msra.mxu0 0
  %878 = vmatprep.subr.bf16.mxu0 0
  %879 = vmatpush1.bf16.msra.mxu0 0
  %880 = vmatprep.subr.bf16.mxu0 0
  %881 = vmatpush1.bf16.msra.mxu0 0
  %882 = vmatprep.subr.bf16.mxu0 0
  %883 = vmatpush1.bf16.msra.mxu0 0
  %884 = vmatprep.subr.bf16.mxu0 0
  %885 = vmatpush1.bf16.msra.mxu0 0
  %886 = vmatprep.subr.bf16.mxu0 0
  %887 = vmatpush1.bf16.msra.mxu0 0
  %888 = vmatprep.subr.bf16.mxu0 0
  %889 = vmatpush1.bf16.msra.mxu0 0
  %890 = vmatprep.subr.bf16.mxu0 0
  %891 = vmatpush1.bf16.msra.mxu0 0
  %892 = vmatprep.mubr.bf16.mxu0 0
  %893 = vmatmul.mubr.bf16.gmra.mrb[0].mxu0 %v858
  %v894 = vpop.f32.mrb[0].mxu0
  %v895 = vadd.f32 0.0, %v894
  %v896 = vpop.f32.mrb[0].mxu0
  %v897 = vpop.f32.mrb[0].mxu0
  %v898 = vadd.f32 0.0, %v897
  %v899 = vpop.f32.mrb[0].mxu0
  %900 = vdwg.mxu0
  %v901 = vpack.c.bf16 %v898, %v895
  %s902 = scalar_lea.vmem %s5, 8
  %v903 = vld [vmem:[%s902] sm:$0xf]
  %v904 = vld [vmem:[%s902 + $0x4] sm:$0xf]
  %v907 = vunpack.c.l.b16 %v903
  %v908 = vunpack.c.l.b16 %v904
  %v909 = vpack.c.b16 %v908, %v907
  %v912 = vsel %vm468, %v901, 0
  %914 = vmatprep.subr.bf16.mxu0 0
  %915 = vmatpush1.bf16.msra.mxu0 %v909
  %916 = vmatprep.subr.bf16.mxu0 0
  %917 = vmatpush1.bf16.msra.mxu0 0
  %918 = vmatprep.subr.bf16.mxu0 0
  %919 = vmatpush1.bf16.msra.mxu0 0
  %920 = vmatprep.subr.bf16.mxu0 0
  %921 = vmatpush1.bf16.msra.mxu0 0
  %922 = vmatprep.subr.bf16.mxu0 0
  %923 = vmatpush1.bf16.msra.mxu0 0
  %924 = vmatprep.subr.bf16.mxu0 0
  %925 = vmatpush1.bf16.msra.mxu0 0
  %926 = vmatprep.subr.bf16.mxu0 0
  %927 = vmatpush1.bf16.msra.mxu0 0
  %928 = vmatprep.subr.bf16.mxu0 0
  %929 = vmatpush1.bf16.msra.mxu0 0
  %930 = vmatprep.subr.bf16.mxu0 0
  %931 = vmatpush1.bf16.msra.mxu0 0
  %932 = vmatprep.subr.bf16.mxu0 0
  %933 = vmatpush1.bf16.msra.mxu0 0
  %934 = vmatprep.subr.bf16.mxu0 0
  %935 = vmatpush1.bf16.msra.mxu0 0
  %936 = vmatprep.subr.bf16.mxu0 0
  %937 = vmatpush1.bf16.msra.mxu0 0
  %938 = vmatprep.subr.bf16.mxu0 0
  %939 = vmatpush1.bf16.msra.mxu0 0
  %940 = vmatprep.subr.bf16.mxu0 0
  %941 = vmatpush1.bf16.msra.mxu0 0
  %942 = vmatprep.subr.bf16.mxu0 0
  %943 = vmatpush1.bf16.msra.mxu0 0
  %944 = vmatprep.subr.bf16.mxu0 0
  %945 = vmatpush1.bf16.msra.mxu0 0
  %946 = vmatprep.mubr.bf16.mxu0 0
  %947 = vmatmul.mubr.bf16.gmra.mrb[0].mxu0 %v912
  %v948 = vpop.f32.mrb[0].mxu0
  %v949 = vadd.f32 0.0, %v948
  %v950 = vpop.f32.mrb[0].mxu0
  %v951 = vpop.f32.mrb[0].mxu0
  %v952 = vadd.f32 0.0, %v951
  %v953 = vpop.f32.mrb[0].mxu0
  %954 = vdwg.mxu0
  %v957 = vunpack.c.l.b16 %v589
  %v958 = vunpack.c.l.b16 %v590
  %v959 = vpack.c.b16 %v958, %v957
  %v962 = vsel %vm468, %v588, 0
  %964 = vmatprep.subr.bf16.mxu0 0
  %965 = vmatpush1.bf16.msra.mxu0 %v959
  %966 = vmatprep.subr.bf16.mxu0 0
  %967 = vmatpush1.bf16.msra.mxu0 0
  %968 = vmatprep.subr.bf16.mxu0 0
  %969 = vmatpush1.bf16.msra.mxu0 0
  %970 = vmatprep.subr.bf16.mxu0 0
  %971 = vmatpush1.bf16.msra.mxu0 0
  %972 = vmatprep.subr.bf16.mxu0 0
  %973 = vmatpush1.bf16.msra.mxu0 0
  %974 = vmatprep.subr.bf16.mxu0 0
  %975 = vmatpush1.bf16.msra.mxu0 0
  %976 = vmatprep.subr.bf16.mxu0 0
  %977 = vmatpush1.bf16.msra.mxu0 0
  %978 = vmatprep.subr.bf16.mxu0 0
  %979 = vmatpush1.bf16.msra.mxu0 0
  %980 = vmatprep.subr.bf16.mxu0 0
  %981 = vmatpush1.bf16.msra.mxu0 0
  %982 = vmatprep.subr.bf16.mxu0 0
  %983 = vmatpush1.bf16.msra.mxu0 0
  %984 = vmatprep.subr.bf16.mxu0 0
  %985 = vmatpush1.bf16.msra.mxu0 0
  %986 = vmatprep.subr.bf16.mxu0 0
  %987 = vmatpush1.bf16.msra.mxu0 0
  %988 = vmatprep.subr.bf16.mxu0 0
  %989 = vmatpush1.bf16.msra.mxu0 0
  %990 = vmatprep.subr.bf16.mxu0 0
  %991 = vmatpush1.bf16.msra.mxu0 0
  %992 = vmatprep.subr.bf16.mxu0 0
  %993 = vmatpush1.bf16.msra.mxu0 0
  %994 = vmatprep.subr.bf16.mxu0 0
  %995 = vmatpush1.bf16.msra.mxu0 0
  %996 = vmatprep.mubr.bf16.mxu0 0
  %997 = vmatmul.mubr.bf16.gmra.mrb[0].mxu0 %v962
  %v998 = vpop.f32.mrb[0].mxu0
  %v999 = vadd.f32 %v949, %v998
  %v1000 = vpop.f32.mrb[0].mxu0
  %v1001 = vpop.f32.mrb[0].mxu0
  %v1002 = vadd.f32 %v952, %v1001
  %v1003 = vpop.f32.mrb[0].mxu0
  %1004 = vdwg.mxu0
  %v1005 = vadd.f32 %v226, %v999
  %v1006 = vadd.f32 %v229, %v1002
  %v1007 = vld [vmem:[%s10] sm:$0x1]
  %v1008 = vlaneseq
  %v1009 = vshrl.u32 %v1008, 7
  %v1010 = vsub.s32 0, %v1009
  %v1011 = vrot.slane %v1007, %v1010
  %v1012 = vadd.f32 %v1005, %v1011
  %v1013 = vadd.f32 %v1006, %v1011
  %v1014 = vld [vmem:[%s9 + $0x2] sm:$0x1]
  %v1015 = vld [vmem:[%s9 + $0x3] sm:$0x1]
  %v1016 = vsel %vm234, %v1012, 0.0
  %1017 = vadd.xlane.f32.xlu0 %v1016
  %v1018 = vpop.xlane.xlu0 %1017
  %v1019 = vsel %vm234, %v1013, 0.0
  %1020 = vadd.xlane.f32.xlu0 %v1019
  %v1021 = vpop.xlane.xlu0 %1020
  %v1022 = vmul.f32 %v1018, %v241
  %v1023 = vmul.f32 %v1021, %v241
  %v1024 = vsub.f32 %v1012, %v1022
  %v1025 = vsub.f32 %v1013, %v1023
  %v1026 = vmul.f32 %v1024, %v1024
  %v1027 = vmul.f32 %v1025, %v1025
  %v1028 = vsel %vm234, %v1026, 0.0
  %1029 = vadd.xlane.f32.xlu0 %v1028
  %v1030 = vpop.xlane.xlu0 %1029
  %v1031 = vsel %vm234, %v1027, 0.0
  %1032 = vadd.xlane.f32.xlu0 %v1031
  %v1033 = vpop.xlane.xlu0 %1032
  %v1034 = vmul.f32 %v1030, %v241
  %v1035 = vmul.f32 %v1033, %v241
  %v1036 = vadd.f32 %v1034, 1e-12
  %v1037 = vadd.f32 %v1035, 1e-12
  %v1038 = vrsqrt.pop %v1036
  %v1039 = vrsqrt.pop %v1037
  %v1040 = vmul.f32 %v1024, %v1038
  %v1041 = vmul.f32 %v1025, %v1039
  %v1042 = vlaneseq
  %v1043 = vshrl.u32 %v1042, 7
  %v1044 = vsub.s32 0, %v1043
  %v1045 = vrot.slane %v1014, %v1044
  %v1046 = vmul.f32 %v1040, %v1045
  %v1047 = vmul.f32 %v1041, %v1045
  %v1048 = vlaneseq
  %v1049 = vshrl.u32 %v1048, 7
  %v1050 = vsub.s32 0, %v1049
  %v1051 = vrot.slane %v1015, %v1050
  %v1052 = vadd.f32 %v1046, %v1051
  %v1053 = vadd.f32 %v1047, %v1051
  %v1054 = vpack.c.bf16 %v1053, %v1052
  %v1055 = vld [vmem:[%s6] sm:$0xf]
  %v1056 = vld [vmem:[%s6 + $0x4] sm:$0xf]
  %v1057 = vld [vmem:[%s6 + $0x8] sm:$0xf]
  %v1058 = vld [vmem:[%s6 + $0xc] sm:$0xf]
  %v1059 = vld [vmem:[%s7] sm:$0x1]
  %v1060 = vlaneseq
  %v1061 = vshrl.u32 %v1060, 7
  %v1062 = vsub.s32 0, %v1061
  %v1063 = vrot.slane %v1059, %v1062
  %v1068 = vunpack.c.l.b16 %v1055
  %v1069 = vunpack.c.l.b16 %v1056
  %v1070 = vunpack.c.l.b16 %v1057
  %v1071 = vunpack.c.l.b16 %v1058
  %v1072 = vpack.c.b16 %v1069, %v1068
  %v1073 = vpack.c.b16 %v1071, %v1070
  %v1077 = vsel %vm234, %v1054, 0
  %1079 = vmatprep.subr.bf16.mxu0 0
  %1080 = vmatpush1.bf16.msra.mxu0 %v1072
  %1081 = vmatprep.subr.bf16.mxu0 0
  %1082 = vmatpush1.bf16.msra.mxu0 %v1073
  %1083 = vmatprep.subr.bf16.mxu0 0
  %1084 = vmatpush1.bf16.msra.mxu0 0
  %1085 = vmatprep.subr.bf16.mxu0 0
  %1086 = vmatpush1.bf16.msra.mxu0 0
  %1087 = vmatprep.subr.bf16.mxu0 0
  %1088 = vmatpush1.bf16.msra.mxu0 0
  %1089 = vmatprep.subr.bf16.mxu0 0
  %1090 = vmatpush1.bf16.msra.mxu0 0
  %1091 = vmatprep.subr.bf16.mxu0 0
  %1092 = vmatpush1.bf16.msra.mxu0 0
  %1093 = vmatprep.subr.bf16.mxu0 0
  %1094 = vmatpush1.bf16.msra.mxu0 0
  %1095 = vmatprep.subr.bf16.mxu0 0
  %1096 = vmatpush1.bf16.msra.mxu0 0
  %1097 = vmatprep.subr.bf16.mxu0 0
  %1098 = vmatpush1.bf16.msra.mxu0 0
  %1099 = vmatprep.subr.bf16.mxu0 0
  %1100 = vmatpush1.bf16.msra.mxu0 0
  %1101 = vmatprep.subr.bf16.mxu0 0
  %1102 = vmatpush1.bf16.msra.mxu0 0
  %1103 = vmatprep.subr.bf16.mxu0 0
  %1104 = vmatpush1.bf16.msra.mxu0 0
  %1105 = vmatprep.subr.bf16.mxu0 0
  %1106 = vmatpush1.bf16.msra.mxu0 0
  %1107 = vmatprep.subr.bf16.mxu0 0
  %1108 = vmatpush1.bf16.msra.mxu0 0
  %1109 = vmatprep.subr.bf16.mxu0 0
  %1110 = vmatpush1.bf16.msra.mxu0 0
  %1111 = vmatprep.mubr.bf16.mxu0 0
  %1112 = vmatmul.mubr.bf16.gmra.mrb[0].mxu0 %v1077
  %v1113 = vpop.f32.mrb[0].mxu0
  %v1114 = vadd.f32 %v1063, %v1113
  %v1115 = vpop.f32.mrb[0].mxu0
  %v1116 = vpop.f32.mrb[0].mxu0
  %v1117 = vadd.f32 %v1063, %v1116
  %v1118 = vpop.f32.mrb[0].mxu0
  %1119 = vdwg.mxu0
  %v1120 = vmul.f32 %v1114, 0.5
  %v1121 = vmul.f32 %v1117, 0.5
  %v1122 = vmul.f32 %v1114, 0.70710677
  %v1123 = vmul.f32 %v1117, 0.70710677
  %v1124 = vand.u32 2147483647, %v1122
  %v1125 = vand.u32 2147483647, %v1123
  %v1126 = vmul.f32 %v1124, 0.3275911
  %v1127 = vmul.f32 %v1125, 0.3275911
  %v1128 = vadd.f32 %v1126, 1.0
  %v1129 = vadd.f32 %v1127, 1.0
  %v1130 = vrcp.pop %v1128
  %v1131 = vmul.f32 1.0, %v1130
  %v1132 = vrcp.pop %v1129
  %v1133 = vmul.f32 1.0, %v1132
  %v1134 = vmul.f32 %v1131, 1.0614054
  %v1135 = vmul.f32 %v1133, 1.0614054
  %v1136 = vadd.f32 %v1134, -1.4531521
  %v1137 = vadd.f32 %v1135, -1.4531521
  %v1138 = vmul.f32 %v1136, %v1131
  %v1139 = vmul.f32 %v1137, %v1133
  %v1140 = vadd.f32 %v1138, 1.4214138
  %v1141 = vadd.f32 %v1139, 1.4214138
  %v1142 = vmul.f32 %v1140, %v1131
  %v1143 = vmul.f32 %v1141, %v1133
  %v1144 = vadd.f32 %v1142, -0.28449672
  %v1145 = vadd.f32 %v1143, -0.28449672
  %v1146 = vmul.f32 %v1144, %v1131
  %v1147 = vmul.f32 %v1145, %v1133
  %v1148 = vadd.f32 %v1146, 0.2548296
  %v1149 = vadd.f32 %v1147, 0.2548296
  %v1150 = vmul.f32 %v1148, %v1131
  %v1151 = vmul.f32 %v1149, %v1133
  %v1152 = vmul.f32 %v1124, %v1124
  %v1153 = vmul.f32 %v1125, %v1125
  %v1154 = vsub.f32 0.0, %v1152
  %v1155 = vsub.f32 0.0, %v1153
  %v1156 = vmul.f32 %v1154, 1.442695
  %v1157 = vpow.pop %v1156
  %v1158 = vmul.f32 %v1155, 1.442695
  %v1159 = vpow.pop %v1158
  %v1160 = vmul.f32 %v1150, %v1157
  %v1161 = vmul.f32 %v1151, %v1159
  %v1162 = vsub.f32 1.0, %v1160
  %v1163 = vsub.f32 1.0, %v1161
  %vm1164 = vcmp.ge.f32.partialorder %v1122, 0.0
  %vm1165 = vcmp.ge.f32.partialorder %v1123, 0.0
  %v1166 = vsub.f32 0.0, %v1162
  %v1167 = vsub.f32 0.0, %v1163
  %v1168 = vsel %vm1164, %v1162, %v1166
  %v1169 = vsel %vm1165, %v1163, %v1167
  %v1170 = vadd.f32 %v1168, 1.0
  %v1171 = vadd.f32 %v1169, 1.0
  %v1172 = vmul.f32 %v1120, %v1170
  %v1173 = vmul.f32 %v1121, %v1171
  %v1174 = vpack.c.bf16 %v1173, %v1172
  %v1175 = vld [vmem:[%s8] sm:$0xf]
  %v1176 = vld [vmem:[%s8 + $0x4] sm:$0xf]
  %v1177 = vld [vmem:[%s8 + $0x8] sm:$0xf]
  %v1178 = vld [vmem:[%s8 + $0xc] sm:$0xf]
  %v1179 = vld [vmem:[%s8 + $0x10] sm:$0xf]
  %v1180 = vld [vmem:[%s8 + $0x14] sm:$0xf]
  %v1181 = vld [vmem:[%s8 + $0x18] sm:$0xf]
  %v1182 = vld [vmem:[%s8 + $0x1c] sm:$0xf]
  %v1183 = vld [vmem:[%s8 + $0x20] sm:$0xf]
  %v1184 = vld [vmem:[%s8 + $0x24] sm:$0xf]
  %v1185 = vld [vmem:[%s8 + $0x28] sm:$0xf]
  %v1186 = vld [vmem:[%s8 + $0x2c] sm:$0xf]
  %v1187 = vld [vmem:[%s8 + $0x30] sm:$0xf]
  %v1188 = vld [vmem:[%s8 + $0x34] sm:$0xf]
  %v1189 = vld [vmem:[%s8 + $0x38] sm:$0xf]
  %v1190 = vld [vmem:[%s8 + $0x3c] sm:$0xf]
  %v1207 = vunpack.c.l.b16 %v1175
  %v1208 = vunpack.c.l.b16 %v1176
  %v1209 = vunpack.c.l.b16 %v1177
  %v1210 = vunpack.c.l.b16 %v1178
  %v1211 = vunpack.c.l.b16 %v1179
  %v1212 = vunpack.c.l.b16 %v1180
  %v1213 = vunpack.c.l.b16 %v1181
  %v1214 = vunpack.c.l.b16 %v1182
  %v1215 = vunpack.c.l.b16 %v1183
  %v1216 = vunpack.c.l.b16 %v1184
  %v1217 = vunpack.c.l.b16 %v1185
  %v1218 = vunpack.c.l.b16 %v1186
  %v1219 = vunpack.c.l.b16 %v1187
  %v1220 = vunpack.c.l.b16 %v1188
  %v1221 = vunpack.c.l.b16 %v1189
  %v1222 = vunpack.c.l.b16 %v1190
  %v1223 = vpack.c.b16 %v1208, %v1207
  %v1224 = vpack.c.b16 %v1210, %v1209
  %v1225 = vpack.c.b16 %v1212, %v1211
  %v1226 = vpack.c.b16 %v1214, %v1213
  %v1227 = vpack.c.b16 %v1216, %v1215
  %v1228 = vpack.c.b16 %v1218, %v1217
  %v1229 = vpack.c.b16 %v1220, %v1219
  %v1230 = vpack.c.b16 %v1222, %v1221
  %1239 = vmatprep.subr.bf16.mxu0 0
  %1240 = vmatpush1.bf16.msra.mxu0 %v1223
  %1241 = vmatprep.subr.bf16.mxu0 0
  %1242 = vmatpush1.bf16.msra.mxu0 %v1224
  %1243 = vmatprep.subr.bf16.mxu0 0
  %1244 = vmatpush1.bf16.msra.mxu0 %v1225
  %1245 = vmatprep.subr.bf16.mxu0 0
  %1246 = vmatpush1.bf16.msra.mxu0 %v1226
  %1247 = vmatprep.subr.bf16.mxu0 0
  %1248 = vmatpush1.bf16.msra.mxu0 %v1227
  %1249 = vmatprep.subr.bf16.mxu0 0
  %1250 = vmatpush1.bf16.msra.mxu0 %v1228
  %1251 = vmatprep.subr.bf16.mxu0 0
  %1252 = vmatpush1.bf16.msra.mxu0 %v1229
  %1253 = vmatprep.subr.bf16.mxu0 0
  %1254 = vmatpush1.bf16.msra.mxu0 %v1230
  %1255 = vmatprep.subr.bf16.mxu0 0
  %1256 = vmatpush1.bf16.msra.mxu0 0
  %1257 = vmatprep.subr.bf16.mxu0 0
  %1258 = vmatpush1.bf16.msra.mxu0 0
  %1259 = vmatprep.subr.bf16.mxu0 0
  %1260 = vmatpush1.bf16.msra.mxu0 0
  %1261 = vmatprep.subr.bf16.mxu0 0
  %1262 = vmatpush1.bf16.msra.mxu0 0
  %1263 = vmatprep.subr.bf16.mxu0 0
  %1264 = vmatpush1.bf16.msra.mxu0 0
  %1265 = vmatprep.subr.bf16.mxu0 0
  %1266 = vmatpush1.bf16.msra.mxu0 0
  %1267 = vmatprep.subr.bf16.mxu0 0
  %1268 = vmatpush1.bf16.msra.mxu0 0
  %1269 = vmatprep.subr.bf16.mxu0 0
  %1270 = vmatpush1.bf16.msra.mxu0 0
  %1271 = vmatprep.mubr.bf16.mxu0 0
  %1272 = vmatmul.mubr.bf16.gmra.mrb[0].mxu0 %v1174
  %v1273 = vpop.f32.mrb[0].mxu0
  %v1274 = vadd.f32 0.0, %v1273
  %v1275 = vpop.f32.mrb[0].mxu0
  %v1276 = vpop.f32.mrb[0].mxu0
  %v1277 = vadd.f32 0.0, %v1276
  %v1278 = vpop.f32.mrb[0].mxu0
  %1279 = vdwg.mxu0
  %v1280 = vadd.f32 %v1012, %v1274
  %v1281 = vadd.f32 %v1013, %v1277
  %v1282 = vld [vmem:[%s10 + $0x1] sm:$0x1]
  %v1283 = vlaneseq
  %v1284 = vshrl.u32 %v1283, 7
  %v1285 = vsub.s32 0, %v1284
  %v1286 = vrot.slane %v1282, %v1285
  %v1287 = vadd.f32 %v1280, %v1286
  %v1288 = vadd.f32 %v1281, %v1286
  %v1289 = vld [vmem:[%s9 + $0x4] sm:$0x1]
  %v1290 = vld [vmem:[%s9 + $0x5] sm:$0x1]
  %v1291 = vsel %vm234, %v1287, 0.0
  %1292 = vadd.xlane.f32.xlu0 %v1291
  %v1293 = vpop.xlane.xlu0 %1292
  %v1294 = vsel %vm234, %v1288, 0.0
  %1295 = vadd.xlane.f32.xlu0 %v1294
  %v1296 = vpop.xlane.xlu0 %1295
  %v1297 = vmul.f32 %v1293, %v241
  %v1298 = vmul.f32 %v1296, %v241
  %v1299 = vsub.f32 %v1287, %v1297
  %v1300 = vsub.f32 %v1288, %v1298
  %v1301 = vmul.f32 %v1299, %v1299
  %v1302 = vmul.f32 %v1300, %v1300
  %v1303 = vsel %vm234, %v1301, 0.0
  %1304 = vadd.xlane.f32.xlu0 %v1303
  %v1305 = vpop.xlane.xlu0 %1304
  %v1306 = vsel %vm234, %v1302, 0.0
  %1307 = vadd.xlane.f32.xlu0 %v1306
  %v1308 = vpop.xlane.xlu0 %1307
  %v1309 = vmul.f32 %v1305, %v241
  %v1310 = vmul.f32 %v1308, %v241
  %v1311 = vadd.f32 %v1309, 1e-12
  %v1312 = vadd.f32 %v1310, 1e-12
  %v1313 = vrsqrt.pop %v1311
  %v1314 = vrsqrt.pop %v1312
  %v1315 = vmul.f32 %v1299, %v1313
  %v1316 = vmul.f32 %v1300, %v1314
  %v1317 = vlaneseq
  %v1318 = vshrl.u32 %v1317, 7
  %v1319 = vsub.s32 0, %v1318
  %v1320 = vrot.slane %v1289, %v1319
  %v1321 = vmul.f32 %v1315, %v1320
  %v1322 = vmul.f32 %v1316, %v1320
  %v1323 = vlaneseq
  %v1324 = vshrl.u32 %v1323, 7
  %v1325 = vsub.s32 0, %v1324
  %v1326 = vrot.slane %v1290, %v1325
  %v1327 = vadd.f32 %v1321, %v1326
  %v1328 = vadd.f32 %v1322, %v1326
  %v1329 = vpack.c.bf16 %v1328, %v1327
  %s1330 = scalar_lea.vmem %s3, 96
  %v1331 = vld [vmem:[%s1330] sm:$0xf]
  %v1332 = vld [vmem:[%s1330 + $0x4] sm:$0xf]
  %v1333 = vld [vmem:[%s1330 + $0x8] sm:$0xf]
  %v1334 = vld [vmem:[%s1330 + $0xc] sm:$0xf]
  %v1335 = vld [vmem:[%s4 + $0x6] sm:$0x1]
  %v1336 = vlaneseq
  %v1337 = vshrl.u32 %v1336, 7
  %v1338 = vsub.s32 0, %v1337
  %v1339 = vrot.slane %v1335, %v1338
  %v1344 = vunpack.c.l.b16 %v1331
  %v1345 = vunpack.c.l.b16 %v1332
  %v1346 = vunpack.c.l.b16 %v1333
  %v1347 = vunpack.c.l.b16 %v1334
  %v1348 = vpack.c.b16 %v1345, %v1344
  %v1349 = vpack.c.b16 %v1347, %v1346
  %v1353 = vsel %vm234, %v1329, 0
  %1355 = vmatprep.subr.bf16.mxu0 0
  %1356 = vmatpush1.bf16.msra.mxu0 %v1348
  %1357 = vmatprep.subr.bf16.mxu0 0
  %1358 = vmatpush1.bf16.msra.mxu0 %v1349
  %1359 = vmatprep.subr.bf16.mxu0 0
  %1360 = vmatpush1.bf16.msra.mxu0 0
  %1361 = vmatprep.subr.bf16.mxu0 0
  %1362 = vmatpush1.bf16.msra.mxu0 0
  %1363 = vmatprep.subr.bf16.mxu0 0
  %1364 = vmatpush1.bf16.msra.mxu0 0
  %1365 = vmatprep.subr.bf16.mxu0 0
  %1366 = vmatpush1.bf16.msra.mxu0 0
  %1367 = vmatprep.subr.bf16.mxu0 0
  %1368 = vmatpush1.bf16.msra.mxu0 0
  %1369 = vmatprep.subr.bf16.mxu0 0
  %1370 = vmatpush1.bf16.msra.mxu0 0
  %1371 = vmatprep.subr.bf16.mxu0 0
  %1372 = vmatpush1.bf16.msra.mxu0 0
  %1373 = vmatprep.subr.bf16.mxu0 0
  %1374 = vmatpush1.bf16.msra.mxu0 0
  %1375 = vmatprep.subr.bf16.mxu0 0
  %1376 = vmatpush1.bf16.msra.mxu0 0
  %1377 = vmatprep.subr.bf16.mxu0 0
  %1378 = vmatpush1.bf16.msra.mxu0 0
  %1379 = vmatprep.subr.bf16.mxu0 0
  %1380 = vmatpush1.bf16.msra.mxu0 0
  %1381 = vmatprep.subr.bf16.mxu0 0
  %1382 = vmatpush1.bf16.msra.mxu0 0
  %1383 = vmatprep.subr.bf16.mxu0 0
  %1384 = vmatpush1.bf16.msra.mxu0 0
  %1385 = vmatprep.subr.bf16.mxu0 0
  %1386 = vmatpush1.bf16.msra.mxu0 0
  %1387 = vmatprep.mubr.bf16.mxu0 0
  %1388 = vmatmul.mubr.bf16.gmra.mrb[0].mxu0 %v1353
  %v1389 = vpop.f32.mrb[0].mxu0
  %v1390 = vadd.f32 %v1339, %v1389
  %v1391 = vpop.f32.mrb[0].mxu0
  %v1392 = vpop.f32.mrb[0].mxu0
  %v1393 = vadd.f32 %v1339, %v1392
  %v1394 = vpop.f32.mrb[0].mxu0
  %1395 = vdwg.mxu0
  %s1396 = scalar_lea.vmem %s3, 112
  %v1397 = vld [vmem:[%s1396] sm:$0xf]
  %v1398 = vld [vmem:[%s1396 + $0x4] sm:$0xf]
  %v1399 = vld [vmem:[%s1396 + $0x8] sm:$0xf]
  %v1400 = vld [vmem:[%s1396 + $0xc] sm:$0xf]
  %v1401 = vld [vmem:[%s4 + $0x7] sm:$0x1]
  %v1402 = vlaneseq
  %v1403 = vshrl.u32 %v1402, 7
  %v1404 = vsub.s32 0, %v1403
  %v1405 = vrot.slane %v1401, %v1404
  %v1410 = vunpack.c.l.b16 %v1397
  %v1411 = vunpack.c.l.b16 %v1398
  %v1412 = vunpack.c.l.b16 %v1399
  %v1413 = vunpack.c.l.b16 %v1400
  %v1414 = vpack.c.b16 %v1411, %v1410
  %v1415 = vpack.c.b16 %v1413, %v1412
  %1418 = vmatprep.subr.bf16.mxu0 0
  %1419 = vmatpush1.bf16.msra.mxu0 %v1414
  %1420 = vmatprep.subr.bf16.mxu0 0
  %1421 = vmatpush1.bf16.msra.mxu0 %v1415
  %1422 = vmatprep.subr.bf16.mxu0 0
  %1423 = vmatpush1.bf16.msra.mxu0 0
  %1424 = vmatprep.subr.bf16.mxu0 0
  %1425 = vmatpush1.bf16.msra.mxu0 0
  %1426 = vmatprep.subr.bf16.mxu0 0
  %1427 = vmatpush1.bf16.msra.mxu0 0
  %1428 = vmatprep.subr.bf16.mxu0 0
  %1429 = vmatpush1.bf16.msra.mxu0 0
  %1430 = vmatprep.subr.bf16.mxu0 0
  %1431 = vmatpush1.bf16.msra.mxu0 0
  %1432 = vmatprep.subr.bf16.mxu0 0
  %1433 = vmatpush1.bf16.msra.mxu0 0
  %1434 = vmatprep.subr.bf16.mxu0 0
  %1435 = vmatpush1.bf16.msra.mxu0 0
  %1436 = vmatprep.subr.bf16.mxu0 0
  %1437 = vmatpush1.bf16.msra.mxu0 0
  %1438 = vmatprep.subr.bf16.mxu0 0
  %1439 = vmatpush1.bf16.msra.mxu0 0
  %1440 = vmatprep.subr.bf16.mxu0 0
  %1441 = vmatpush1.bf16.msra.mxu0 0
  %1442 = vmatprep.subr.bf16.mxu0 0
  %1443 = vmatpush1.bf16.msra.mxu0 0
  %1444 = vmatprep.subr.bf16.mxu0 0
  %1445 = vmatpush1.bf16.msra.mxu0 0
  %1446 = vmatprep.subr.bf16.mxu0 0
  %1447 = vmatpush1.bf16.msra.mxu0 0
  %1448 = vmatprep.subr.bf16.mxu0 0
  %1449 = vmatpush1.bf16.msra.mxu0 0
  %1450 = vmatprep.mubr.bf16.mxu0 0
  %1451 = vmatmul.mubr.bf16.gmra.mrb[0].mxu0 %v1353
  %v1452 = vpop.f32.mrb[0].mxu0
  %v1453 = vadd.f32 %v1405, %v1452
  %v1454 = vpop.f32.mrb[0].mxu0
  %v1455 = vpop.f32.mrb[0].mxu0
  %v1456 = vadd.f32 %v1405, %v1455
  %v1457 = vpop.f32.mrb[0].mxu0
  %1458 = vdwg.mxu0
  %s1459 = scalar_lea.vmem %s3, 128
  %v1460 = vld [vmem:[%s1459] sm:$0xf]
  %v1461 = vld [vmem:[%s1459 + $0x4] sm:$0xf]
  %v1462 = vld [vmem:[%s1459 + $0x8] sm:$0xf]
  %v1463 = vld [vmem:[%s1459 + $0xc] sm:$0xf]
  %v1464 = vld [vmem:[%s4 + $0x8] sm:$0x1]
  %v1465 = vlaneseq
  %v1466 = vshrl.u32 %v1465, 7
  %v1467 = vsub.s32 0, %v1466
  %v1468 = vrot.slane %v1464, %v1467
  %v1473 = vunpack.c.l.b16 %v1460
  %v1474 = vunpack.c.l.b16 %v1461
  %v1475 = vunpack.c.l.b16 %v1462
  %v1476 = vunpack.c.l.b16 %v1463
  %v1477 = vpack.c.b16 %v1474, %v1473
  %v1478 = vpack.c.b16 %v1476, %v1475
  %1481 = vmatprep.subr.bf16.mxu0 0
  %1482 = vmatpush1.bf16.msra.mxu0 %v1477
  %1483 = vmatprep.subr.bf16.mxu0 0
  %1484 = vmatpush1.bf16.msra.mxu0 %v1478
  %1485 = vmatprep.subr.bf16.mxu0 0
  %1486 = vmatpush1.bf16.msra.mxu0 0
  %1487 = vmatprep.subr.bf16.mxu0 0
  %1488 = vmatpush1.bf16.msra.mxu0 0
  %1489 = vmatprep.subr.bf16.mxu0 0
  %1490 = vmatpush1.bf16.msra.mxu0 0
  %1491 = vmatprep.subr.bf16.mxu0 0
  %1492 = vmatpush1.bf16.msra.mxu0 0
  %1493 = vmatprep.subr.bf16.mxu0 0
  %1494 = vmatpush1.bf16.msra.mxu0 0
  %1495 = vmatprep.subr.bf16.mxu0 0
  %1496 = vmatpush1.bf16.msra.mxu0 0
  %1497 = vmatprep.subr.bf16.mxu0 0
  %1498 = vmatpush1.bf16.msra.mxu0 0
  %1499 = vmatprep.subr.bf16.mxu0 0
  %1500 = vmatpush1.bf16.msra.mxu0 0
  %1501 = vmatprep.subr.bf16.mxu0 0
  %1502 = vmatpush1.bf16.msra.mxu0 0
  %1503 = vmatprep.subr.bf16.mxu0 0
  %1504 = vmatpush1.bf16.msra.mxu0 0
  %1505 = vmatprep.subr.bf16.mxu0 0
  %1506 = vmatpush1.bf16.msra.mxu0 0
  %1507 = vmatprep.subr.bf16.mxu0 0
  %1508 = vmatpush1.bf16.msra.mxu0 0
  %1509 = vmatprep.subr.bf16.mxu0 0
  %1510 = vmatpush1.bf16.msra.mxu0 0
  %1511 = vmatprep.subr.bf16.mxu0 0
  %1512 = vmatpush1.bf16.msra.mxu0 0
  %1513 = vmatprep.mubr.bf16.mxu0 0
  %1514 = vmatmul.mubr.bf16.gmra.mrb[0].mxu0 %v1353
  %v1515 = vpop.f32.mrb[0].mxu0
  %v1516 = vadd.f32 %v1468, %v1515
  %v1517 = vpop.f32.mrb[0].mxu0
  %v1518 = vpop.f32.mrb[0].mxu0
  %v1519 = vadd.f32 %v1468, %v1518
  %v1520 = vpop.f32.mrb[0].mxu0
  %1521 = vdwg.mxu0
  %v1522 = vpack.c.bf16 %v1393, %v1390
  %v1523 = vpack.c.bf16 %v1456, %v1453
  %v1525 = vsel %vm468, %v1522, 0
  %v1528 = vsel %vm468, %v1523, 0
  %1530 = vmatprep.subr.bf16.mxu0 0
  %1531 = vmatpush1.bf16.xpose.msra.mxu0 %v1528
  %1532 = vmatprep.subr.bf16.mxu0 0
  %1533 = vmatpush1.bf16.xpose.msra.mxu0 0
  %1534 = vmatprep.subr.bf16.mxu0 0
  %1535 = vmatpush1.bf16.xpose.msra.mxu0 0
  %1536 = vmatprep.subr.bf16.mxu0 0
  %1537 = vmatpush1.bf16.xpose.msra.mxu0 0
  %1538 = vmatprep.subr.bf16.mxu0 0
  %1539 = vmatpush1.bf16.xpose.msra.mxu0 0
  %1540 = vmatprep.subr.bf16.mxu0 0
  %1541 = vmatpush1.bf16.xpose.msra.mxu0 0
  %1542 = vmatprep.subr.bf16.mxu0 0
  %1543 = vmatpush1.bf16.xpose.msra.mxu0 0
  %1544 = vmatprep.subr.bf16.mxu0 0
  %1545 = vmatpush1.bf16.xpose.msra.mxu0 0
  %1546 = vmatprep.subr.bf16.mxu0 0
  %1547 = vmatpush1.bf16.xpose.msra.mxu0 0
  %1548 = vmatprep.subr.bf16.mxu0 0
  %1549 = vmatpush1.bf16.xpose.msra.mxu0 0
  %1550 = vmatprep.subr.bf16.mxu0 0
  %1551 = vmatpush1.bf16.xpose.msra.mxu0 0
  %1552 = vmatprep.subr.bf16.mxu0 0
  %1553 = vmatpush1.bf16.xpose.msra.mxu0 0
  %1554 = vmatprep.subr.bf16.mxu0 0
  %1555 = vmatpush1.bf16.xpose.msra.mxu0 0
  %1556 = vmatprep.subr.bf16.mxu0 0
  %1557 = vmatpush1.bf16.xpose.msra.mxu0 0
  %1558 = vmatprep.subr.bf16.mxu0 0
  %1559 = vmatpush1.bf16.xpose.msra.mxu0 0
  %1560 = vmatprep.subr.bf16.mxu0 0
  %1561 = vmatpush1.bf16.xpose.msra.mxu0 0
  %1562 = vmatprep.mubr.bf16.mxu0 0
  %1563 = vmatmul.mubr.bf16.gmra.mrb[0].mxu0 %v1525
  %v1564 = vpop.f32.mrb[0].mxu0
  %v1565 = vadd.f32 0.0, %v1564
  %v1566 = vpop.f32.mrb[0].mxu0
  %v1567 = vpop.f32.mrb[0].mxu0
  %v1568 = vadd.f32 0.0, %v1567
  %v1569 = vpop.f32.mrb[0].mxu0
  %1570 = vdwg.mxu0
  %v1571 = vmul.f32 %v1565, 0.25
  %v1572 = vmul.f32 %v1568, 0.25
  %v1573 = vadd.f32 %v1571, %v76
  %v1574 = vadd.f32 %v1572, %v77
  %v1575 = vsel %vm468, %v1573, -inf
  %1576 = vmax.xlane.f32.xlu0 %v1575
  %v1577 = vpop.xlane.xlu0 %1576
  %v1578 = vsel %vm468, %v1574, -inf
  %1579 = vmax.xlane.f32.xlu0 %v1578
  %v1580 = vpop.xlane.xlu0 %1579
  %v1581 = vsub.f32 %v1573, %v1577
  %v1582 = vsub.f32 %v1574, %v1580
  %v1583 = vmul.f32 %v1581, 1.442695
  %v1584 = vpow.pop %v1583
  %v1585 = vmul.f32 %v1582, 1.442695
  %v1586 = vpow.pop %v1585
  %v1587 = vsel %vm468, %v1584, 0.0
  %1588 = vadd.xlane.f32.xlu0 %v1587
  %v1589 = vpop.xlane.xlu0 %1588
  %v1590 = vsel %vm468, %v1586, 0.0
  %1591 = vadd.xlane.f32.xlu0 %v1590
  %v1592 = vpop.xlane.xlu0 %1591
  %v1593 = vrcp.pop %v1589
  %v1594 = vrcp.pop %v1592
  %v1595 = vmul.f32 %v1584, %v1593
  %v1596 = vmul.f32 %v1586, %v1594
  %v1597 = vpack.c.bf16 %v1596, %v1595
  %v1598 = vpack.c.bf16 %v1519, %v1516
  %v1600 = vsel %vm468, %v1597, 0
  %1602 = vmatprep.subr.bf16.mxu0 0
  %1603 = vmatpush1.bf16.msra.mxu0 %v1598
  %1604 = vmatprep.subr.bf16.mxu0 0
  %1605 = vmatpush1.bf16.msra.mxu0 0
  %1606 = vmatprep.subr.bf16.mxu0 0
  %1607 = vmatpush1.bf16.msra.mxu0 0
  %1608 = vmatprep.subr.bf16.mxu0 0
  %1609 = vmatpush1.bf16.msra.mxu0 0
  %1610 = vmatprep.subr.bf16.mxu0 0
  %1611 = vmatpush1.bf16.msra.mxu0 0
  %1612 = vmatprep.subr.bf16.mxu0 0
  %1613 = vmatpush1.bf16.msra.mxu0 0
  %1614 = vmatprep.subr.bf16.mxu0 0
  %1615 = vmatpush1.bf16.msra.mxu0 0
  %1616 = vmatprep.subr.bf16.mxu0 0
  %1617 = vmatpush1.bf16.msra.mxu0 0
  %1618 = vmatprep.subr.bf16.mxu0 0
  %1619 = vmatpush1.bf16.msra.mxu0 0
  %1620 = vmatprep.subr.bf16.mxu0 0
  %1621 = vmatpush1.bf16.msra.mxu0 0
  %1622 = vmatprep.subr.bf16.mxu0 0
  %1623 = vmatpush1.bf16.msra.mxu0 0
  %1624 = vmatprep.subr.bf16.mxu0 0
  %1625 = vmatpush1.bf16.msra.mxu0 0
  %1626 = vmatprep.subr.bf16.mxu0 0
  %1627 = vmatpush1.bf16.msra.mxu0 0
  %1628 = vmatprep.subr.bf16.mxu0 0
  %1629 = vmatpush1.bf16.msra.mxu0 0
  %1630 = vmatprep.subr.bf16.mxu0 0
  %1631 = vmatpush1.bf16.msra.mxu0 0
  %1632 = vmatprep.subr.bf16.mxu0 0
  %1633 = vmatpush1.bf16.msra.mxu0 0
  %1634 = vmatprep.mubr.bf16.mxu0 0
  %1635 = vmatmul.mubr.bf16.gmra.mrb[0].mxu0 %v1600
  %v1636 = vpop.f32.mrb[0].mxu0
  %v1637 = vadd.f32 0.0, %v1636
  %v1638 = vpop.f32.mrb[0].mxu0
  %v1639 = vpop.f32.mrb[0].mxu0
  %v1640 = vadd.f32 0.0, %v1639
  %v1641 = vpop.f32.mrb[0].mxu0
  %1642 = vdwg.mxu0
  %v1643 = vpack.c.bf16 %v1640, %v1637
  %s1644 = scalar_lea.vmem %s5, 16
  %v1645 = vld [vmem:[%s1644] sm:$0xf]
  %v1646 = vld [vmem:[%s1644 + $0x4] sm:$0xf]
  %s1647 = scalar_lea.vmem %s3, 144
  %v1648 = vld [vmem:[%s1647] sm:$0xf]
  %v1649 = vld [vmem:[%s1647 + $0x4] sm:$0xf]
  %v1650 = vld [vmem:[%s1647 + $0x8] sm:$0xf]
  %v1651 = vld [vmem:[%s1647 + $0xc] sm:$0xf]
  %v1652 = vld [vmem:[%s4 + $0x9] sm:$0x1]
  %v1653 = vlaneseq
  %v1654 = vshrl.u32 %v1653, 7
  %v1655 = vsub.s32 0, %v1654
  %v1656 = vrot.slane %v1652, %v1655
  %v1661 = vunpack.c.l.b16 %v1648
  %v1662 = vunpack.c.l.b16 %v1649
  %v1663 = vunpack.c.l.b16 %v1650
  %v1664 = vunpack.c.l.b16 %v1651
  %v1665 = vpack.c.b16 %v1662, %v1661
  %v1666 = vpack.c.b16 %v1664, %v1663
  %1669 = vmatprep.subr.bf16.mxu0 0
  %1670 = vmatpush1.bf16.msra.mxu0 %v1665
  %1671 = vmatprep.subr.bf16.mxu0 0
  %1672 = vmatpush1.bf16.msra.mxu0 %v1666
  %1673 = vmatprep.subr.bf16.mxu0 0
  %1674 = vmatpush1.bf16.msra.mxu0 0
  %1675 = vmatprep.subr.bf16.mxu0 0
  %1676 = vmatpush1.bf16.msra.mxu0 0
  %1677 = vmatprep.subr.bf16.mxu0 0
  %1678 = vmatpush1.bf16.msra.mxu0 0
  %1679 = vmatprep.subr.bf16.mxu0 0
  %1680 = vmatpush1.bf16.msra.mxu0 0
  %1681 = vmatprep.subr.bf16.mxu0 0
  %1682 = vmatpush1.bf16.msra.mxu0 0
  %1683 = vmatprep.subr.bf16.mxu0 0
  %1684 = vmatpush1.bf16.msra.mxu0 0
  %1685 = vmatprep.subr.bf16.mxu0 0
  %1686 = vmatpush1.bf16.msra.mxu0 0
  %1687 = vmatprep.subr.bf16.mxu0 0
  %1688 = vmatpush1.bf16.msra.mxu0 0
  %1689 = vmatprep.subr.bf16.mxu0 0
  %1690 = vmatpush1.bf16.msra.mxu0 0
  %1691 = vmatprep.subr.bf16.mxu0 0
  %1692 = vmatpush1.bf16.msra.mxu0 0
  %1693 = vmatprep.subr.bf16.mxu0 0
  %1694 = vmatpush1.bf16.msra.mxu0 0
  %1695 = vmatprep.subr.bf16.mxu0 0
  %1696 = vmatpush1.bf16.msra.mxu0 0
  %1697 = vmatprep.subr.bf16.mxu0 0
  %1698 = vmatpush1.bf16.msra.mxu0 0
  %1699 = vmatprep.subr.bf16.mxu0 0
  %1700 = vmatpush1.bf16.msra.mxu0 0
  %1701 = vmatprep.mubr.bf16.mxu0 0
  %1702 = vmatmul.mubr.bf16.gmra.mrb[0].mxu0 %v1353
  %v1703 = vpop.f32.mrb[0].mxu0
  %v1704 = vadd.f32 %v1656, %v1703
  %v1705 = vpop.f32.mrb[0].mxu0
  %v1706 = vpop.f32.mrb[0].mxu0
  %v1707 = vadd.f32 %v1656, %v1706
  %v1708 = vpop.f32.mrb[0].mxu0
  %1709 = vdwg.mxu0
  %s1710 = scalar_lea.vmem %s3, 160
  %v1711 = vld [vmem:[%s1710] sm:$0xf]
  %v1712 = vld [vmem:[%s1710 + $0x4] sm:$0xf]
  %v1713 = vld [vmem:[%s1710 + $0x8] sm:$0xf]
  %v1714 = vld [vmem:[%s1710 + $0xc] sm:$0xf]
  %v1715 = vld [vmem:[%s4 + $0xa] sm:$0x1]
  %v1716 = vlaneseq
  %v1717 = vshrl.u32 %v1716, 7
  %v1718 = vsub.s32 0, %v1717
  %v1719 = vrot.slane %v1715, %v1718
  %v1724 = vunpack.c.l.b16 %v1711
  %v1725 = vunpack.c.l.b16 %v1712
  %v1726 = vunpack.c.l.b16 %v1713
  %v1727 = vunpack.c.l.b16 %v1714
  %v1728 = vpack.c.b16 %v1725, %v1724
  %v1729 = vpack.c.b16 %v1727, %v1726
  %1732 = vmatprep.subr.bf16.mxu0 0
  %1733 = vmatpush1.bf16.msra.mxu0 %v1728
  %1734 = vmatprep.subr.bf16.mxu0 0
  %1735 = vmatpush1.bf16.msra.mxu0 %v1729
  %1736 = vmatprep.subr.bf16.mxu0 0
  %1737 = vmatpush1.bf16.msra.mxu0 0
  %1738 = vmatprep.subr.bf16.mxu0 0
  %1739 = vmatpush1.bf16.msra.mxu0 0
  %1740 = vmatprep.subr.bf16.mxu0 0
  %1741 = vmatpush1.bf16.msra.mxu0 0
  %1742 = vmatprep.subr.bf16.mxu0 0
  %1743 = vmatpush1.bf16.msra.mxu0 0
  %1744 = vmatprep.subr.bf16.mxu0 0
  %1745 = vmatpush1.bf16.msra.mxu0 0
  %1746 = vmatprep.subr.bf16.mxu0 0
  %1747 = vmatpush1.bf16.msra.mxu0 0
  %1748 = vmatprep.subr.bf16.mxu0 0
  %1749 = vmatpush1.bf16.msra.mxu0 0
  %1750 = vmatprep.subr.bf16.mxu0 0
  %1751 = vmatpush1.bf16.msra.mxu0 0
  %1752 = vmatprep.subr.bf16.mxu0 0
  %1753 = vmatpush1.bf16.msra.mxu0 0
  %1754 = vmatprep.subr.bf16.mxu0 0
  %1755 = vmatpush1.bf16.msra.mxu0 0
  %1756 = vmatprep.subr.bf16.mxu0 0
  %1757 = vmatpush1.bf16.msra.mxu0 0
  %1758 = vmatprep.subr.bf16.mxu0 0
  %1759 = vmatpush1.bf16.msra.mxu0 0
  %1760 = vmatprep.subr.bf16.mxu0 0
  %1761 = vmatpush1.bf16.msra.mxu0 0
  %1762 = vmatprep.subr.bf16.mxu0 0
  %1763 = vmatpush1.bf16.msra.mxu0 0
  %1764 = vmatprep.mubr.bf16.mxu0 0
  %1765 = vmatmul.mubr.bf16.gmra.mrb[0].mxu0 %v1353
  %v1766 = vpop.f32.mrb[0].mxu0
  %v1767 = vadd.f32 %v1719, %v1766
  %v1768 = vpop.f32.mrb[0].mxu0
  %v1769 = vpop.f32.mrb[0].mxu0
  %v1770 = vadd.f32 %v1719, %v1769
  %v1771 = vpop.f32.mrb[0].mxu0
  %1772 = vdwg.mxu0
  %s1773 = scalar_lea.vmem %s3, 176
  %v1774 = vld [vmem:[%s1773] sm:$0xf]
  %v1775 = vld [vmem:[%s1773 + $0x4] sm:$0xf]
  %v1776 = vld [vmem:[%s1773 + $0x8] sm:$0xf]
  %v1777 = vld [vmem:[%s1773 + $0xc] sm:$0xf]
  %v1778 = vld [vmem:[%s4 + $0xb] sm:$0x1]
  %v1779 = vlaneseq
  %v1780 = vshrl.u32 %v1779, 7
  %v1781 = vsub.s32 0, %v1780
  %v1782 = vrot.slane %v1778, %v1781
  %v1787 = vunpack.c.l.b16 %v1774
  %v1788 = vunpack.c.l.b16 %v1775
  %v1789 = vunpack.c.l.b16 %v1776
  %v1790 = vunpack.c.l.b16 %v1777
  %v1791 = vpack.c.b16 %v1788, %v1787
  %v1792 = vpack.c.b16 %v1790, %v1789
  %1795 = vmatprep.subr.bf16.mxu0 0
  %1796 = vmatpush1.bf16.msra.mxu0 %v1791
  %1797 = vmatprep.subr.bf16.mxu0 0
  %1798 = vmatpush1.bf16.msra.mxu0 %v1792
  %1799 = vmatprep.subr.bf16.mxu0 0
  %1800 = vmatpush1.bf16.msra.mxu0 0
  %1801 = vmatprep.subr.bf16.mxu0 0
  %1802 = vmatpush1.bf16.msra.mxu0 0
  %1803 = vmatprep.subr.bf16.mxu0 0
  %1804 = vmatpush1.bf16.msra.mxu0 0
  %1805 = vmatprep.subr.bf16.mxu0 0
  %1806 = vmatpush1.bf16.msra.mxu0 0
  %1807 = vmatprep.subr.bf16.mxu0 0
  %1808 = vmatpush1.bf16.msra.mxu0 0
  %1809 = vmatprep.subr.bf16.mxu0 0
  %1810 = vmatpush1.bf16.msra.mxu0 0
  %1811 = vmatprep.subr.bf16.mxu0 0
  %1812 = vmatpush1.bf16.msra.mxu0 0
  %1813 = vmatprep.subr.bf16.mxu0 0
  %1814 = vmatpush1.bf16.msra.mxu0 0
  %1815 = vmatprep.subr.bf16.mxu0 0
  %1816 = vmatpush1.bf16.msra.mxu0 0
  %1817 = vmatprep.subr.bf16.mxu0 0
  %1818 = vmatpush1.bf16.msra.mxu0 0
  %1819 = vmatprep.subr.bf16.mxu0 0
  %1820 = vmatpush1.bf16.msra.mxu0 0
  %1821 = vmatprep.subr.bf16.mxu0 0
  %1822 = vmatpush1.bf16.msra.mxu0 0
  %1823 = vmatprep.subr.bf16.mxu0 0
  %1824 = vmatpush1.bf16.msra.mxu0 0
  %1825 = vmatprep.subr.bf16.mxu0 0
  %1826 = vmatpush1.bf16.msra.mxu0 0
  %1827 = vmatprep.mubr.bf16.mxu0 0
  %1828 = vmatmul.mubr.bf16.gmra.mrb[0].mxu0 %v1353
  %v1829 = vpop.f32.mrb[0].mxu0
  %v1830 = vadd.f32 %v1782, %v1829
  %v1831 = vpop.f32.mrb[0].mxu0
  %v1832 = vpop.f32.mrb[0].mxu0
  %v1833 = vadd.f32 %v1782, %v1832
  %v1834 = vpop.f32.mrb[0].mxu0
  %1835 = vdwg.mxu0
  %v1836 = vpack.c.bf16 %v1707, %v1704
  %v1837 = vpack.c.bf16 %v1770, %v1767
  %v1839 = vsel %vm468, %v1836, 0
  %v1842 = vsel %vm468, %v1837, 0
  %1844 = vmatprep.subr.bf16.mxu0 0
  %1845 = vmatpush1.bf16.xpose.msra.mxu0 %v1842
  %1846 = vmatprep.subr.bf16.mxu0 0
  %1847 = vmatpush1.bf16.xpose.msra.mxu0 0
  %1848 = vmatprep.subr.bf16.mxu0 0
  %1849 = vmatpush1.bf16.xpose.msra.mxu0 0
  %1850 = vmatprep.subr.bf16.mxu0 0
  %1851 = vmatpush1.bf16.xpose.msra.mxu0 0
  %1852 = vmatprep.subr.bf16.mxu0 0
  %1853 = vmatpush1.bf16.xpose.msra.mxu0 0
  %1854 = vmatprep.subr.bf16.mxu0 0
  %1855 = vmatpush1.bf16.xpose.msra.mxu0 0
  %1856 = vmatprep.subr.bf16.mxu0 0
  %1857 = vmatpush1.bf16.xpose.msra.mxu0 0
  %1858 = vmatprep.subr.bf16.mxu0 0
  %1859 = vmatpush1.bf16.xpose.msra.mxu0 0
  %1860 = vmatprep.subr.bf16.mxu0 0
  %1861 = vmatpush1.bf16.xpose.msra.mxu0 0
  %1862 = vmatprep.subr.bf16.mxu0 0
  %1863 = vmatpush1.bf16.xpose.msra.mxu0 0
  %1864 = vmatprep.subr.bf16.mxu0 0
  %1865 = vmatpush1.bf16.xpose.msra.mxu0 0
  %1866 = vmatprep.subr.bf16.mxu0 0
  %1867 = vmatpush1.bf16.xpose.msra.mxu0 0
  %1868 = vmatprep.subr.bf16.mxu0 0
  %1869 = vmatpush1.bf16.xpose.msra.mxu0 0
  %1870 = vmatprep.subr.bf16.mxu0 0
  %1871 = vmatpush1.bf16.xpose.msra.mxu0 0
  %1872 = vmatprep.subr.bf16.mxu0 0
  %1873 = vmatpush1.bf16.xpose.msra.mxu0 0
  %1874 = vmatprep.subr.bf16.mxu0 0
  %1875 = vmatpush1.bf16.xpose.msra.mxu0 0
  %1876 = vmatprep.mubr.bf16.mxu0 0
  %1877 = vmatmul.mubr.bf16.gmra.mrb[0].mxu0 %v1839
  %v1878 = vpop.f32.mrb[0].mxu0
  %v1879 = vadd.f32 0.0, %v1878
  %v1880 = vpop.f32.mrb[0].mxu0
  %v1881 = vpop.f32.mrb[0].mxu0
  %v1882 = vadd.f32 0.0, %v1881
  %v1883 = vpop.f32.mrb[0].mxu0
  %1884 = vdwg.mxu0
  %v1885 = vmul.f32 %v1879, 0.25
  %v1886 = vmul.f32 %v1882, 0.25
  %v1887 = vadd.f32 %v1885, %v76
  %v1888 = vadd.f32 %v1886, %v77
  %v1889 = vsel %vm468, %v1887, -inf
  %1890 = vmax.xlane.f32.xlu0 %v1889
  %v1891 = vpop.xlane.xlu0 %1890
  %v1892 = vsel %vm468, %v1888, -inf
  %1893 = vmax.xlane.f32.xlu0 %v1892
  %v1894 = vpop.xlane.xlu0 %1893
  %v1895 = vsub.f32 %v1887, %v1891
  %v1896 = vsub.f32 %v1888, %v1894
  %v1897 = vmul.f32 %v1895, 1.442695
  %v1898 = vpow.pop %v1897
  %v1899 = vmul.f32 %v1896, 1.442695
  %v1900 = vpow.pop %v1899
  %v1901 = vsel %vm468, %v1898, 0.0
  %1902 = vadd.xlane.f32.xlu0 %v1901
  %v1903 = vpop.xlane.xlu0 %1902
  %v1904 = vsel %vm468, %v1900, 0.0
  %1905 = vadd.xlane.f32.xlu0 %v1904
  %v1906 = vpop.xlane.xlu0 %1905
  %v1907 = vrcp.pop %v1903
  %v1908 = vrcp.pop %v1906
  %v1909 = vmul.f32 %v1898, %v1907
  %v1910 = vmul.f32 %v1900, %v1908
  %v1911 = vpack.c.bf16 %v1910, %v1909
  %v1912 = vpack.c.bf16 %v1833, %v1830
  %v1914 = vsel %vm468, %v1911, 0
  %1916 = vmatprep.subr.bf16.mxu0 0
  %1917 = vmatpush1.bf16.msra.mxu0 %v1912
  %1918 = vmatprep.subr.bf16.mxu0 0
  %1919 = vmatpush1.bf16.msra.mxu0 0
  %1920 = vmatprep.subr.bf16.mxu0 0
  %1921 = vmatpush1.bf16.msra.mxu0 0
  %1922 = vmatprep.subr.bf16.mxu0 0
  %1923 = vmatpush1.bf16.msra.mxu0 0
  %1924 = vmatprep.subr.bf16.mxu0 0
  %1925 = vmatpush1.bf16.msra.mxu0 0
  %1926 = vmatprep.subr.bf16.mxu0 0
  %1927 = vmatpush1.bf16.msra.mxu0 0
  %1928 = vmatprep.subr.bf16.mxu0 0
  %1929 = vmatpush1.bf16.msra.mxu0 0
  %1930 = vmatprep.subr.bf16.mxu0 0
  %1931 = vmatpush1.bf16.msra.mxu0 0
  %1932 = vmatprep.subr.bf16.mxu0 0
  %1933 = vmatpush1.bf16.msra.mxu0 0
  %1934 = vmatprep.subr.bf16.mxu0 0
  %1935 = vmatpush1.bf16.msra.mxu0 0
  %1936 = vmatprep.subr.bf16.mxu0 0
  %1937 = vmatpush1.bf16.msra.mxu0 0
  %1938 = vmatprep.subr.bf16.mxu0 0
  %1939 = vmatpush1.bf16.msra.mxu0 0
  %1940 = vmatprep.subr.bf16.mxu0 0
  %1941 = vmatpush1.bf16.msra.mxu0 0
  %1942 = vmatprep.subr.bf16.mxu0 0
  %1943 = vmatpush1.bf16.msra.mxu0 0
  %1944 = vmatprep.subr.bf16.mxu0 0
  %1945 = vmatpush1.bf16.msra.mxu0 0
  %1946 = vmatprep.subr.bf16.mxu0 0
  %1947 = vmatpush1.bf16.msra.mxu0 0
  %1948 = vmatprep.mubr.bf16.mxu0 0
  %1949 = vmatmul.mubr.bf16.gmra.mrb[0].mxu0 %v1914
  %v1950 = vpop.f32.mrb[0].mxu0
  %v1951 = vadd.f32 0.0, %v1950
  %v1952 = vpop.f32.mrb[0].mxu0
  %v1953 = vpop.f32.mrb[0].mxu0
  %v1954 = vadd.f32 0.0, %v1953
  %v1955 = vpop.f32.mrb[0].mxu0
  %1956 = vdwg.mxu0
  %v1957 = vpack.c.bf16 %v1954, %v1951
  %s1958 = scalar_lea.vmem %s5, 24
  %v1959 = vld [vmem:[%s1958] sm:$0xf]
  %v1960 = vld [vmem:[%s1958 + $0x4] sm:$0xf]
  %v1963 = vunpack.c.l.b16 %v1959
  %v1964 = vunpack.c.l.b16 %v1960
  %v1965 = vpack.c.b16 %v1964, %v1963
  %v1968 = vsel %vm468, %v1957, 0
  %1970 = vmatprep.subr.bf16.mxu0 0
  %1971 = vmatpush1.bf16.msra.mxu0 %v1965
  %1972 = vmatprep.subr.bf16.mxu0 0
  %1973 = vmatpush1.bf16.msra.mxu0 0
  %1974 = vmatprep.subr.bf16.mxu0 0
  %1975 = vmatpush1.bf16.msra.mxu0 0
  %1976 = vmatprep.subr.bf16.mxu0 0
  %1977 = vmatpush1.bf16.msra.mxu0 0
  %1978 = vmatprep.subr.bf16.mxu0 0
  %1979 = vmatpush1.bf16.msra.mxu0 0
  %1980 = vmatprep.subr.bf16.mxu0 0
  %1981 = vmatpush1.bf16.msra.mxu0 0
  %1982 = vmatprep.subr.bf16.mxu0 0
  %1983 = vmatpush1.bf16.msra.mxu0 0
  %1984 = vmatprep.subr.bf16.mxu0 0
  %1985 = vmatpush1.bf16.msra.mxu0 0
  %1986 = vmatprep.subr.bf16.mxu0 0
  %1987 = vmatpush1.bf16.msra.mxu0 0
  %1988 = vmatprep.subr.bf16.mxu0 0
  %1989 = vmatpush1.bf16.msra.mxu0 0
  %1990 = vmatprep.subr.bf16.mxu0 0
  %1991 = vmatpush1.bf16.msra.mxu0 0
  %1992 = vmatprep.subr.bf16.mxu0 0
  %1993 = vmatpush1.bf16.msra.mxu0 0
  %1994 = vmatprep.subr.bf16.mxu0 0
  %1995 = vmatpush1.bf16.msra.mxu0 0
  %1996 = vmatprep.subr.bf16.mxu0 0
  %1997 = vmatpush1.bf16.msra.mxu0 0
  %1998 = vmatprep.subr.bf16.mxu0 0
  %1999 = vmatpush1.bf16.msra.mxu0 0
  %2000 = vmatprep.subr.bf16.mxu0 0
  %2001 = vmatpush1.bf16.msra.mxu0 0
  %2002 = vmatprep.mubr.bf16.mxu0 0
  %2003 = vmatmul.mubr.bf16.gmra.mrb[0].mxu0 %v1968
  %v2004 = vpop.f32.mrb[0].mxu0
  %v2005 = vadd.f32 0.0, %v2004
  %v2006 = vpop.f32.mrb[0].mxu0
  %v2007 = vpop.f32.mrb[0].mxu0
  %v2008 = vadd.f32 0.0, %v2007
  %v2009 = vpop.f32.mrb[0].mxu0
  %2010 = vdwg.mxu0
  %v2013 = vunpack.c.l.b16 %v1645
  %v2014 = vunpack.c.l.b16 %v1646
  %v2015 = vpack.c.b16 %v2014, %v2013
  %v2018 = vsel %vm468, %v1643, 0
  %2020 = vmatprep.subr.bf16.mxu0 0
  %2021 = vmatpush1.bf16.msra.mxu0 %v2015
  %2022 = vmatprep.subr.bf16.mxu0 0
  %2023 = vmatpush1.bf16.msra.mxu0 0
  %2024 = vmatprep.subr.bf16.mxu0 0
  %2025 = vmatpush1.bf16.msra.mxu0 0
  %2026 = vmatprep.subr.bf16.mxu0 0
  %2027 = vmatpush1.bf16.msra.mxu0 0
  %2028 = vmatprep.subr.bf16.mxu0 0
  %2029 = vmatpush1.bf16.msra.mxu0 0
  %2030 = vmatprep.subr.bf16.mxu0 0
  %2031 = vmatpush1.bf16.msra.mxu0 0
  %2032 = vmatprep.subr.bf16.mxu0 0
  %2033 = vmatpush1.bf16.msra.mxu0 0
  %2034 = vmatprep.subr.bf16.mxu0 0
  %2035 = vmatpush1.bf16.msra.mxu0 0
  %2036 = vmatprep.subr.bf16.mxu0 0
  %2037 = vmatpush1.bf16.msra.mxu0 0
  %2038 = vmatprep.subr.bf16.mxu0 0
  %2039 = vmatpush1.bf16.msra.mxu0 0
  %2040 = vmatprep.subr.bf16.mxu0 0
  %2041 = vmatpush1.bf16.msra.mxu0 0
  %2042 = vmatprep.subr.bf16.mxu0 0
  %2043 = vmatpush1.bf16.msra.mxu0 0
  %2044 = vmatprep.subr.bf16.mxu0 0
  %2045 = vmatpush1.bf16.msra.mxu0 0
  %2046 = vmatprep.subr.bf16.mxu0 0
  %2047 = vmatpush1.bf16.msra.mxu0 0
  %2048 = vmatprep.subr.bf16.mxu0 0
  %2049 = vmatpush1.bf16.msra.mxu0 0
  %2050 = vmatprep.subr.bf16.mxu0 0
  %2051 = vmatpush1.bf16.msra.mxu0 0
  %2052 = vmatprep.mubr.bf16.mxu0 0
  %2053 = vmatmul.mubr.bf16.gmra.mrb[0].mxu0 %v2018
  %v2054 = vpop.f32.mrb[0].mxu0
  %v2055 = vadd.f32 %v2005, %v2054
  %v2056 = vpop.f32.mrb[0].mxu0
  %v2057 = vpop.f32.mrb[0].mxu0
  %v2058 = vadd.f32 %v2008, %v2057
  %v2059 = vpop.f32.mrb[0].mxu0
  %2060 = vdwg.mxu0
  %v2061 = vadd.f32 %v1287, %v2055
  %v2062 = vadd.f32 %v1288, %v2058
  %v2063 = vld [vmem:[%s10 + $0x2] sm:$0x1]
  %v2064 = vlaneseq
  %v2065 = vshrl.u32 %v2064, 7
  %v2066 = vsub.s32 0, %v2065
  %v2067 = vrot.slane %v2063, %v2066
  %v2068 = vadd.f32 %v2061, %v2067
  %v2069 = vadd.f32 %v2062, %v2067
  %v2070 = vld [vmem:[%s9 + $0x6] sm:$0x1]
  %v2071 = vld [vmem:[%s9 + $0x7] sm:$0x1]
  %v2072 = vsel %vm234, %v2068, 0.0
  %2073 = vadd.xlane.f32.xlu0 %v2072
  %v2074 = vpop.xlane.xlu0 %2073
  %v2075 = vsel %vm234, %v2069, 0.0
  %2076 = vadd.xlane.f32.xlu0 %v2075
  %v2077 = vpop.xlane.xlu0 %2076
  %v2078 = vmul.f32 %v2074, %v241
  %v2079 = vmul.f32 %v2077, %v241
  %v2080 = vsub.f32 %v2068, %v2078
  %v2081 = vsub.f32 %v2069, %v2079
  %v2082 = vmul.f32 %v2080, %v2080
  %v2083 = vmul.f32 %v2081, %v2081
  %v2084 = vsel %vm234, %v2082, 0.0
  %2085 = vadd.xlane.f32.xlu0 %v2084
  %v2086 = vpop.xlane.xlu0 %2085
  %v2087 = vsel %vm234, %v2083, 0.0
  %2088 = vadd.xlane.f32.xlu0 %v2087
  %v2089 = vpop.xlane.xlu0 %2088
  %v2090 = vmul.f32 %v2086, %v241
  %v2091 = vmul.f32 %v2089, %v241
  %v2092 = vadd.f32 %v2090, 1e-12
  %v2093 = vadd.f32 %v2091, 1e-12
  %v2094 = vrsqrt.pop %v2092
  %v2095 = vrsqrt.pop %v2093
  %v2096 = vmul.f32 %v2080, %v2094
  %v2097 = vmul.f32 %v2081, %v2095
  %v2098 = vlaneseq
  %v2099 = vshrl.u32 %v2098, 7
  %v2100 = vsub.s32 0, %v2099
  %v2101 = vrot.slane %v2070, %v2100
  %v2102 = vmul.f32 %v2096, %v2101
  %v2103 = vmul.f32 %v2097, %v2101
  %v2104 = vlaneseq
  %v2105 = vshrl.u32 %v2104, 7
  %v2106 = vsub.s32 0, %v2105
  %v2107 = vrot.slane %v2071, %v2106
  %v2108 = vadd.f32 %v2102, %v2107
  %v2109 = vadd.f32 %v2103, %v2107
  %v2110 = vpack.c.bf16 %v2109, %v2108
  %s2111 = scalar_lea.vmem %s6, 16
  %v2112 = vld [vmem:[%s2111] sm:$0xf]
  %v2113 = vld [vmem:[%s2111 + $0x4] sm:$0xf]
  %v2114 = vld [vmem:[%s2111 + $0x8] sm:$0xf]
  %v2115 = vld [vmem:[%s2111 + $0xc] sm:$0xf]
  %v2116 = vld [vmem:[%s7 + $0x1] sm:$0x1]
  %v2117 = vlaneseq
  %v2118 = vshrl.u32 %v2117, 7
  %v2119 = vsub.s32 0, %v2118
  %v2120 = vrot.slane %v2116, %v2119
  %v2125 = vunpack.c.l.b16 %v2112
  %v2126 = vunpack.c.l.b16 %v2113
  %v2127 = vunpack.c.l.b16 %v2114
  %v2128 = vunpack.c.l.b16 %v2115
  %v2129 = vpack.c.b16 %v2126, %v2125
  %v2130 = vpack.c.b16 %v2128, %v2127
  %v2134 = vsel %vm234, %v2110, 0
  %2136 = vmatprep.subr.bf16.mxu0 0
  %2137 = vmatpush1.bf16.msra.mxu0 %v2129
  %2138 = vmatprep.subr.bf16.mxu0 0
  %2139 = vmatpush1.bf16.msra.mxu0 %v2130
  %2140 = vmatprep.subr.bf16.mxu0 0
  %2141 = vmatpush1.bf16.msra.mxu0 0
  %2142 = vmatprep.subr.bf16.mxu0 0
  %2143 = vmatpush1.bf16.msra.mxu0 0
  %2144 = vmatprep.subr.bf16.mxu0 0
  %2145 = vmatpush1.bf16.msra.mxu0 0
  %2146 = vmatprep.subr.bf16.mxu0 0
  %2147 = vmatpush1.bf16.msra.mxu0 0
  %2148 = vmatprep.subr.bf16.mxu0 0
  %2149 = vmatpush1.bf16.msra.mxu0 0
  %2150 = vmatprep.subr.bf16.mxu0 0
  %2151 = vmatpush1.bf16.msra.mxu0 0
  %2152 = vmatprep.subr.bf16.mxu0 0
  %2153 = vmatpush1.bf16.msra.mxu0 0
  %2154 = vmatprep.subr.bf16.mxu0 0
  %2155 = vmatpush1.bf16.msra.mxu0 0
  %2156 = vmatprep.subr.bf16.mxu0 0
  %2157 = vmatpush1.bf16.msra.mxu0 0
  %2158 = vmatprep.subr.bf16.mxu0 0
  %2159 = vmatpush1.bf16.msra.mxu0 0
  %2160 = vmatprep.subr.bf16.mxu0 0
  %2161 = vmatpush1.bf16.msra.mxu0 0
  %2162 = vmatprep.subr.bf16.mxu0 0
  %2163 = vmatpush1.bf16.msra.mxu0 0
  %2164 = vmatprep.subr.bf16.mxu0 0
  %2165 = vmatpush1.bf16.msra.mxu0 0
  %2166 = vmatprep.subr.bf16.mxu0 0
  %2167 = vmatpush1.bf16.msra.mxu0 0
  %2168 = vmatprep.mubr.bf16.mxu0 0
  %2169 = vmatmul.mubr.bf16.gmra.mrb[0].mxu0 %v2134
  %v2170 = vpop.f32.mrb[0].mxu0
  %v2171 = vadd.f32 %v2120, %v2170
  %v2172 = vpop.f32.mrb[0].mxu0
  %v2173 = vpop.f32.mrb[0].mxu0
  %v2174 = vadd.f32 %v2120, %v2173
  %v2175 = vpop.f32.mrb[0].mxu0
  %2176 = vdwg.mxu0
  %v2177 = vmul.f32 %v2171, 0.5
  %v2178 = vmul.f32 %v2174, 0.5
  %v2179 = vmul.f32 %v2171, 0.70710677
  %v2180 = vmul.f32 %v2174, 0.70710677
  %v2181 = vand.u32 2147483647, %v2179
  %v2182 = vand.u32 2147483647, %v2180
  %v2183 = vmul.f32 %v2181, 0.3275911
  %v2184 = vmul.f32 %v2182, 0.3275911
  %v2185 = vadd.f32 %v2183, 1.0
  %v2186 = vadd.f32 %v2184, 1.0
  %v2187 = vrcp.pop %v2185
  %v2188 = vmul.f32 1.0, %v2187
  %v2189 = vrcp.pop %v2186
  %v2190 = vmul.f32 1.0, %v2189
  %v2191 = vmul.f32 %v2188, 1.0614054
  %v2192 = vmul.f32 %v2190, 1.0614054
  %v2193 = vadd.f32 %v2191, -1.4531521
  %v2194 = vadd.f32 %v2192, -1.4531521
  %v2195 = vmul.f32 %v2193, %v2188
  %v2196 = vmul.f32 %v2194, %v2190
  %v2197 = vadd.f32 %v2195, 1.4214138
  %v2198 = vadd.f32 %v2196, 1.4214138
  %v2199 = vmul.f32 %v2197, %v2188
  %v2200 = vmul.f32 %v2198, %v2190
  %v2201 = vadd.f32 %v2199, -0.28449672
  %v2202 = vadd.f32 %v2200, -0.28449672
  %v2203 = vmul.f32 %v2201, %v2188
  %v2204 = vmul.f32 %v2202, %v2190
  %v2205 = vadd.f32 %v2203, 0.2548296
  %v2206 = vadd.f32 %v2204, 0.2548296
  %v2207 = vmul.f32 %v2205, %v2188
  %v2208 = vmul.f32 %v2206, %v2190
  %v2209 = vmul.f32 %v2181, %v2181
  %v2210 = vmul.f32 %v2182, %v2182
  %v2211 = vsub.f32 0.0, %v2209
  %v2212 = vsub.f32 0.0, %v2210
  %v2213 = vmul.f32 %v2211, 1.442695
  %v2214 = vpow.pop %v2213
  %v2215 = vmul.f32 %v2212, 1.442695
  %v2216 = vpow.pop %v2215
  %v2217 = vmul.f32 %v2207, %v2214
  %v2218 = vmul.f32 %v2208, %v2216
  %v2219 = vsub.f32 1.0, %v2217
  %v2220 = vsub.f32 1.0, %v2218
  %vm2221 = vcmp.ge.f32.partialorder %v2179, 0.0
  %vm2222 = vcmp.ge.f32.partialorder %v2180, 0.0
  %v2223 = vsub.f32 0.0, %v2219
  %v2224 = vsub.f32 0.0, %v2220
  %v2225 = vsel %vm2221, %v2219, %v2223
  %v2226 = vsel %vm2222, %v2220, %v2224
  %v2227 = vadd.f32 %v2225, 1.0
  %v2228 = vadd.f32 %v2226, 1.0
  %v2229 = vmul.f32 %v2177, %v2227
  %v2230 = vmul.f32 %v2178, %v2228
  %v2231 = vpack.c.bf16 %v2230, %v2229
  %s2232 = scalar_lea.vmem %s8, 64
  %v2233 = vld [vmem:[%s2232] sm:$0xf]
  %v2234 = vld [vmem:[%s2232 + $0x4] sm:$0xf]
  %v2235 = vld [vmem:[%s2232 + $0x8] sm:$0xf]
  %v2236 = vld [vmem:[%s2232 + $0xc] sm:$0xf]
  %v2237 = vld [vmem:[%s2232 + $0x10] sm:$0xf]
  %v2238 = vld [vmem:[%s2232 + $0x14] sm:$0xf]
  %v2239 = vld [vmem:[%s2232 + $0x18] sm:$0xf]
  %v2240 = vld [vmem:[%s2232 + $0x1c] sm:$0xf]
  %v2241 = vld [vmem:[%s2232 + $0x20] sm:$0xf]
  %v2242 = vld [vmem:[%s2232 + $0x24] sm:$0xf]
  %v2243 = vld [vmem:[%s2232 + $0x28] sm:$0xf]
  %v2244 = vld [vmem:[%s2232 + $0x2c] sm:$0xf]
  %v2245 = vld [vmem:[%s2232 + $0x30] sm:$0xf]
  %v2246 = vld [vmem:[%s2232 + $0x34] sm:$0xf]
  %v2247 = vld [vmem:[%s2232 + $0x38] sm:$0xf]
  %v2248 = vld [vmem:[%s2232 + $0x3c] sm:$0xf]
  %v2265 = vunpack.c.l.b16 %v2233
  %v2266 = vunpack.c.l.b16 %v2234
  %v2267 = vunpack.c.l.b16 %v2235
  %v2268 = vunpack.c.l.b16 %v2236
  %v2269 = vunpack.c.l.b16 %v2237
  %v2270 = vunpack.c.l.b16 %v2238
  %v2271 = vunpack.c.l.b16 %v2239
  %v2272 = vunpack.c.l.b16 %v2240
  %v2273 = vunpack.c.l.b16 %v2241
  %v2274 = vunpack.c.l.b16 %v2242
  %v2275 = vunpack.c.l.b16 %v2243
  %v2276 = vunpack.c.l.b16 %v2244
  %v2277 = vunpack.c.l.b16 %v2245
  %v2278 = vunpack.c.l.b16 %v2246
  %v2279 = vunpack.c.l.b16 %v2247
  %v2280 = vunpack.c.l.b16 %v2248
  %v2281 = vpack.c.b16 %v2266, %v2265
  %v2282 = vpack.c.b16 %v2268, %v2267
  %v2283 = vpack.c.b16 %v2270, %v2269
  %v2284 = vpack.c.b16 %v2272, %v2271
  %v2285 = vpack.c.b16 %v2274, %v2273
  %v2286 = vpack.c.b16 %v2276, %v2275
  %v2287 = vpack.c.b16 %v2278, %v2277
  %v2288 = vpack.c.b16 %v2280, %v2279
  %2297 = vmatprep.subr.bf16.mxu0 0
  %2298 = vmatpush1.bf16.msra.mxu0 %v2281
  %2299 = vmatprep.subr.bf16.mxu0 0
  %2300 = vmatpush1.bf16.msra.mxu0 %v2282
  %2301 = vmatprep.subr.bf16.mxu0 0
  %2302 = vmatpush1.bf16.msra.mxu0 %v2283
  %2303 = vmatprep.subr.bf16.mxu0 0
  %2304 = vmatpush1.bf16.msra.mxu0 %v2284
  %2305 = vmatprep.subr.bf16.mxu0 0
  %2306 = vmatpush1.bf16.msra.mxu0 %v2285
  %2307 = vmatprep.subr.bf16.mxu0 0
  %2308 = vmatpush1.bf16.msra.mxu0 %v2286
  %2309 = vmatprep.subr.bf16.mxu0 0
  %2310 = vmatpush1.bf16.msra.mxu0 %v2287
  %2311 = vmatprep.subr.bf16.mxu0 0
  %2312 = vmatpush1.bf16.msra.mxu0 %v2288
  %2313 = vmatprep.subr.bf16.mxu0 0
  %2314 = vmatpush1.bf16.msra.mxu0 0
  %2315 = vmatprep.subr.bf16.mxu0 0
  %2316 = vmatpush1.bf16.msra.mxu0 0
  %2317 = vmatprep.subr.bf16.mxu0 0
  %2318 = vmatpush1.bf16.msra.mxu0 0
  %2319 = vmatprep.subr.bf16.mxu0 0
  %2320 = vmatpush1.bf16.msra.mxu0 0
  %2321 = vmatprep.subr.bf16.mxu0 0
  %2322 = vmatpush1.bf16.msra.mxu0 0
  %2323 = vmatprep.subr.bf16.mxu0 0
  %2324 = vmatpush1.bf16.msra.mxu0 0
  %2325 = vmatprep.subr.bf16.mxu0 0
  %2326 = vmatpush1.bf16.msra.mxu0 0
  %2327 = vmatprep.subr.bf16.mxu0 0
  %2328 = vmatpush1.bf16.msra.mxu0 0
  %2329 = vmatprep.mubr.bf16.mxu0 0
  %2330 = vmatmul.mubr.bf16.gmra.mrb[0].mxu0 %v2231
  %v2331 = vpop.f32.mrb[0].mxu0
  %v2332 = vadd.f32 0.0, %v2331
  %v2333 = vpop.f32.mrb[0].mxu0
  %v2334 = vpop.f32.mrb[0].mxu0
  %v2335 = vadd.f32 0.0, %v2334
  %v2336 = vpop.f32.mrb[0].mxu0
  %2337 = vdwg.mxu0
  %v2338 = vadd.f32 %v2068, %v2332
  %v2339 = vadd.f32 %v2069, %v2335
  %v2340 = vld [vmem:[%s10 + $0x3] sm:$0x1]
  %v2341 = vlaneseq
  %v2342 = vshrl.u32 %v2341, 7
  %v2343 = vsub.s32 0, %v2342
  %v2344 = vrot.slane %v2340, %v2343
  %v2345 = vadd.f32 %v2338, %v2344
  %v2346 = vadd.f32 %v2339, %v2344
  %v2347 = vld [vmem:[%s11] sm:$0x1]
  %v2348 = vld [vmem:[%s11 + $0x1] sm:$0x1]
  %v2349 = vsel %vm234, %v2345, 0.0
  %2350 = vadd.xlane.f32.xlu0 %v2349
  %v2351 = vpop.xlane.xlu0 %2350
  %v2352 = vsel %vm234, %v2346, 0.0
  %2353 = vadd.xlane.f32.xlu0 %v2352
  %v2354 = vpop.xlane.xlu0 %2353
  %v2355 = vmul.f32 %v2351, %v241
  %v2356 = vmul.f32 %v2354, %v241
  %v2357 = vsub.f32 %v2345, %v2355
  %v2358 = vsub.f32 %v2346, %v2356
  %v2359 = vmul.f32 %v2357, %v2357
  %v2360 = vmul.f32 %v2358, %v2358
  %v2361 = vsel %vm234, %v2359, 0.0
  %2362 = vadd.xlane.f32.xlu0 %v2361
  %v2363 = vpop.xlane.xlu0 %2362
  %v2364 = vsel %vm234, %v2360, 0.0
  %2365 = vadd.xlane.f32.xlu0 %v2364
  %v2366 = vpop.xlane.xlu0 %2365
  %v2367 = vmul.f32 %v2363, %v241
  %v2368 = vmul.f32 %v2366, %v241
  %v2369 = vadd.f32 %v2367, 1e-12
  %v2370 = vadd.f32 %v2368, 1e-12
  %v2371 = vrsqrt.pop %v2369
  %v2372 = vrsqrt.pop %v2370
  %v2373 = vmul.f32 %v2357, %v2371
  %v2374 = vmul.f32 %v2358, %v2372
  %v2375 = vlaneseq
  %v2376 = vshrl.u32 %v2375, 7
  %v2377 = vsub.s32 0, %v2376
  %v2378 = vrot.slane %v2347, %v2377
  %v2379 = vmul.f32 %v2373, %v2378
  %v2380 = vmul.f32 %v2374, %v2378
  %v2381 = vlaneseq
  %v2382 = vshrl.u32 %v2381, 7
  %v2383 = vsub.s32 0, %v2382
  %v2384 = vrot.slane %v2348, %v2383
  %v2385 = vadd.f32 %v2379, %v2384
  %v2386 = vadd.f32 %v2380, %v2384
  %v2387 = vmul.f32 %v2385, 0.5
  %v2388 = vmul.f32 %v2386, 0.5
  %v2389 = vmul.f32 %v2385, 0.70710677
  %v2390 = vmul.f32 %v2386, 0.70710677
  %v2391 = vand.u32 2147483647, %v2389
  %v2392 = vand.u32 2147483647, %v2390
  %v2393 = vmul.f32 %v2391, 0.3275911
  %v2394 = vmul.f32 %v2392, 0.3275911
  %v2395 = vadd.f32 %v2393, 1.0
  %v2396 = vadd.f32 %v2394, 1.0
  %v2397 = vrcp.pop %v2395
  %v2398 = vmul.f32 1.0, %v2397
  %v2399 = vrcp.pop %v2396
  %v2400 = vmul.f32 1.0, %v2399
  %v2401 = vmul.f32 %v2398, 1.0614054
  %v2402 = vmul.f32 %v2400, 1.0614054
  %v2403 = vadd.f32 %v2401, -1.4531521
  %v2404 = vadd.f32 %v2402, -1.4531521
  %v2405 = vmul.f32 %v2403, %v2398
  %v2406 = vmul.f32 %v2404, %v2400
  %v2407 = vadd.f32 %v2405, 1.4214138
  %v2408 = vadd.f32 %v2406, 1.4214138
  %v2409 = vmul.f32 %v2407, %v2398
  %v2410 = vmul.f32 %v2408, %v2400
  %v2411 = vadd.f32 %v2409, -0.28449672
  %v2412 = vadd.f32 %v2410, -0.28449672
  %v2413 = vmul.f32 %v2411, %v2398
  %v2414 = vmul.f32 %v2412, %v2400
  %v2415 = vadd.f32 %v2413, 0.2548296
  %v2416 = vadd.f32 %v2414, 0.2548296
  %v2417 = vmul.f32 %v2415, %v2398
  %v2418 = vmul.f32 %v2416, %v2400
  %v2419 = vmul.f32 %v2391, %v2391
  %v2420 = vmul.f32 %v2392, %v2392
  %v2421 = vsub.f32 0.0, %v2419
  %v2422 = vsub.f32 0.0, %v2420
  %v2423 = vmul.f32 %v2421, 1.442695
  %v2424 = vpow.pop %v2423
  %v2425 = vmul.f32 %v2422, 1.442695
  %v2426 = vpow.pop %v2425
  %v2427 = vmul.f32 %v2417, %v2424
  %v2428 = vmul.f32 %v2418, %v2426
  %v2429 = vsub.f32 1.0, %v2427
  %v2430 = vsub.f32 1.0, %v2428
  %vm2431 = vcmp.ge.f32.partialorder %v2389, 0.0
  %vm2432 = vcmp.ge.f32.partialorder %v2390, 0.0
  %v2433 = vsub.f32 0.0, %v2429
  %v2434 = vsub.f32 0.0, %v2430
  %v2435 = vsel %vm2431, %v2429, %v2433
  %v2436 = vsel %vm2432, %v2430, %v2434
  %v2437 = vadd.f32 %v2435, 1.0
  %v2438 = vadd.f32 %v2436, 1.0
  %v2439 = vmul.f32 %v2387, %v2437
  %v2440 = vmul.f32 %v2388, %v2438
  %2441 = vst.msk [vmem:[%s13] sm:$0xff] %vm234, %v2439
  %2442 = vst.msk [vmem:[%s13 + $0x8] sm:$0xff] %vm234, %v2440
  %v2443 = vpack.c.bf16 %v2386, %v2385
  %v2444 = vld [vmem:[%s12] sm:$0xf]
  %v2445 = vld [vmem:[%s12 + $0x4] sm:$0xf]
  %v2446 = vld [vmem:[%s12 + $0x8] sm:$0xf]
  %v2447 = vld [vmem:[%s12 + $0xc] sm:$0xf]
  %v2448 = vld [vmem:[%s11 + $0x2] sm:$0x1]
  %v2449 = vlaneseq
  %v2450 = vshrl.u32 %v2449, 7
  %v2451 = vsub.s32 0, %v2450
  %v2452 = vrot.slane %v2448, %v2451
  %v2457 = vunpack.c.l.b16 %v2444
  %v2458 = vunpack.c.l.b16 %v2445
  %v2459 = vunpack.c.l.b16 %v2446
  %v2460 = vunpack.c.l.b16 %v2447
  %v2461 = vpack.c.b16 %v2458, %v2457
  %v2462 = vpack.c.b16 %v2460, %v2459
  %v2466 = vsel %vm234, %v2443, 0
  %2468 = vmatprep.subr.bf16.mxu0 0
  %2469 = vmatpush1.bf16.msra.mxu0 %v2461
  %2470 = vmatprep.subr.bf16.mxu0 0
  %2471 = vmatpush1.bf16.msra.mxu0 %v2462
  %2472 = vmatprep.subr.bf16.mxu0 0
  %2473 = vmatpush1.bf16.msra.mxu0 0
  %2474 = vmatprep.subr.bf16.mxu0 0
  %2475 = vmatpush1.bf16.msra.mxu0 0
  %2476 = vmatprep.subr.bf16.mxu0 0
  %2477 = vmatpush1.bf16.msra.mxu0 0
  %2478 = vmatprep.subr.bf16.mxu0 0
  %2479 = vmatpush1.bf16.msra.mxu0 0
  %2480 = vmatprep.subr.bf16.mxu0 0
  %2481 = vmatpush1.bf16.msra.mxu0 0
  %2482 = vmatprep.subr.bf16.mxu0 0
  %2483 = vmatpush1.bf16.msra.mxu0 0
  %2484 = vmatprep.subr.bf16.mxu0 0
  %2485 = vmatpush1.bf16.msra.mxu0 0
  %2486 = vmatprep.subr.bf16.mxu0 0
  %2487 = vmatpush1.bf16.msra.mxu0 0
  %2488 = vmatprep.subr.bf16.mxu0 0
  %2489 = vmatpush1.bf16.msra.mxu0 0
  %2490 = vmatprep.subr.bf16.mxu0 0
  %2491 = vmatpush1.bf16.msra.mxu0 0
  %2492 = vmatprep.subr.bf16.mxu0 0
  %2493 = vmatpush1.bf16.msra.mxu0 0
  %2494 = vmatprep.subr.bf16.mxu0 0
  %2495 = vmatpush1.bf16.msra.mxu0 0
  %2496 = vmatprep.subr.bf16.mxu0 0
  %2497 = vmatpush1.bf16.msra.mxu0 0
  %2498 = vmatprep.subr.bf16.mxu0 0
  %2499 = vmatpush1.bf16.msra.mxu0 0
  %2500 = vmatprep.mubr.bf16.mxu0 0
  %2501 = vmatmul.mubr.bf16.gmra.mrb[0].mxu0 %v2466
  %v2502 = vpop.f32.mrb[0].mxu0
  %v2503 = vadd.f32 %v2452, %v2502
  %v2504 = vpop.f32.mrb[0].mxu0
  %v2505 = vpop.f32.mrb[0].mxu0
  %v2506 = vadd.f32 %v2452, %v2505
  %v2507 = vpop.f32.mrb[0].mxu0
  %2508 = vdwg.mxu0
  %v2509 = vtanh.pop %v2503
  %v2510 = vtanh.pop %v2506
  %2511 = vst.msk [vmem:[%s14] sm:$0xff] %vm234, %v2509
  %2512 = vst.msk [vmem:[%s14 + $0x8] sm:$0xff] %vm234, %v2510
  // Predicated region
  $region54: #{vit_encoder_forward.1} parent=0 // pred_check
    _
  $region55: #{vit_encoder_forward.1} parent=0 // pred_check_branch
    %2514 = sbr.rel (0) target = $region57
  $region56: #{vit_encoder_forward.1} parent=0 // pred_region
    _
  $region57: #{vit_encoder_forward.1} parent=0 // pred_fallthru
    _
  // Predicated region
  $region58: #{vit_encoder_forward.1} parent=0 // pred_check
    _
  $region59: #{vit_encoder_forward.1} parent=0 // pred_check_branch
    %2516 = sbr.rel (0) target = $region61
  $region60: #{vit_encoder_forward.1} parent=0 // pred_region
    _
  $region61: #{vit_encoder_forward.1} parent=0 // pred_fallthru
    _
  // Predicated region
  $region62: #{vit_encoder_forward.1} parent=0 // pred_check
    _
  $region63: #{vit_encoder_forward.1} parent=0 // pred_check_branch
    %2518 = sbr.rel (0) target = $region65
  $region64: #{vit_encoder_forward.1} parent=0 // pred_region
    _
  $region65: #{vit_encoder_forward.1} parent=0 // pred_fallthru
    _
  // Predicated region
  $region66: #{vit_encoder_forward.1} parent=0 // pred_check
    _
  $region67: #{vit_encoder_forward.1} parent=0 // pred_check_branch
    %2520 = sbr.rel (0) target = $region69
  $region68: #{vit_encoder_forward.1} parent=0 // pred_region
    _
  $region69: #{vit_encoder_forward.1} parent=0 // pred_fallthru
    _

</llo_original>
